<compile_context>
chip_gen: v5e
topology: v5e:2x2
jax: 0.10.0
libtpu: 0.0.40
codegen_flags: <defaults>
</compile_context>

<pallas_src>
import functools

import jax
import jax.numpy as jnp
from jax import lax
from jax.experimental import pallas as pl
from jax.experimental.pallas import tpu as pltpu


# ----------------------------- Pallas kernel -----------------------------


def _convlstm_kernel(xcol_ref, wx_ref, wh_ref, b_ref, mask_ref, h_out_ref,
                     p_ref, c_ref, g_ref, *, H, W, Ch, lead, rc, msplit):
    """One ConvLSTM cell step; grid = (batch, time), recurrent state lives in VMEM scratch.

    xcol_ref : (NROWS, 9*Cin) bf16  precomputed im2col of x_t (pipelined input block)
    wx_ref   : (9*Cin, 4*Ch)  bf16  x-conv weight, K rows ordered (dy, dx, cin),
                                    gate stacking [i | f | c | o] along the output dim
    wh_ref   : (9, Ch, 4*Ch)  bf16  h-conv weight, one (Ch, 4*Ch) slab per 3x3 tap
    b_ref    : (1, 4*Ch)      f32   gate biases (x-convs only, as in the module)
    mask_ref : (NROWS, Ch)    f32   1.0 on valid rows of the padded-row layout, else 0.0
    h_out_ref: (NROWS, Ch)    f32   final h in padded-row layout (row = y*Wp + x)
    p_ref    : (PROWS, Ch)    bf16  scratch: zero-bordered padded h image, flat rows
    c_ref    : (NROWS, Ch)    f32   scratch: cell state
    g_ref    : (NROWS, 4*Ch)  f32   scratch: gate pre-activations (lane-dense staging)
    """
    Wp = W + 2
    nrows = H * Wp
    woff = lead + Wp + 1              # h write-back start row; 16-aligned via `lead`
    t = pl.program_id(1)

    # ---- t == 0: zero recurrent state; p_ref's zero border is h's spatial padding ----
    @pl.when(t == 0)
    def _():
        p_ref[...] = jnp.zeros_like(p_ref)
        c_ref[...] = jnp.zeros_like(c_ref)

    # ---- phase 1: gate pre-activations for all rows (matmuls only) -------------------
    # Split into `msplit` row groups to keep the f32 accumulator's vreg footprint small.
    # All reads of h_{t-1} from p_ref happen here, before phase 2 overwrites it with h_t.
    mrows = nrows // msplit
    for m in range(msplit):
        r0 = m * mrows
        # x part: one dense K = 9*Cin matmul, LHS is the pipelined im2col(x_t) block.
        g = jnp.dot(xcol_ref[r0:r0 + mrows, :], wx_ref[...],
                    preferred_element_type=jnp.float32) + b_ref[...]
        # h part: 9 accumulating K = Ch matmuls from shifted reads of the padded h
        # buffer -- no im2col staging stores at all.
        for dy in range(3):
            for dx in range(3):
                off = lead + r0 + dy * Wp + dx
                g = g + jnp.dot(p_ref[off:off + mrows, :], wh_ref[dy * 3 + dx],
                                preferred_element_type=jnp.float32)
        g_ref[r0:r0 + mrows, :] = g           # lane-dense (128-wide) f32 stores

    # ---- phase 2: gating + state update, chunked over rows (bounds vreg pressure) ----
    is_last = t == pl.num_programs(1) - 1

    def chunk(i, carry):
        r0 = pl.multiple_of(i * rc, 16)
        rows = pl.ds(r0, rc)
        gch = g_ref[rows, :]
        s = jax.nn.sigmoid(gch)                     # full 128-lane sigmoid, then slice
        gi = s[:, 0 * Ch:1 * Ch]
        gf = s[:, 1 * Ch:2 * Ch]
        go = s[:, 3 * Ch:4 * Ch]
        gc = jnp.tanh(gch[:, 2 * Ch:3 * Ch])
        cc = gf * c_ref[rows, :] + gi * gc
        c_ref[rows, :] = cc
        # Garbage columns (x >= W in the padded-row layout) are zeroed so the shifted
        # write below lands zeros exactly on p_ref's (must-stay-zero) padding border.
        h = go * jnp.tanh(cc) * mask_ref[rows, :]
        p_ref[pl.ds(pl.multiple_of(woff + r0, 16), rc), :] = h.astype(p_ref.dtype)

        @pl.when(is_last)
        def _():
            h_out_ref[rows, :] = h

        return carry

    lax.fori_loop(0, nrows // rc, chunk, 0)


# ----------------------------- wrapper (glue) -----------------------------


def convlstm_base_forward(x_seq, wx, bx, wh):
    """ConvLSTMbase.forward.

    x_seq : (T, N, H, W, Cin) f32  -- the module's {time_id: NCHW tensor} dict, already
                                      key-sorted, stacked over time and laid out NHWC.
    wx    : (3, 3, Cin, 4*Ch) f32  -- stacked x-conv weights, gate order [i | f | c | o]
    bx    : (4*Ch,) f32            -- stacked x-conv biases (h-convs carry no bias)
    wh    : (3, 3, Ch, 4*Ch) f32   -- stacked h-conv weights
    Returns the final hidden state h_T : (N, H, W, Ch) f32.
    """
    T, N, H, W, Cin = x_seq.shape
    Ch = wh.shape[2]
    Hp, Wp = H + 2, W + 2
    NROWS = H * Wp                     # padded-row layout: row = y*Wp + x, x in [0, Wp)
    assert NROWS % 16 == 0, "choose H, W so that H*(W+2) is a multiple of 16"
    # TODO(synk): for production H/W/Ch add a row-block grid axis with a 1-row halo
    # (v7x 64 MiB VMEM budget + second-TensorCore utilization at batch 1) and a batch
    # fold (Nb > 1 rows per matmul) for single-core v5e; unnecessary at these shapes.

    LEAD = (-(Wp + 1)) % 16            # dummy rows so the h write-back starts 16-aligned
    PROWS = ((LEAD + NROWS + 2 * Wp + 2 + 15) // 16) * 16

    # Row-chunk size for the in-kernel gating loop: a multiple of 16 dividing NROWS.
    RC = NROWS
    for cand in range(64, 15, -16):
        if NROWS % cand == 0:
            RC = cand
            break
    MSPLIT = 2 if (NROWS % 2 == 0 and (NROWS // 2) % 16 == 0) else 1

    # --- im2col of x for the whole sequence, done once outside the sequential loop ---
    xp = jnp.pad(x_seq, ((0, 0), (0, 0), (1, 1), (1, 1), (0, 0)))
    xflat = xp.reshape(T, N, Hp * Wp, Cin)
    xflat = jnp.pad(xflat, ((0, 0), (0, 0), (0, 2 * Wp + 2), (0, 0)))   # tap-shift slack
    xcol = jnp.concatenate(
        [xflat[:, :, dy * Wp + dx: dy * Wp + dx + NROWS, :]
         for dy in range(3) for dx in range(3)],
        axis=-1).astype(jnp.bfloat16)                                   # (T, N, NROWS, 9*Cin)

    # Weights: K rows ordered (dy, dx, channel); gate stacking [i | f | c | o] kept.
    wxf = wx.reshape(9 * Cin, 4 * Ch).astype(jnp.bfloat16)
    whf = wh.reshape(9, Ch, 4 * Ch).astype(jnp.bfloat16)
    bf = bx.reshape(1, 4 * Ch).astype(jnp.float32)

    # Constant row-validity mask (2 garbage columns per row in the padded-row layout).
    valid = (jnp.arange(NROWS) % Wp) < W
    mask = jnp.broadcast_to(valid[:, None], (NROWS, Ch)).astype(jnp.float32)

    kernel = functools.partial(_convlstm_kernel, H=H, W=W, Ch=Ch,
                               lead=LEAD, rc=RC, msplit=MSPLIT)
    h_flat = pl.pallas_call(
        kernel,
        out_shape=jax.ShapeDtypeStruct((N, NROWS, Ch), jnp.float32),
        grid_spec=pltpu.PrefetchScalarGridSpec(
            num_scalar_prefetch=0,
            grid=(N, T),                                    # batch outer, time inner
            in_specs=[
                pl.BlockSpec((None, None, NROWS, 9 * Cin), lambda n, t: (t, n, 0, 0)),
                pl.BlockSpec((9 * Cin, 4 * Ch), lambda n, t: (0, 0)),
                pl.BlockSpec((9, Ch, 4 * Ch), lambda n, t: (0, 0, 0)),
                pl.BlockSpec((1, 4 * Ch), lambda n, t: (0, 0)),
                pl.BlockSpec((NROWS, Ch), lambda n, t: (0, 0)),
            ],
            out_specs=pl.BlockSpec((None, NROWS, Ch), lambda n, t: (n, 0, 0)),
            scratch_shapes=[
                pltpu.VMEM((PROWS, Ch), jnp.bfloat16),       # zero-bordered padded h image
                pltpu.VMEM((NROWS, Ch), jnp.float32),        # cell state c
                pltpu.VMEM((NROWS, 4 * Ch), jnp.float32),    # gate pre-activations g
            ]),
        compiler_params=pltpu.CompilerParams(
            dimension_semantics=("parallel", "arbitrary"),
            vmem_limit_bytes=32 * 1024 * 1024),
    )(xcol, wxf, whf, bf, mask)

    # Strip the 2 padding columns of the padded-row layout: (N, H*Wp, Ch) -> (N, H, W, Ch).
    return h_flat.reshape(N, H, Wp, Ch)[:, :, :W, :]


# ----------------------------- pure-JAX reference -----------------------------


def _conv(x, w):
    return lax.conv_general_dilated(
        x, w, window_strides=(1, 1), padding="SAME",
        dimension_numbers=("NHWC", "HWIO", "NHWC"),
        preferred_element_type=jnp.float32)


def convlstm_base_ref(x_seq, wx, bx, wh, *, bf16_matmuls=False):
    """Pure-JAX reference. bf16_matmuls=True mirrors the kernel's MXU precision."""
    T, N, H, W, Cin = x_seq.shape
    Ch = wh.shape[2]
    h = jnp.zeros((N, H, W, Ch), jnp.float32)
    c = jnp.zeros((N, H, W, Ch), jnp.float32)
    cdt = jnp.bfloat16 if bf16_matmuls else jnp.float32
    wx_, wh_ = wx.astype(cdt), wh.astype(cdt)
    b = bx.reshape(1, 1, 1, 4 * Ch)
    for t in range(T):
        g = _conv(x_seq[t].astype(cdt), wx_) + _conv(h.astype(cdt), wh_) + b
        gi, gf, gc, go = (g[..., k * Ch:(k + 1) * Ch] for k in range(4))
        # Peephole weights Wci/Wcf/Wco are zeros from init_hidden -> terms omitted.
        ci = jax.nn.sigmoid(gi)
        cf = jax.nn.sigmoid(gf)
        cc = cf * c + ci * jnp.tanh(gc)
        co = jax.nn.sigmoid(go)
        h, c = co * jnp.tanh(cc), cc
    return h


# ----------------------------- main -----------------------------


if __name__ == "__main__":
    # Small module-consistent shapes: num_features = 32 (input == hidden channels, even
    # as required by ConvLSTMCell), T = 4 time steps, batch N = 2, spatial 16 x 16.
    T, N, H, W, C = 4, 2, 16, 16, 32

    key = jax.random.PRNGKey(0)
    k_x, k_wx, k_bx, k_wh = jax.random.split(key, 4)

    # Deterministic synthetic parameters; stacked gate order [i, f, c, o];
    # x-convs carry the bias, h-convs have none (as in the PyTorch module).
    wx = 0.05 * jax.random.normal(k_wx, (3, 3, C, 4 * C), jnp.float32)
    wh = 0.05 * jax.random.normal(k_wh, (3, 3, C, 4 * C), jnp.float32)
    bx = 0.05 * jax.random.normal(k_bx, (4 * C,), jnp.float32)

    # The torch module takes a dict {time_id: NCHW tensor}; here the time-sorted
    # sequence is one stacked (T, N, H, W, C) array in NHWC layout.
    x_seq = jax.random.normal(k_x, (T, N, H, W, C), jnp.float32)

    fwd = jax.jit(convlstm_base_forward)
    h_pallas = jax.block_until_ready(fwd(x_seq, wx, bx, wh))
    assert h_pallas.shape == (N, H, W, C)

    # Precision-matched reference (bf16 conv operands, f32 accumulation / gating).
    h_ref_matched = convlstm_base_ref(x_seq, wx, bx, wh, bf16_matmuls=True)
    err_matched = float(jnp.max(jnp.abs(h_pallas - h_ref_matched)))
    # Full-f32 reference (bf16 MXU matmuls loosen this tolerance).
    h_ref_f32 = convlstm_base_ref(x_seq, wx, bx, wh, bf16_matmuls=False)
    err_f32 = float(jnp.max(jnp.abs(h_pallas - h_ref_f32)))

    assert err_matched < 5e-3, f"mismatch vs precision-matched reference: {err_matched}"
    assert err_f32 < 1e-1, f"mismatch vs f32 reference: {err_f32}"
    print("KERNEL_OK")
</pallas_src>

<mosaic_0001>
module attributes {stable_mosaic.version = 11 : i64} {
  func.func @_convlstm_kernel(%arg0: i32, %arg1: i32, %arg2: memref<1x1x288x288xbf16, #tpu.memory_space<vmem>>, %arg3: memref<288x128xbf16, #tpu.memory_space<vmem>>, %arg4: memref<9x32x128xbf16, #tpu.memory_space<vmem>>, %arg5: memref<1x128xf32, #tpu.memory_space<vmem>>, %arg6: memref<288x32xf32, #tpu.memory_space<vmem>>, %arg7: memref<1x288x32xf32, #tpu.memory_space<vmem>>, %arg8: memref<352x32xbf16, #tpu.memory_space<vmem>>, %arg9: memref<288x32xf32, #tpu.memory_space<vmem>>, %arg10: memref<288x128xf32, #tpu.memory_space<vmem>>) attributes {dimension_semantics = [#tpu.dimension_semantics<parallel>, #tpu.dimension_semantics<arbitrary>], iteration_bounds = array<i64: 2, 4>, scalar_prefetch = 0 : i64, scratch_operands = 3 : i64, tpu.core_type = #tpu.core_type<tc>, window_params = [{transform_indices = @transform_0, window_bounds = array<i64: 1, 1, 288, 288>}, {pipeline_mode = #tpu.pipeline_mode<synchronous>, transform_indices = @transform_1, window_bounds = array<i64: 288, 128>}, {pipeline_mode = #tpu.pipeline_mode<synchronous>, transform_indices = @transform_2, window_bounds = array<i64: 9, 32, 128>}, {pipeline_mode = #tpu.pipeline_mode<synchronous>, transform_indices = @transform_3, window_bounds = array<i64: 1, 128>}, {pipeline_mode = #tpu.pipeline_mode<synchronous>, transform_indices = @transform_4, window_bounds = array<i64: 288, 32>}, {transform_indices = @transform_5, window_bounds = array<i64: 1, 288, 32>}]} {
    %c0_i32 = arith.constant 0 : i32
    %0 = arith.cmpi eq, %arg1, %c0_i32 : i32
    %1 = arith.extui %0 : i1 to i32
    %c0_i32_0 = arith.constant 0 : i32
    %2 = arith.cmpi ne, %1, %c0_i32_0 : i32
    scf.if %2 {
      %cst_104 = arith.constant 0.000000e+00 : bf16
      %111 = vector.broadcast %cst_104 : bf16 to vector<352x32xbf16>
      %c0_105 = arith.constant 0 : index
      %c0_106 = arith.constant 0 : index
      %112 = vector.load %arg8[%c0_105, %c0_106] : memref<352x32xbf16, #tpu.memory_space<vmem>>, vector<352x32xbf16>
      tpu.vector_store %arg8[%c0_105, %c0_106], %111 {strides = array<i32>} : memref<352x32xbf16, #tpu.memory_space<vmem>>, vector<352x32xbf16>,
      %cst_107 = arith.constant 0.000000e+00 : f32
      %113 = vector.broadcast %cst_107 : f32 to vector<288x32xf32>
      %c0_108 = arith.constant 0 : index
      %c0_109 = arith.constant 0 : index
      %114 = vector.load %arg9[%c0_108, %c0_109] : memref<288x32xf32, #tpu.memory_space<vmem>>, vector<288x32xf32>
      tpu.vector_store %arg9[%c0_108, %c0_109], %113 {strides = array<i32>} : memref<288x32xf32, #tpu.memory_space<vmem>>, vector<288x32xf32>,
    } else {
    }
    %c0 = arith.constant 0 : index
    %c0_1 = arith.constant 0 : index
    %c0_2 = arith.constant 0 : index
    %c0_3 = arith.constant 0 : index
    %3 = vector.load %arg2[%c0, %c0_1, %c0_2, %c0_3] : memref<1x1x288x288xbf16, #tpu.memory_space<vmem>>, vector<1x1x144x288xbf16>
    %4 = vector.shape_cast %3 : vector<1x1x144x288xbf16> to vector<144x288xbf16>
    %c0_4 = arith.constant 0 : index
    %c0_5 = arith.constant 0 : index
    %5 = vector.load %arg3[%c0_4, %c0_5] : memref<288x128xbf16, #tpu.memory_space<vmem>>, vector<288x128xbf16>
    %cst = arith.constant dense<0.000000e+00> : vector<144x128xf32>
    %6 = tpu.matmul %4, %5, %cst {dimension_numbers = #tpu.dot_dimension_numbers<[1], [0], [0], [1], [0, 0, 1, 1], [], []>} : vector<144x288xbf16>, vector<288x128xbf16>, vector<144x128xf32> -> vector<144x128xf32>
    %c0_6 = arith.constant 0 : index
    %c0_7 = arith.constant 0 : index
    %7 = vector.load %arg5[%c0_6, %c0_7] : memref<1x128xf32, #tpu.memory_space<vmem>>, vector<1x128xf32>
    %8 = vector.broadcast %7 : vector<1x128xf32> to vector<144x128xf32>
    %9 = arith.addf %6, %8 : vector<144x128xf32>
    %c13 = arith.constant 13 : index
    %c0_8 = arith.constant 0 : index
    %10 = vector.load %arg8[%c13, %c0_8] : memref<352x32xbf16, #tpu.memory_space<vmem>>, vector<144x32xbf16>
    %c0_9 = arith.constant 0 : index
    %c0_10 = arith.constant 0 : index
    %c0_11 = arith.constant 0 : index
    %11 = vector.load %arg4[%c0_9, %c0_10, %c0_11] : memref<9x32x128xbf16, #tpu.memory_space<vmem>>, vector<1x32x128xbf16>
    %12 = vector.shape_cast %11 : vector<1x32x128xbf16> to vector<32x128xbf16>
    %cst_12 = arith.constant dense<0.000000e+00> : vector<144x128xf32>
    %13 = tpu.matmul %10, %12, %cst_12 {dimension_numbers = #tpu.dot_dimension_numbers<[1], [0], [0], [1], [0, 0, 1, 1], [], []>} : vector<144x32xbf16>, vector<32x128xbf16>, vector<144x128xf32> -> vector<144x128xf32>
    %14 = arith.addf %9, %13 : vector<144x128xf32>
    %c14 = arith.constant 14 : index
    %c0_13 = arith.constant 0 : index
    %15 = vector.load %arg8[%c14, %c0_13] : memref<352x32xbf16, #tpu.memory_space<vmem>>, vector<144x32xbf16>
    %c1 = arith.constant 1 : index
    %c0_14 = arith.constant 0 : index
    %c0_15 = arith.constant 0 : index
    %16 = vector.load %arg4[%c1, %c0_14, %c0_15] : memref<9x32x128xbf16, #tpu.memory_space<vmem>>, vector<1x32x128xbf16>
    %17 = vector.shape_cast %16 : vector<1x32x128xbf16> to vector<32x128xbf16>
    %cst_16 = arith.constant dense<0.000000e+00> : vector<144x128xf32>
    %18 = tpu.matmul %15, %17, %cst_16 {dimension_numbers = #tpu.dot_dimension_numbers<[1], [0], [0], [1], [0, 0, 1, 1], [], []>} : vector<144x32xbf16>, vector<32x128xbf16>, vector<144x128xf32> -> vector<144x128xf32>
    %19 = arith.addf %14, %18 : vector<144x128xf32>
    %c15 = arith.constant 15 : index
    %c0_17 = arith.constant 0 : index
    %20 = vector.load %arg8[%c15, %c0_17] : memref<352x32xbf16, #tpu.memory_space<vmem>>, vector<144x32xbf16>
    %c2 = arith.constant 2 : index
    %c0_18 = arith.constant 0 : index
    %c0_19 = arith.constant 0 : index
    %21 = vector.load %arg4[%c2, %c0_18, %c0_19] : memref<9x32x128xbf16, #tpu.memory_space<vmem>>, vector<1x32x128xbf16>
    %22 = vector.shape_cast %21 : vector<1x32x128xbf16> to vector<32x128xbf16>
    %cst_20 = arith.constant dense<0.000000e+00> : vector<144x128xf32>
    %23 = tpu.matmul %20, %22, %cst_20 {dimension_numbers = #tpu.dot_dimension_numbers<[1], [0], [0], [1], [0, 0, 1, 1], [], []>} : vector<144x32xbf16>, vector<32x128xbf16>, vector<144x128xf32> -> vector<144x128xf32>
    %24 = arith.addf %19, %23 : vector<144x128xf32>
    %c31 = arith.constant 31 : index
    %c0_21 = arith.constant 0 : index
    %25 = vector.load %arg8[%c31, %c0_21] : memref<352x32xbf16, #tpu.memory_space<vmem>>, vector<144x32xbf16>
    %c3 = arith.constant 3 : index
    %c0_22 = arith.constant 0 : index
    %c0_23 = arith.constant 0 : index
    %26 = vector.load %arg4[%c3, %c0_22, %c0_23] : memref<9x32x128xbf16, #tpu.memory_space<vmem>>, vector<1x32x128xbf16>
    %27 = vector.shape_cast %26 : vector<1x32x128xbf16> to vector<32x128xbf16>
    %cst_24 = arith.constant dense<0.000000e+00> : vector<144x128xf32>
    %28 = tpu.matmul %25, %27, %cst_24 {dimension_numbers = #tpu.dot_dimension_numbers<[1], [0], [0], [1], [0, 0, 1, 1], [], []>} : vector<144x32xbf16>, vector<32x128xbf16>, vector<144x128xf32> -> vector<144x128xf32>
    %29 = arith.addf %24, %28 : vector<144x128xf32>
    %c32 = arith.constant 32 : index
    %c0_25 = arith.constant 0 : index
    %30 = vector.load %arg8[%c32, %c0_25] : memref<352x32xbf16, #tpu.memory_space<vmem>>, vector<144x32xbf16>
    %c4 = arith.constant 4 : index
    %c0_26 = arith.constant 0 : index
    %c0_27 = arith.constant 0 : index
    %31 = vector.load %arg4[%c4, %c0_26, %c0_27] : memref<9x32x128xbf16, #tpu.memory_space<vmem>>, vector<1x32x128xbf16>
    %32 = vector.shape_cast %31 : vector<1x32x128xbf16> to vector<32x128xbf16>
    %cst_28 = arith.constant dense<0.000000e+00> : vector<144x128xf32>
    %33 = tpu.matmul %30, %32, %cst_28 {dimension_numbers = #tpu.dot_dimension_numbers<[1], [0], [0], [1], [0, 0, 1, 1], [], []>} : vector<144x32xbf16>, vector<32x128xbf16>, vector<144x128xf32> -> vector<144x128xf32>
    %34 = arith.addf %29, %33 : vector<144x128xf32>
    %c33 = arith.constant 33 : index
    %c0_29 = arith.constant 0 : index
    %35 = vector.load %arg8[%c33, %c0_29] : memref<352x32xbf16, #tpu.memory_space<vmem>>, vector<144x32xbf16>
    %c5 = arith.constant 5 : index
    %c0_30 = arith.constant 0 : index
    %c0_31 = arith.constant 0 : index
    %36 = vector.load %arg4[%c5, %c0_30, %c0_31] : memref<9x32x128xbf16, #tpu.memory_space<vmem>>, vector<1x32x128xbf16>
    %37 = vector.shape_cast %36 : vector<1x32x128xbf16> to vector<32x128xbf16>
    %cst_32 = arith.constant dense<0.000000e+00> : vector<144x128xf32>
    %38 = tpu.matmul %35, %37, %cst_32 {dimension_numbers = #tpu.dot_dimension_numbers<[1], [0], [0], [1], [0, 0, 1, 1], [], []>} : vector<144x32xbf16>, vector<32x128xbf16>, vector<144x128xf32> -> vector<144x128xf32>
    %39 = arith.addf %34, %38 : vector<144x128xf32>
    %c49 = arith.constant 49 : index
    %c0_33 = arith.constant 0 : index
    %40 = vector.load %arg8[%c49, %c0_33] : memref<352x32xbf16, #tpu.memory_space<vmem>>, vector<144x32xbf16>
    %c6 = arith.constant 6 : index
    %c0_34 = arith.constant 0 : index
    %c0_35 = arith.constant 0 : index
    %41 = vector.load %arg4[%c6, %c0_34, %c0_35] : memref<9x32x128xbf16, #tpu.memory_space<vmem>>, vector<1x32x128xbf16>
    %42 = vector.shape_cast %41 : vector<1x32x128xbf16> to vector<32x128xbf16>
    %cst_36 = arith.constant dense<0.000000e+00> : vector<144x128xf32>
    %43 = tpu.matmul %40, %42, %cst_36 {dimension_numbers = #tpu.dot_dimension_numbers<[1], [0], [0], [1], [0, 0, 1, 1], [], []>} : vector<144x32xbf16>, vector<32x128xbf16>, vector<144x128xf32> -> vector<144x128xf32>
    %44 = arith.addf %39, %43 : vector<144x128xf32>
    %c50 = arith.constant 50 : index
    %c0_37 = arith.constant 0 : index
    %45 = vector.load %arg8[%c50, %c0_37] : memref<352x32xbf16, #tpu.memory_space<vmem>>, vector<144x32xbf16>
    %c7 = arith.constant 7 : index
    %c0_38 = arith.constant 0 : index
    %c0_39 = arith.constant 0 : index
    %46 = vector.load %arg4[%c7, %c0_38, %c0_39] : memref<9x32x128xbf16, #tpu.memory_space<vmem>>, vector<1x32x128xbf16>
    %47 = vector.shape_cast %46 : vector<1x32x128xbf16> to vector<32x128xbf16>
    %cst_40 = arith.constant dense<0.000000e+00> : vector<144x128xf32>
    %48 = tpu.matmul %45, %47, %cst_40 {dimension_numbers = #tpu.dot_dimension_numbers<[1], [0], [0], [1], [0, 0, 1, 1], [], []>} : vector<144x32xbf16>, vector<32x128xbf16>, vector<144x128xf32> -> vector<144x128xf32>
    %49 = arith.addf %44, %48 : vector<144x128xf32>
    %c51 = arith.constant 51 : index
    %c0_41 = arith.constant 0 : index
    %50 = vector.load %arg8[%c51, %c0_41] : memref<352x32xbf16, #tpu.memory_space<vmem>>, vector<144x32xbf16>
    %c8 = arith.constant 8 : index
    %c0_42 = arith.constant 0 : index
    %c0_43 = arith.constant 0 : index
    %51 = vector.load %arg4[%c8, %c0_42, %c0_43] : memref<9x32x128xbf16, #tpu.memory_space<vmem>>, vector<1x32x128xbf16>
    %52 = vector.shape_cast %51 : vector<1x32x128xbf16> to vector<32x128xbf16>
    %cst_44 = arith.constant dense<0.000000e+00> : vector<144x128xf32>
    %53 = tpu.matmul %50, %52, %cst_44 {dimension_numbers = #tpu.dot_dimension_numbers<[1], [0], [0], [1], [0, 0, 1, 1], [], []>} : vector<144x32xbf16>, vector<32x128xbf16>, vector<144x128xf32> -> vector<144x128xf32>
    %54 = arith.addf %49, %53 : vector<144x128xf32>
    %c0_45 = arith.constant 0 : index
    %c0_46 = arith.constant 0 : index
    %55 = vector.load %arg10[%c0_45, %c0_46] : memref<288x128xf32, #tpu.memory_space<vmem>>, vector<144x128xf32>
    tpu.vector_store %arg10[%c0_45, %c0_46], %54 {strides = array<i32>} : memref<288x128xf32, #tpu.memory_space<vmem>>, vector<144x128xf32>,
    %c0_47 = arith.constant 0 : index
    %c0_48 = arith.constant 0 : index
    %c144 = arith.constant 144 : index
    %c0_49 = arith.constant 0 : index
    %56 = vector.load %arg2[%c0_47, %c0_48, %c144, %c0_49] : memref<1x1x288x288xbf16, #tpu.memory_space<vmem>>, vector<1x1x144x288xbf16>
    %57 = vector.shape_cast %56 : vector<1x1x144x288xbf16> to vector<144x288xbf16>
    %c0_50 = arith.constant 0 : index
    %c0_51 = arith.constant 0 : index
    %58 = vector.load %arg3[%c0_50, %c0_51] : memref<288x128xbf16, #tpu.memory_space<vmem>>, vector<288x128xbf16>
    %cst_52 = arith.constant dense<0.000000e+00> : vector<144x128xf32>
    %59 = tpu.matmul %57, %58, %cst_52 {dimension_numbers = #tpu.dot_dimension_numbers<[1], [0], [0], [1], [0, 0, 1, 1], [], []>} : vector<144x288xbf16>, vector<288x128xbf16>, vector<144x128xf32> -> vector<144x128xf32>
    %c0_53 = arith.constant 0 : index
    %c0_54 = arith.constant 0 : index
    %60 = vector.load %arg5[%c0_53, %c0_54] : memref<1x128xf32, #tpu.memory_space<vmem>>, vector<1x128xf32>
    %61 = vector.broadcast %60 : vector<1x128xf32> to vector<144x128xf32>
    %62 = arith.addf %59, %61 : vector<144x128xf32>
    %c157 = arith.constant 157 : index
    %c0_55 = arith.constant 0 : index
    %63 = vector.load %arg8[%c157, %c0_55] : memref<352x32xbf16, #tpu.memory_space<vmem>>, vector<144x32xbf16>
    %c0_56 = arith.constant 0 : index
    %c0_57 = arith.constant 0 : index
    %c0_58 = arith.constant 0 : index
    %64 = vector.load %arg4[%c0_56, %c0_57, %c0_58] : memref<9x32x128xbf16, #tpu.memory_space<vmem>>, vector<1x32x128xbf16>
    %65 = vector.shape_cast %64 : vector<1x32x128xbf16> to vector<32x128xbf16>
    %cst_59 = arith.constant dense<0.000000e+00> : vector<144x128xf32>
    %66 = tpu.matmul %63, %65, %cst_59 {dimension_numbers = #tpu.dot_dimension_numbers<[1], [0], [0], [1], [0, 0, 1, 1], [], []>} : vector<144x32xbf16>, vector<32x128xbf16>, vector<144x128xf32> -> vector<144x128xf32>
    %67 = arith.addf %62, %66 : vector<144x128xf32>
    %c158 = arith.constant 158 : index
    %c0_60 = arith.constant 0 : index
    %68 = vector.load %arg8[%c158, %c0_60] : memref<352x32xbf16, #tpu.memory_space<vmem>>, vector<144x32xbf16>
    %c1_61 = arith.constant 1 : index
    %c0_62 = arith.constant 0 : index
    %c0_63 = arith.constant 0 : index
    %69 = vector.load %arg4[%c1_61, %c0_62, %c0_63] : memref<9x32x128xbf16, #tpu.memory_space<vmem>>, vector<1x32x128xbf16>
    %70 = vector.shape_cast %69 : vector<1x32x128xbf16> to vector<32x128xbf16>
    %cst_64 = arith.constant dense<0.000000e+00> : vector<144x128xf32>
    %71 = tpu.matmul %68, %70, %cst_64 {dimension_numbers = #tpu.dot_dimension_numbers<[1], [0], [0], [1], [0, 0, 1, 1], [], []>} : vector<144x32xbf16>, vector<32x128xbf16>, vector<144x128xf32> -> vector<144x128xf32>
    %72 = arith.addf %67, %71 : vector<144x128xf32>
    %c159 = arith.constant 159 : index
    %c0_65 = arith.constant 0 : index
    %73 = vector.load %arg8[%c159, %c0_65] : memref<352x32xbf16, #tpu.memory_space<vmem>>, vector<144x32xbf16>
    %c2_66 = arith.constant 2 : index
    %c0_67 = arith.constant 0 : index
    %c0_68 = arith.constant 0 : index
    %74 = vector.load %arg4[%c2_66, %c0_67, %c0_68] : memref<9x32x128xbf16, #tpu.memory_space<vmem>>, vector<1x32x128xbf16>
    %75 = vector.shape_cast %74 : vector<1x32x128xbf16> to vector<32x128xbf16>
    %cst_69 = arith.constant dense<0.000000e+00> : vector<144x128xf32>
    %76 = tpu.matmul %73, %75, %cst_69 {dimension_numbers = #tpu.dot_dimension_numbers<[1], [0], [0], [1], [0, 0, 1, 1], [], []>} : vector<144x32xbf16>, vector<32x128xbf16>, vector<144x128xf32> -> vector<144x128xf32>
    %77 = arith.addf %72, %76 : vector<144x128xf32>
    %c175 = arith.constant 175 : index
    %c0_70 = arith.constant 0 : index
    %78 = vector.load %arg8[%c175, %c0_70] : memref<352x32xbf16, #tpu.memory_space<vmem>>, vector<144x32xbf16>
    %c3_71 = arith.constant 3 : index
    %c0_72 = arith.constant 0 : index
    %c0_73 = arith.constant 0 : index
    %79 = vector.load %arg4[%c3_71, %c0_72, %c0_73] : memref<9x32x128xbf16, #tpu.memory_space<vmem>>, vector<1x32x128xbf16>
    %80 = vector.shape_cast %79 : vector<1x32x128xbf16> to vector<32x128xbf16>
    %cst_74 = arith.constant dense<0.000000e+00> : vector<144x128xf32>
    %81 = tpu.matmul %78, %80, %cst_74 {dimension_numbers = #tpu.dot_dimension_numbers<[1], [0], [0], [1], [0, 0, 1, 1], [], []>} : vector<144x32xbf16>, vector<32x128xbf16>, vector<144x128xf32> -> vector<144x128xf32>
    %82 = arith.addf %77, %81 : vector<144x128xf32>
    %c176 = arith.constant 176 : index
    %c0_75 = arith.constant 0 : index
    %83 = vector.load %arg8[%c176, %c0_75] : memref<352x32xbf16, #tpu.memory_space<vmem>>, vector<144x32xbf16>
    %c4_76 = arith.constant 4 : index
    %c0_77 = arith.constant 0 : index
    %c0_78 = arith.constant 0 : index
    %84 = vector.load %arg4[%c4_76, %c0_77, %c0_78] : memref<9x32x128xbf16, #tpu.memory_space<vmem>>, vector<1x32x128xbf16>
    %85 = vector.shape_cast %84 : vector<1x32x128xbf16> to vector<32x128xbf16>
    %cst_79 = arith.constant dense<0.000000e+00> : vector<144x128xf32>
    %86 = tpu.matmul %83, %85, %cst_79 {dimension_numbers = #tpu.dot_dimension_numbers<[1], [0], [0], [1], [0, 0, 1, 1], [], []>} : vector<144x32xbf16>, vector<32x128xbf16>, vector<144x128xf32> -> vector<144x128xf32>
    %87 = arith.addf %82, %86 : vector<144x128xf32>
    %c177 = arith.constant 177 : index
    %c0_80 = arith.constant 0 : index
    %88 = vector.load %arg8[%c177, %c0_80] : memref<352x32xbf16, #tpu.memory_space<vmem>>, vector<144x32xbf16>
    %c5_81 = arith.constant 5 : index
    %c0_82 = arith.constant 0 : index
    %c0_83 = arith.constant 0 : index
    %89 = vector.load %arg4[%c5_81, %c0_82, %c0_83] : memref<9x32x128xbf16, #tpu.memory_space<vmem>>, vector<1x32x128xbf16>
    %90 = vector.shape_cast %89 : vector<1x32x128xbf16> to vector<32x128xbf16>
    %cst_84 = arith.constant dense<0.000000e+00> : vector<144x128xf32>
    %91 = tpu.matmul %88, %90, %cst_84 {dimension_numbers = #tpu.dot_dimension_numbers<[1], [0], [0], [1], [0, 0, 1, 1], [], []>} : vector<144x32xbf16>, vector<32x128xbf16>, vector<144x128xf32> -> vector<144x128xf32>
    %92 = arith.addf %87, %91 : vector<144x128xf32>
    %c193 = arith.constant 193 : index
    %c0_85 = arith.constant 0 : index
    %93 = vector.load %arg8[%c193, %c0_85] : memref<352x32xbf16, #tpu.memory_space<vmem>>, vector<144x32xbf16>
    %c6_86 = arith.constant 6 : index
    %c0_87 = arith.constant 0 : index
    %c0_88 = arith.constant 0 : index
    %94 = vector.load %arg4[%c6_86, %c0_87, %c0_88] : memref<9x32x128xbf16, #tpu.memory_space<vmem>>, vector<1x32x128xbf16>
    %95 = vector.shape_cast %94 : vector<1x32x128xbf16> to vector<32x128xbf16>
    %cst_89 = arith.constant dense<0.000000e+00> : vector<144x128xf32>
    %96 = tpu.matmul %93, %95, %cst_89 {dimension_numbers = #tpu.dot_dimension_numbers<[1], [0], [0], [1], [0, 0, 1, 1], [], []>} : vector<144x32xbf16>, vector<32x128xbf16>, vector<144x128xf32> -> vector<144x128xf32>
    %97 = arith.addf %92, %96 : vector<144x128xf32>
    %c194 = arith.constant 194 : index
    %c0_90 = arith.constant 0 : index
    %98 = vector.load %arg8[%c194, %c0_90] : memref<352x32xbf16, #tpu.memory_space<vmem>>, vector<144x32xbf16>
    %c7_91 = arith.constant 7 : index
    %c0_92 = arith.constant 0 : index
    %c0_93 = arith.constant 0 : index
    %99 = vector.load %arg4[%c7_91, %c0_92, %c0_93] : memref<9x32x128xbf16, #tpu.memory_space<vmem>>, vector<1x32x128xbf16>
    %100 = vector.shape_cast %99 : vector<1x32x128xbf16> to vector<32x128xbf16>
    %cst_94 = arith.constant dense<0.000000e+00> : vector<144x128xf32>
    %101 = tpu.matmul %98, %100, %cst_94 {dimension_numbers = #tpu.dot_dimension_numbers<[1], [0], [0], [1], [0, 0, 1, 1], [], []>} : vector<144x32xbf16>, vector<32x128xbf16>, vector<144x128xf32> -> vector<144x128xf32>
    %102 = arith.addf %97, %101 : vector<144x128xf32>
    %c195 = arith.constant 195 : index
    %c0_95 = arith.constant 0 : index
    %103 = vector.load %arg8[%c195, %c0_95] : memref<352x32xbf16, #tpu.memory_space<vmem>>, vector<144x32xbf16>
    %c8_96 = arith.constant 8 : index
    %c0_97 = arith.constant 0 : index
    %c0_98 = arith.constant 0 : index
    %104 = vector.load %arg4[%c8_96, %c0_97, %c0_98] : memref<9x32x128xbf16, #tpu.memory_space<vmem>>, vector<1x32x128xbf16>
    %105 = vector.shape_cast %104 : vector<1x32x128xbf16> to vector<32x128xbf16>
    %cst_99 = arith.constant dense<0.000000e+00> : vector<144x128xf32>
    %106 = tpu.matmul %103, %105, %cst_99 {dimension_numbers = #tpu.dot_dimension_numbers<[1], [0], [0], [1], [0, 0, 1, 1], [], []>} : vector<144x32xbf16>, vector<32x128xbf16>, vector<144x128xf32> -> vector<144x128xf32>
    %107 = arith.addf %102, %106 : vector<144x128xf32>
    %c144_100 = arith.constant 144 : index
    %c0_101 = arith.constant 0 : index
    %108 = vector.load %arg10[%c144_100, %c0_101] : memref<288x128xf32, #tpu.memory_space<vmem>>, vector<144x128xf32>
    tpu.vector_store %arg10[%c144_100, %c0_101], %107 {strides = array<i32>} : memref<288x128xf32, #tpu.memory_space<vmem>>, vector<144x128xf32>,
    %c3_i32 = arith.constant 3 : i32
    %109 = arith.cmpi eq, %arg1, %c3_i32 : i32
    %c0_i32_102 = arith.constant 0 : i32
    %c6_i32 = arith.constant 6 : i32
    %110 = arith.addi %c0_i32_102, %c6_i32 : i32
    %c1_i32 = arith.constant 1 : i32
    scf.for %arg11 = %c0_i32_102 to %110 step %c1_i32  : i32 {
      %c48_i32 = arith.constant 48 : i32
      %111 = arith.muli %arg11, %c48_i32 : i32
      %112 = tpu.assume_multiple %111, 16 : i32
      %113 = arith.index_cast %112 : i32 to index
      %c0_104 = arith.constant 0 : index
      %114 = vector.load %arg10[%113, %c0_104] : memref<288x128xf32, #tpu.memory_space<vmem>>, vector<48x128xf32>
      %115 = arith.negf %114 : vector<48x128xf32>
      %116 = math.exp %115 : vector<48x128xf32>
      %cst_105 = arith.constant 1.000000e+00 : f32
      %117 = vector.broadcast %cst_105 : f32 to vector<48x128xf32>
      %118 = arith.addf %117, %116 : vector<48x128xf32>
      %119 = arith.divf %117, %118 : vector<48x128xf32>
      %120 = vector.extract_strided_slice %119 {offsets = [0, 0], sizes = [48, 32], strides = [1, 1]} : vector<48x128xf32> to vector<48x32xf32>
      %121 = vector.extract_strided_slice %119 {offsets = [0, 32], sizes = [48, 32], strides = [1, 1]} : vector<48x128xf32> to vector<48x32xf32>
      %122 = vector.extract_strided_slice %119 {offsets = [0, 96], sizes = [48, 32], strides = [1, 1]} : vector<48x128xf32> to vector<48x32xf32>
      %123 = vector.extract_strided_slice %114 {offsets = [0, 64], sizes = [48, 32], strides = [1, 1]} : vector<48x128xf32> to vector<48x32xf32>
      %124 = math.tanh %123 : vector<48x32xf32>
      %125 = arith.index_cast %112 : i32 to index
      %c0_106 = arith.constant 0 : index
      %126 = vector.load %arg9[%125, %c0_106] : memref<288x32xf32, #tpu.memory_space<vmem>>, vector<48x32xf32>
      %127 = arith.mulf %121, %126 : vector<48x32xf32>
      %128 = arith.mulf %120, %124 : vector<48x32xf32>
      %129 = arith.addf %127, %128 : vector<48x32xf32>
      %130 = arith.index_cast %112 : i32 to index
      %c0_107 = arith.constant 0 : index
      %131 = vector.load %arg9[%130, %c0_107] : memref<288x32xf32, #tpu.memory_space<vmem>>, vector<48x32xf32>
      tpu.vector_store %arg9[%130, %c0_107], %129 {strides = array<i32>} : memref<288x32xf32, #tpu.memory_space<vmem>>, vector<48x32xf32>,
      %132 = math.tanh %129 : vector<48x32xf32>
      %133 = arith.mulf %122, %132 : vector<48x32xf32>
      %134 = arith.index_cast %112 : i32 to index
      %c0_108 = arith.constant 0 : index
      %135 = vector.load %arg6[%134, %c0_108] : memref<288x32xf32, #tpu.memory_space<vmem>>, vector<48x32xf32>
      %136 = arith.mulf %133, %135 : vector<48x32xf32>
      %137 = arith.truncf %136 : vector<48x32xf32> to vector<48x32xbf16>
      %c32_i32 = arith.constant 32 : i32
      %138 = arith.addi %c32_i32, %112 : i32
      %139 = tpu.assume_multiple %138, 16 : i32
      %140 = arith.index_cast %139 : i32 to index
      %c0_109 = arith.constant 0 : index
      %141 = vector.load %arg8[%140, %c0_109] : memref<352x32xbf16, #tpu.memory_space<vmem>>, vector<48x32xbf16>
      tpu.vector_store %arg8[%140, %c0_109], %137 {strides = array<i32>} : memref<352x32xbf16, #tpu.memory_space<vmem>>, vector<48x32xbf16>,
      %142 = arith.extui %109 : i1 to i32
      %c0_i32_110 = arith.constant 0 : i32
      %143 = arith.cmpi ne, %142, %c0_i32_110 : i32
      scf.if %143 {
        %c0_111 = arith.constant 0 : index
        %144 = arith.index_cast %112 : i32 to index
        %c0_112 = arith.constant 0 : index
        %145 = vector.load %arg7[%c0_111, %144, %c0_112] : memref<1x288x32xf32, #tpu.memory_space<vmem>>, vector<1x48x32xf32>
        %146 = vector.shape_cast %145 : vector<1x48x32xf32> to vector<48x32xf32>
        %147 = vector.shape_cast %136 : vector<48x32xf32> to vector<1x48x32xf32>
        tpu.vector_store %arg7[%c0_111, %144, %c0_112], %147 {strides = array<i32>} : memref<1x288x32xf32, #tpu.memory_space<vmem>>, vector<1x48x32xf32>,
      } else {
      }
    }
    %c6_i32_103 = arith.constant 6 : i32
    return
  }
  func.func @transform_0(%arg0: i32, %arg1: i32) -> (i32, i32, i32, i32) {
    %c0_i32 = arith.constant 0 : i32
    %c0_i32_0 = arith.constant 0 : i32
    %c0_i32_1 = arith.constant 0 : i32
    return %arg1, %arg0, %c0_i32, %c0_i32_0 : i32, i32, i32, i32
  }
  func.func @transform_1(%arg0: i32, %arg1: i32) -> (i32, i32) {
    %c0_i32 = arith.constant 0 : i32
    %c0_i32_0 = arith.constant 0 : i32
    %c0_i32_1 = arith.constant 0 : i32
    return %c0_i32, %c0_i32_0 : i32, i32
  }
  func.func @transform_2(%arg0: i32, %arg1: i32) -> (i32, i32, i32) {
    %c0_i32 = arith.constant 0 : i32
    %c0_i32_0 = arith.constant 0 : i32
    %c0_i32_1 = arith.constant 0 : i32
    %c0_i32_2 = arith.constant 0 : i32
    return %c0_i32, %c0_i32_0, %c0_i32_1 : i32, i32, i32
  }
  func.func @transform_3(%arg0: i32, %arg1: i32) -> (i32, i32) {
    %c0_i32 = arith.constant 0 : i32
    %c0_i32_0 = arith.constant 0 : i32
    %c0_i32_1 = arith.constant 0 : i32
    return %c0_i32, %c0_i32_0 : i32, i32
  }
  func.func @transform_4(%arg0: i32, %arg1: i32) -> (i32, i32) {
    %c0_i32 = arith.constant 0 : i32
    %c0_i32_0 = arith.constant 0 : i32
    %c0_i32_1 = arith.constant 0 : i32
    return %c0_i32, %c0_i32_0 : i32, i32
  }
  func.func @transform_5(%arg0: i32, %arg1: i32) -> (i32, i32, i32) {
    %c0_i32 = arith.constant 0 : i32
    %c0_i32_0 = arith.constant 0 : i32
    %c0_i32_1 = arith.constant 0 : i32
    return %arg0, %c0_i32, %c0_i32_0 : i32, i32, i32
  }
}

</mosaic_0001>

<llo_original>
// kernel: convlstm_base_forward.1
$region0: #{convlstm_base_forward.1}
  #allocation0 [shape = 'u32[]', space=smem, size = 0x4, offset = 0x4, fixed_abs, tag = 'smem constant byte address 0x4 - core index']
  #allocation1 [shape = 'u32[72,128]{1,0:T(1,128)}', space=vmem, size = 0x9000, scoped, tag = 'internal scratch']
  #allocation2 [shape = 'bf16[352,32]{1,0:T(8,128)(2,1)}', space=vmem, size = 0x16000, scoped, tag = 'scratch operand']
  #allocation3 [shape = 'f32[288,32]{1,0:T(8,128)}', space=vmem, size = 0x24000, scoped, tag = 'scratch operand']
  #allocation4 [shape = 'f32[288,128]{1,0:T(8,128)}', space=vmem, size = 0x24000, scoped, tag = 'scratch operand']
  %s0 = inlined_call_operand.vmem [shape: bf16[4,2,288,288], index: 0, kind: input, shape index: {}]
  %s1 = inlined_call_operand.vmem [shape: bf16[288,128], index: 1, kind: input, shape index: {}]
  %s2 = inlined_call_operand.vmem [shape: bf16[9,32,128], index: 2, kind: input, shape index: {}]
  %s3 = inlined_call_operand.vmem [shape: f32[1,128], index: 3, kind: input, shape index: {}]
  %s4 = inlined_call_operand.vmem [shape: f32[288,32], index: 4, kind: input, shape index: {}]
  %s5 = inlined_call_operand.vmem [shape: f32[2,288,32], index: 5, kind: output, shape index: {}]
  %s6 = sld [smem:[#allocation0]]
  $region68: #{convlstm_base_forward.1} parent=0
    _
  %s8 = ssub.s32 1, %s6
  %s9 = scalar_select 0, %s8, %s6
  loop: start=0, step=1, limit=10
  $region2: #{convlstm_base_forward.1} parent=0 // loop_pre_header
    _
  $region3: #{convlstm_base_forward.1} parent=0 // loop_header
    %s11 = sphi 0, %s15
    %p12 = scmp.ge.s32.totalorder %s11, 10
    %s18 = sphi 0, %s30
    %s19 = sphi 0, %s26
    %s20 = sphi 0, %s18
    %s21 = sphi 0, %s19
    %s22 = sphi 0, %s20
    %s23 = sphi 0, %s21
    %s35 = sphi 0, %s37
    %s38 = sphi 0, %s35
    %s39 = sphi 0, %s38
    %s55 = sphi 0, %s39
    %s59 = sphi 0, %s59
    %s61 = sphi 0, %s59
    %s62 = sphi 0, %s61
    %s76 = sphi 0, %s62
    %s80 = sphi 0, %s80
    %s82 = sphi 0, %s80
    %s83 = sphi 0, %s82
    %s97 = sphi 0, %s83
    %s101 = sphi 0, %s101
    %s103 = sphi 0, %s101
    %s104 = sphi 0, %s103
    %s118 = sphi 0, %s104
    %s122 = sphi 0, %s122
    %s124 = sphi 0, %s122
    %s125 = sphi 0, %s124
    %s139 = sphi 0, %s125
    %s145 = sphi 0, %s147
    %s148 = sphi 0, %s145
    %s149 = sphi 0, %s148
    %s165 = sphi 0, %s149
  $region4: #{convlstm_base_forward.1} parent=0 // loop_header_branch
    %14 = sbr.rel (%p12) target = $region8
  $region5: #{convlstm_base_forward.1} parent=0 // loop_body
    %s16 = ssub.s32 %s11, 1
    %s17 = ssub.s32 %s11, 2
    %s24 = sadd.s32 1, %s19
    %p25 = scmp.ge.s32.totalorder %s24, 4
    %s26 = scalar_select %p25, 0, %s24
    %s27 = sadd.s32 1, %s18
    %s28 = scalar_select %p25, %s27, %s18
    %p29 = scmp.ge.s32.totalorder %s28, 2
    %s30 = scalar_select %p29, 0, %s28
    %s31 = ssub.s32 %s19, %s26
    %s32 = ssub.s32 %s18, %s30
    %s33 = sor.u32 %s31, %s32
    %p34 = scmp.eq.s32.totalorder %s33, 0
    %s36 = sadd.s32 %s35, 1
    %s37 = scalar_select %p34, %s35, %s36
    %p40 = pneg %p34
    %p41 = scmp.eq.s32.totalorder %s11, 7
    %p42 = por %p40, %p41
    %p43 = scmp.ne.s32.totalorder %s35, %s38
    %p44 = scmp.eq.s32.totalorder %s11, 0
    %p45 = por %p43, %p44
    %p46 = scmp.ne.s32.totalorder %s35, %s38
    %p47 = scmp.eq.s32.totalorder %s16, 7
    %p48 = por %p46, %p47
    %p49 = scmp.ne.s32.totalorder %s38, %s39
    %p50 = scmp.eq.s32.totalorder %s16, 0
    %p51 = por %p49, %p50
    %p52 = scmp.ne.s32.totalorder %s38, %s39
    %p53 = scmp.eq.s32.totalorder %s17, 7
    %p54 = por %p52, %p53
    %p56 = scmp.ne.s32.totalorder %s39, %s55
    %p57 = scmp.eq.s32.totalorder %s17, 0
    %p58 = por %p56, %p57
    %s60 = sadd.s32 %s59, 1
    %p63 = scmp.eq.s32.totalorder %s11, 7
    %p64 = scmp.ne.s32.totalorder %s59, %s61
    %p65 = scmp.eq.s32.totalorder %s11, 0
    %p66 = por %p64, %p65
    %p67 = scmp.ne.s32.totalorder %s59, %s61
    %p68 = scmp.eq.s32.totalorder %s16, 7
    %p69 = por %p67, %p68
    %p70 = scmp.ne.s32.totalorder %s61, %s62
    %p71 = scmp.eq.s32.totalorder %s16, 0
    %p72 = por %p70, %p71
    %p73 = scmp.ne.s32.totalorder %s61, %s62
    %p74 = scmp.eq.s32.totalorder %s17, 7
    %p75 = por %p73, %p74
    %p77 = scmp.ne.s32.totalorder %s62, %s76
    %p78 = scmp.eq.s32.totalorder %s17, 0
    %p79 = por %p77, %p78
    %s81 = sadd.s32 %s80, 1
    %p84 = scmp.eq.s32.totalorder %s11, 7
    %p85 = scmp.ne.s32.totalorder %s80, %s82
    %p86 = scmp.eq.s32.totalorder %s11, 0
    %p87 = por %p85, %p86
    %p88 = scmp.ne.s32.totalorder %s80, %s82
    %p89 = scmp.eq.s32.totalorder %s16, 7
    %p90 = por %p88, %p89
    %p91 = scmp.ne.s32.totalorder %s82, %s83
    %p92 = scmp.eq.s32.totalorder %s16, 0
    %p93 = por %p91, %p92
    %p94 = scmp.ne.s32.totalorder %s82, %s83
    %p95 = scmp.eq.s32.totalorder %s17, 7
    %p96 = por %p94, %p95
    %p98 = scmp.ne.s32.totalorder %s83, %s97
    %p99 = scmp.eq.s32.totalorder %s17, 0
    %p100 = por %p98, %p99
    %s102 = sadd.s32 %s101, 1
    %p105 = scmp.eq.s32.totalorder %s11, 7
    %p106 = scmp.ne.s32.totalorder %s101, %s103
    %p107 = scmp.eq.s32.totalorder %s11, 0
    %p108 = por %p106, %p107
    %p109 = scmp.ne.s32.totalorder %s101, %s103
    %p110 = scmp.eq.s32.totalorder %s16, 7
    %p111 = por %p109, %p110
    %p112 = scmp.ne.s32.totalorder %s103, %s104
    %p113 = scmp.eq.s32.totalorder %s16, 0
    %p114 = por %p112, %p113
    %p115 = scmp.ne.s32.totalorder %s103, %s104
    %p116 = scmp.eq.s32.totalorder %s17, 7
    %p117 = por %p115, %p116
    %p119 = scmp.ne.s32.totalorder %s104, %s118
    %p120 = scmp.eq.s32.totalorder %s17, 0
    %p121 = por %p119, %p120
    %s123 = sadd.s32 %s122, 1
    %p126 = scmp.eq.s32.totalorder %s11, 7
    %p127 = scmp.ne.s32.totalorder %s122, %s124
    %p128 = scmp.eq.s32.totalorder %s11, 0
    %p129 = por %p127, %p128
    %p130 = scmp.ne.s32.totalorder %s122, %s124
    %p131 = scmp.eq.s32.totalorder %s16, 7
    %p132 = por %p130, %p131
    %p133 = scmp.ne.s32.totalorder %s124, %s125
    %p134 = scmp.eq.s32.totalorder %s16, 0
    %p135 = por %p133, %p134
    %p136 = scmp.ne.s32.totalorder %s124, %s125
    %p137 = scmp.eq.s32.totalorder %s17, 7
    %p138 = por %p136, %p137
    %p140 = scmp.ne.s32.totalorder %s125, %s139
    %p141 = scmp.eq.s32.totalorder %s17, 0
    %p142 = por %p140, %p141
    %s143 = ssub.s32 %s18, %s30
    %p144 = scmp.eq.s32.totalorder %s143, 0
    %s146 = sadd.s32 %s145, 1
    %s147 = scalar_select %p144, %s145, %s146
    %p150 = pneg %p144
    %p151 = scmp.eq.s32.totalorder %s11, 7
    %p152 = por %p150, %p151
    %p153 = scmp.ne.s32.totalorder %s145, %s148
    %p154 = scmp.eq.s32.totalorder %s11, 0
    %p155 = por %p153, %p154
    %p156 = scmp.ne.s32.totalorder %s145, %s148
    %p157 = scmp.eq.s32.totalorder %s16, 7
    %p158 = por %p156, %p157
    %p159 = scmp.ne.s32.totalorder %s148, %s149
    %p160 = scmp.eq.s32.totalorder %s16, 0
    %p161 = por %p159, %p160
    %p162 = scmp.ne.s32.totalorder %s148, %s149
    %p163 = scmp.eq.s32.totalorder %s17, 7
    %p164 = por %p162, %p163
    %p166 = scmp.ne.s32.totalorder %s149, %s165
    %p167 = scmp.eq.s32.totalorder %s17, 0
    %p168 = por %p166, %p167
    %p169 = scmp.le.s32.totalorder 1, %s11
    %p170 = scmp.lt.s32.totalorder %s11, 9
    %p171 = pnand %p169, %p170
    %p172 = pneg %p171
    // Predicated region
    $region9: #{convlstm_base_forward.1} parent=5 // pred_check
      _
    $region10: #{convlstm_base_forward.1} parent=5 // pred_check_branch
      %174 = sbr.rel (%p171) target = $region12
    $region11: #{convlstm_base_forward.1} parent=5 // pred_region
      %s175 = ssub.s32 %s11, 1
      // Predicated region
      $region13: #{convlstm_base_forward.1} parent=11 // pred_check
        %p176 = pneg %p72
      $region14: #{convlstm_base_forward.1} parent=11 // pred_check_branch
        %178 = sbr.rel (%p176) target = $region16
      $region15: #{convlstm_base_forward.1} parent=11 // pred_region
        _
      $region16: #{convlstm_base_forward.1} parent=11 // pred_fallthru
        _
      // Predicated region
      $region17: #{convlstm_base_forward.1} parent=11 // pred_check
        %p179 = pneg %p93
      $region18: #{convlstm_base_forward.1} parent=11 // pred_check_branch
        %181 = sbr.rel (%p179) target = $region20
      $region19: #{convlstm_base_forward.1} parent=11 // pred_region
        _
      $region20: #{convlstm_base_forward.1} parent=11 // pred_fallthru
        _
      // Predicated region
      $region21: #{convlstm_base_forward.1} parent=11 // pred_check
        %p182 = pneg %p114
      $region22: #{convlstm_base_forward.1} parent=11 // pred_check_branch
        %184 = sbr.rel (%p182) target = $region24
      $region23: #{convlstm_base_forward.1} parent=11 // pred_region
        _
      $region24: #{convlstm_base_forward.1} parent=11 // pred_fallthru
        _
      // Predicated region
      $region25: #{convlstm_base_forward.1} parent=11 // pred_check
        %p185 = pneg %p135
      $region26: #{convlstm_base_forward.1} parent=11 // pred_check_branch
        %187 = sbr.rel (%p185) target = $region28
      $region27: #{convlstm_base_forward.1} parent=11 // pred_region
        _
      $region28: #{convlstm_base_forward.1} parent=11 // pred_fallthru
        _
    $region12: #{convlstm_base_forward.1} parent=5 // pred_fallthru
      _
    %p188 = scmp.lt.s32.totalorder %s11, 8
    // Predicated region
    $region29: #{convlstm_base_forward.1} parent=5 // pred_check
      %p189 = pneg %p188
    $region30: #{convlstm_base_forward.1} parent=5 // pred_check_branch
      %191 = sbr.rel (%p189) target = $region32
    $region31: #{convlstm_base_forward.1} parent=5 // pred_region
      // Predicated region
      $region33: #{convlstm_base_forward.1} parent=31 // pred_check
        %p192 = pneg %p45
      $region34: #{convlstm_base_forward.1} parent=31 // pred_check_branch
        %194 = sbr.rel (%p192) target = $region36
      $region35: #{convlstm_base_forward.1} parent=31 // pred_region
        %p195 = scmp.lt.s32.totalorder %s19, 3
        %s196 = scalar_select %p195, %s19, 3
        %p197 = scmp.lt.s32.totalorder %s18, 1
        %s198 = scalar_select %p197, %s18, 1
        %s199 = smul.addr %s198, 108
        %s200 = smul.addr %s196, 216
        %s201 = sadd.s32 %s199, %s200
        %s202 = smul.addr %s201, 4
        %s203 = scalar_lea.vmem %s0, %s202
      $region36: #{convlstm_base_forward.1} parent=31 // pred_fallthru
        _
    $region32: #{convlstm_base_forward.1} parent=5 // pred_fallthru
      _
    %p204 = scmp.le.s32.totalorder 1, %s11
    %p205 = scmp.lt.s32.totalorder %s11, 9
    %p206 = pnand %p204, %p205
    %p207 = pneg %p206
    // Predicated region
    $region37: #{convlstm_base_forward.1} parent=5 // pred_check
      _
    $region38: #{convlstm_base_forward.1} parent=5 // pred_check_branch
      %209 = sbr.rel (%p206) target = $region40
    $region39: #{convlstm_base_forward.1} parent=5 // pred_region
      %s210 = ssub.s32 %s11, 1
      %p211 = scmp.lt.s32.totalorder %s21, 3
      %s212 = scalar_select %p211, %s21, 3
      %p213 = scmp.lt.s32.totalorder %s20, 1
      %s214 = scalar_select %p213, %s20, 1
      %s215 = smul.addr %s214, 108
      %s216 = smul.addr %s212, 216
      %s217 = sadd.s32 %s215, %s216
      %s218 = smul.addr %s217, 4
      %s219 = scalar_lea.vmem %s0, %s218
      %p220 = pneg %p51
      %p221 = pneg %p48
      %p222 = pneg %p72
      %p223 = pneg %p69
      %p224 = pneg %p93
      %p225 = pneg %p90
      %p226 = pneg %p114
      %p227 = pneg %p111
      %p228 = pneg %p135
      %p229 = pneg %p132
      %p230 = pneg %p161
      %p231 = pneg %p158
      %p232 = scmp.lt.s32.totalorder %s20, 1
      %s233 = scalar_select %p232, %s20, 1
      %s234 = smul.addr %s233, 36
      %s235 = smul.addr %s234, 8
      %s236 = scalar_lea.vmem %s5, %s235
      %p237 = scmp.lt.s32.totalorder %s21, 3
      %s238 = scalar_select %p237, %s21, 3
      %p239 = scmp.lt.s32.totalorder %s20, 1
      %s240 = scalar_select %p239, %s20, 1
      %s241 = smul.addr %s240, 108
      %s242 = smul.addr %s238, 216
      %s243 = sadd.s32 %s241, %s242
      %s244 = smul.addr %s243, 4
      %s245 = scalar_lea.vmem %s0, %s244
      %p246 = scmp.lt.s32.totalorder %s20, 1
      %s247 = scalar_select %p246, %s20, 1
      %s248 = smul.addr %s247, 36
      %s249 = smul.addr %s248, 8
      %s250 = scalar_lea.vmem %s5, %s249
      %p252 = scmp.eq.s32.totalorder %s21, 0
      // Predicated region
      $region41: #{convlstm_base_forward.1} parent=39 // pred_check
        %p253 = pneg %p252
      $region42: #{convlstm_base_forward.1} parent=39 // pred_check_branch
        %255 = sbr.rel (%p253) target = $region44
      $region43: #{convlstm_base_forward.1} parent=39 // pred_region
        %vm256 = vcmask 257024
        %257 = vst.msk [vmem:[#allocation2] sm:$0xf] %vm256, 0
        %258 = vst.msk [vmem:[#allocation2 + $0x4] sm:$0xf] %vm256, 0
        %259 = vst.msk [vmem:[#allocation2 + $0x8] sm:$0xf] %vm256, 0
        %260 = vst.msk [vmem:[#allocation2 + $0xc] sm:$0xf] %vm256, 0
        %261 = vst.msk [vmem:[#allocation2 + $0x10] sm:$0xf] %vm256, 0
        %262 = vst.msk [vmem:[#allocation2 + $0x14] sm:$0xf] %vm256, 0
        %263 = vst.msk [vmem:[#allocation2 + $0x18] sm:$0xf] %vm256, 0
        %264 = vst.msk [vmem:[#allocation2 + $0x1c] sm:$0xf] %vm256, 0
        %265 = vst.msk [vmem:[#allocation2 + $0x20] sm:$0xf] %vm256, 0
        %266 = vst.msk [vmem:[#allocation2 + $0x24] sm:$0xf] %vm256, 0
        %267 = vst.msk [vmem:[#allocation2 + $0x28] sm:$0xf] %vm256, 0
        %268 = vst.msk [vmem:[#allocation2 + $0x2c] sm:$0xf] %vm256, 0
        %269 = vst.msk [vmem:[#allocation2 + $0x30] sm:$0xf] %vm256, 0
        %270 = vst.msk [vmem:[#allocation2 + $0x34] sm:$0xf] %vm256, 0
        %271 = vst.msk [vmem:[#allocation2 + $0x38] sm:$0xf] %vm256, 0
        %272 = vst.msk [vmem:[#allocation2 + $0x3c] sm:$0xf] %vm256, 0
        %273 = vst.msk [vmem:[#allocation2 + $0x40] sm:$0xf] %vm256, 0
        %274 = vst.msk [vmem:[#allocation2 + $0x44] sm:$0xf] %vm256, 0
        %275 = vst.msk [vmem:[#allocation2 + $0x48] sm:$0xf] %vm256, 0
        %276 = vst.msk [vmem:[#allocation2 + $0x4c] sm:$0xf] %vm256, 0
        %277 = vst.msk [vmem:[#allocation2 + $0x50] sm:$0xf] %vm256, 0
        %278 = vst.msk [vmem:[#allocation2 + $0x54] sm:$0xf] %vm256, 0
        %279 = vst.msk [vmem:[#allocation2 + $0x58] sm:$0xf] %vm256, 0
        %280 = vst.msk [vmem:[#allocation2 + $0x5c] sm:$0xf] %vm256, 0
        %281 = vst.msk [vmem:[#allocation2 + $0x60] sm:$0xf] %vm256, 0
        %282 = vst.msk [vmem:[#allocation2 + $0x64] sm:$0xf] %vm256, 0
        %283 = vst.msk [vmem:[#allocation2 + $0x68] sm:$0xf] %vm256, 0
        %284 = vst.msk [vmem:[#allocation2 + $0x6c] sm:$0xf] %vm256, 0
        %285 = vst.msk [vmem:[#allocation2 + $0x70] sm:$0xf] %vm256, 0
        %286 = vst.msk [vmem:[#allocation2 + $0x74] sm:$0xf] %vm256, 0
        %287 = vst.msk [vmem:[#allocation2 + $0x78] sm:$0xf] %vm256, 0
        %288 = vst.msk [vmem:[#allocation2 + $0x7c] sm:$0xf] %vm256, 0
        %289 = vst.msk [vmem:[#allocation2 + $0x80] sm:$0xf] %vm256, 0
        %290 = vst.msk [vmem:[#allocation2 + $0x84] sm:$0xf] %vm256, 0
        %291 = vst.msk [vmem:[#allocation2 + $0x88] sm:$0xf] %vm256, 0
        %292 = vst.msk [vmem:[#allocation2 + $0x8c] sm:$0xf] %vm256, 0
        %293 = vst.msk [vmem:[#allocation2 + $0x90] sm:$0xf] %vm256, 0
        %294 = vst.msk [vmem:[#allocation2 + $0x94] sm:$0xf] %vm256, 0
        %295 = vst.msk [vmem:[#allocation2 + $0x98] sm:$0xf] %vm256, 0
        %296 = vst.msk [vmem:[#allocation2 + $0x9c] sm:$0xf] %vm256, 0
        %297 = vst.msk [vmem:[#allocation2 + $0xa0] sm:$0xf] %vm256, 0
        %298 = vst.msk [vmem:[#allocation2 + $0xa4] sm:$0xf] %vm256, 0
        %299 = vst.msk [vmem:[#allocation2 + $0xa8] sm:$0xf] %vm256, 0
        %300 = vst.msk [vmem:[#allocation2 + $0xac] sm:$0xf] %vm256, 0
        %vm301 = vcmask 261120
        %302 = vst.msk [vmem:[#allocation3] sm:$0xff] %vm301, 0.0
        %303 = vst.msk [vmem:[#allocation3 + $0x8] sm:$0xff] %vm301, 0.0
        %304 = vst.msk [vmem:[#allocation3 + $0x10] sm:$0xff] %vm301, 0.0
        %305 = vst.msk [vmem:[#allocation3 + $0x18] sm:$0xff] %vm301, 0.0
        %306 = vst.msk [vmem:[#allocation3 + $0x20] sm:$0xff] %vm301, 0.0
        %307 = vst.msk [vmem:[#allocation3 + $0x28] sm:$0xff] %vm301, 0.0
        %308 = vst.msk [vmem:[#allocation3 + $0x30] sm:$0xff] %vm301, 0.0
        %309 = vst.msk [vmem:[#allocation3 + $0x38] sm:$0xff] %vm301, 0.0
        %310 = vst.msk [vmem:[#allocation3 + $0x40] sm:$0xff] %vm301, 0.0
        %311 = vst.msk [vmem:[#allocation3 + $0x48] sm:$0xff] %vm301, 0.0
        %312 = vst.msk [vmem:[#allocation3 + $0x50] sm:$0xff] %vm301, 0.0
        %313 = vst.msk [vmem:[#allocation3 + $0x58] sm:$0xff] %vm301, 0.0
        %314 = vst.msk [vmem:[#allocation3 + $0x60] sm:$0xff] %vm301, 0.0
        %315 = vst.msk [vmem:[#allocation3 + $0x68] sm:$0xff] %vm301, 0.0
        %316 = vst.msk [vmem:[#allocation3 + $0x70] sm:$0xff] %vm301, 0.0
        %317 = vst.msk [vmem:[#allocation3 + $0x78] sm:$0xff] %vm301, 0.0
        %318 = vst.msk [vmem:[#allocation3 + $0x80] sm:$0xff] %vm301, 0.0
        %319 = vst.msk [vmem:[#allocation3 + $0x88] sm:$0xff] %vm301, 0.0
        %320 = vst.msk [vmem:[#allocation3 + $0x90] sm:$0xff] %vm301, 0.0
        %321 = vst.msk [vmem:[#allocation3 + $0x98] sm:$0xff] %vm301, 0.0
        %322 = vst.msk [vmem:[#allocation3 + $0xa0] sm:$0xff] %vm301, 0.0
        %323 = vst.msk [vmem:[#allocation3 + $0xa8] sm:$0xff] %vm301, 0.0
        %324 = vst.msk [vmem:[#allocation3 + $0xb0] sm:$0xff] %vm301, 0.0
        %325 = vst.msk [vmem:[#allocation3 + $0xb8] sm:$0xff] %vm301, 0.0
        %326 = vst.msk [vmem:[#allocation3 + $0xc0] sm:$0xff] %vm301, 0.0
        %327 = vst.msk [vmem:[#allocation3 + $0xc8] sm:$0xff] %vm301, 0.0
        %328 = vst.msk [vmem:[#allocation3 + $0xd0] sm:$0xff] %vm301, 0.0
        %329 = vst.msk [vmem:[#allocation3 + $0xd8] sm:$0xff] %vm301, 0.0
        %330 = vst.msk [vmem:[#allocation3 + $0xe0] sm:$0xff] %vm301, 0.0
        %331 = vst.msk [vmem:[#allocation3 + $0xe8] sm:$0xff] %vm301, 0.0
        %332 = vst.msk [vmem:[#allocation3 + $0xf0] sm:$0xff] %vm301, 0.0
        %333 = vst.msk [vmem:[#allocation3 + $0xf8] sm:$0xff] %vm301, 0.0
        %334 = vst.msk [vmem:[#allocation3 + $0x100] sm:$0xff] %vm301, 0.0
        %335 = vst.msk [vmem:[#allocation3 + $0x108] sm:$0xff] %vm301, 0.0
        %336 = vst.msk [vmem:[#allocation3 + $0x110] sm:$0xff] %vm301, 0.0
        %337 = vst.msk [vmem:[#allocation3 + $0x118] sm:$0xff] %vm301, 0.0
      $region44: #{convlstm_base_forward.1} parent=39 // pred_fallthru
        _
      %v338 = vld [vmem:[%s245] sm:$0xff]
      %v339 = vld [vmem:[%s245 + $0x8] sm:$0xf]
      %v340 = vld [vmem:[%s245 + $0xc] sm:$0xff]
      %v341 = vld [vmem:[%s245 + $0x14] sm:$0xf]
      %v342 = vld [vmem:[%s245 + $0x18] sm:$0xff]
      %v343 = vld [vmem:[%s245 + $0x20] sm:$0xf]
      %v344 = vld [vmem:[%s245 + $0x24] sm:$0xff]
      %v345 = vld [vmem:[%s245 + $0x2c] sm:$0xf]
      %v346 = vld [vmem:[%s245 + $0x30] sm:$0xff]
      %v347 = vld [vmem:[%s245 + $0x38] sm:$0xf]
      %v348 = vld [vmem:[%s245 + $0x3c] sm:$0xff]
      %v349 = vld [vmem:[%s245 + $0x44] sm:$0xf]
      %v350 = vld [vmem:[%s245 + $0x48] sm:$0xff]
      %v351 = vld [vmem:[%s245 + $0x50] sm:$0xf]
      %v352 = vld [vmem:[%s245 + $0x54] sm:$0xff]
      %v353 = vld [vmem:[%s245 + $0x5c] sm:$0xf]
      %v354 = vld [vmem:[%s245 + $0x60] sm:$0xff]
      %v355 = vld [vmem:[%s245 + $0x68] sm:$0xf]
      %v356 = vld [vmem:[%s245 + $0x6c] sm:$0xff]
      %v357 = vld [vmem:[%s245 + $0x74] sm:$0xf]
      %v358 = vld [vmem:[%s245 + $0x78] sm:$0xff]
      %v359 = vld [vmem:[%s245 + $0x80] sm:$0xf]
      %v360 = vld [vmem:[%s245 + $0x84] sm:$0xff]
      %v361 = vld [vmem:[%s245 + $0x8c] sm:$0xf]
      %v362 = vld [vmem:[%s245 + $0x90] sm:$0xff]
      %v363 = vld [vmem:[%s245 + $0x98] sm:$0xf]
      %v364 = vld [vmem:[%s245 + $0x9c] sm:$0xff]
      %v365 = vld [vmem:[%s245 + $0xa4] sm:$0xf]
      %v366 = vld [vmem:[%s245 + $0xa8] sm:$0xff]
      %v367 = vld [vmem:[%s245 + $0xb0] sm:$0xf]
      %v368 = vld [vmem:[%s245 + $0xb4] sm:$0xff]
      %v369 = vld [vmem:[%s245 + $0xbc] sm:$0xf]
      %v370 = vld [vmem:[%s245 + $0xc0] sm:$0xff]
      %v371 = vld [vmem:[%s245 + $0xc8] sm:$0xf]
      %v372 = vld [vmem:[%s245 + $0xcc] sm:$0xff]
      %v373 = vld [vmem:[%s245 + $0xd4] sm:$0xf]
      %v374 = vld [vmem:[%s1] sm:$0xf]
      %v375 = vld [vmem:[%s1 + $0x4] sm:$0xf]
      %v376 = vld [vmem:[%s1 + $0x8] sm:$0xf]
      %v377 = vld [vmem:[%s1 + $0xc] sm:$0xf]
      %v378 = vld [vmem:[%s1 + $0x10] sm:$0xf]
      %v379 = vld [vmem:[%s1 + $0x14] sm:$0xf]
      %v380 = vld [vmem:[%s1 + $0x18] sm:$0xf]
      %v381 = vld [vmem:[%s1 + $0x1c] sm:$0xf]
      %v382 = vld [vmem:[%s1 + $0x20] sm:$0xf]
      %v383 = vld [vmem:[%s1 + $0x24] sm:$0xf]
      %v384 = vld [vmem:[%s1 + $0x28] sm:$0xf]
      %v385 = vld [vmem:[%s1 + $0x2c] sm:$0xf]
      %v386 = vld [vmem:[%s1 + $0x30] sm:$0xf]
      %v387 = vld [vmem:[%s1 + $0x34] sm:$0xf]
      %v388 = vld [vmem:[%s1 + $0x38] sm:$0xf]
      %v389 = vld [vmem:[%s1 + $0x3c] sm:$0xf]
      %v390 = vld [vmem:[%s1 + $0x40] sm:$0xf]
      %v391 = vld [vmem:[%s1 + $0x44] sm:$0xf]
      %v392 = vld [vmem:[%s1 + $0x48] sm:$0xf]
      %v393 = vld [vmem:[%s1 + $0x4c] sm:$0xf]
      %v394 = vld [vmem:[%s1 + $0x50] sm:$0xf]
      %v395 = vld [vmem:[%s1 + $0x54] sm:$0xf]
      %v396 = vld [vmem:[%s1 + $0x58] sm:$0xf]
      %v397 = vld [vmem:[%s1 + $0x5c] sm:$0xf]
      %v398 = vld [vmem:[%s1 + $0x60] sm:$0xf]
      %v399 = vld [vmem:[%s1 + $0x64] sm:$0xf]
      %v400 = vld [vmem:[%s1 + $0x68] sm:$0xf]
      %v401 = vld [vmem:[%s1 + $0x6c] sm:$0xf]
      %v402 = vld [vmem:[%s1 + $0x70] sm:$0xf]
      %v403 = vld [vmem:[%s1 + $0x74] sm:$0xf]
      %v404 = vld [vmem:[%s1 + $0x78] sm:$0xf]
      %v405 = vld [vmem:[%s1 + $0x7c] sm:$0xf]
      %v406 = vld [vmem:[%s1 + $0x80] sm:$0xf]
      %v407 = vld [vmem:[%s1 + $0x84] sm:$0xf]
      %v408 = vld [vmem:[%s1 + $0x88] sm:$0xf]
      %v409 = vld [vmem:[%s1 + $0x8c] sm:$0xf]
      %v410 = vld [vmem:[%s3] sm:$0x1]
      %v412 = vperm.slane %v410, 0
      %v450 = vunpack.c.l.b16 %v338
      %v451 = vunpack.c.h.b16 %v338
      %v452 = vunpack.c.l.b16 %v339
      %v453 = vunpack.c.l.b16 %v340
      %v454 = vunpack.c.h.b16 %v340
      %v455 = vunpack.c.l.b16 %v341
      %v456 = vunpack.c.l.b16 %v342
      %v457 = vunpack.c.h.b16 %v342
      %v458 = vunpack.c.l.b16 %v343
      %v459 = vunpack.c.l.b16 %v344
      %v460 = vunpack.c.h.b16 %v344
      %v461 = vunpack.c.l.b16 %v345
      %v462 = vunpack.c.l.b16 %v346
      %v463 = vunpack.c.h.b16 %v346
      %v464 = vunpack.c.l.b16 %v347
      %v465 = vunpack.c.l.b16 %v348
      %v466 = vunpack.c.h.b16 %v348
      %v467 = vunpack.c.l.b16 %v349
      %v468 = vunpack.c.l.b16 %v350
      %v469 = vunpack.c.h.b16 %v350
      %v470 = vunpack.c.l.b16 %v351
      %v471 = vunpack.c.l.b16 %v352
      %v472 = vunpack.c.h.b16 %v352
      %v473 = vunpack.c.l.b16 %v353
      %v474 = vunpack.c.l.b16 %v354
      %v475 = vunpack.c.h.b16 %v354
      %v476 = vunpack.c.l.b16 %v355
      %v477 = vunpack.c.l.b16 %v356
      %v478 = vunpack.c.h.b16 %v356
      %v479 = vunpack.c.l.b16 %v357
      %v480 = vunpack.c.l.b16 %v358
      %v481 = vunpack.c.h.b16 %v358
      %v482 = vunpack.c.l.b16 %v359
      %v483 = vunpack.c.l.b16 %v360
      %v484 = vunpack.c.h.b16 %v360
      %v485 = vunpack.c.l.b16 %v361
      %v486 = vunpack.c.l.b16 %v362
      %v487 = vunpack.c.h.b16 %v362
      %v488 = vunpack.c.l.b16 %v363
      %v489 = vunpack.c.l.b16 %v364
      %v490 = vunpack.c.h.b16 %v364
      %v491 = vunpack.c.l.b16 %v365
      %v492 = vunpack.c.l.b16 %v366
      %v493 = vunpack.c.h.b16 %v366
      %v494 = vunpack.c.l.b16 %v367
      %v495 = vunpack.c.l.b16 %v368
      %v496 = vunpack.c.h.b16 %v368
      %v497 = vunpack.c.l.b16 %v369
      %v498 = vunpack.c.l.b16 %v370
      %v499 = vunpack.c.h.b16 %v370
      %v500 = vunpack.c.l.b16 %v371
      %v501 = vunpack.c.l.b16 %v372
      %v502 = vunpack.c.h.b16 %v372
      %v503 = vunpack.c.l.b16 %v373
      %v504 = vpack.c.b16 %v453, %v450
      %v505 = vpack.c.b16 %v454, %v451
      %v506 = vpack.c.b16 %v455, %v452
      %v507 = vpack.c.b16 %v459, %v456
      %v508 = vpack.c.b16 %v460, %v457
      %v509 = vpack.c.b16 %v461, %v458
      %v510 = vpack.c.b16 %v465, %v462
      %v511 = vpack.c.b16 %v466, %v463
      %v512 = vpack.c.b16 %v467, %v464
      %v513 = vpack.c.b16 %v471, %v468
      %v514 = vpack.c.b16 %v472, %v469
      %v515 = vpack.c.b16 %v473, %v470
      %v516 = vpack.c.b16 %v477, %v474
      %v517 = vpack.c.b16 %v478, %v475
      %v518 = vpack.c.b16 %v479, %v476
      %v519 = vpack.c.b16 %v483, %v480
      %v520 = vpack.c.b16 %v484, %v481
      %v521 = vpack.c.b16 %v485, %v482
      %v522 = vpack.c.b16 %v489, %v486
      %v523 = vpack.c.b16 %v490, %v487
      %v524 = vpack.c.b16 %v491, %v488
      %v525 = vpack.c.b16 %v495, %v492
      %v526 = vpack.c.b16 %v496, %v493
      %v527 = vpack.c.b16 %v497, %v494
      %v528 = vpack.c.b16 %v501, %v498
      %v529 = vpack.c.b16 %v502, %v499
      %v530 = vpack.c.b16 %v503, %v500
      %v585 = vunpack.c.l.b16 %v374
      %v586 = vunpack.c.l.b16 %v375
      %v587 = vunpack.c.l.b16 %v376
      %v588 = vunpack.c.l.b16 %v377
      %v589 = vunpack.c.l.b16 %v378
      %v590 = vunpack.c.l.b16 %v379
      %v591 = vunpack.c.l.b16 %v380
      %v592 = vunpack.c.l.b16 %v381
      %v593 = vunpack.c.l.b16 %v382
      %v594 = vunpack.c.l.b16 %v383
      %v595 = vunpack.c.l.b16 %v384
      %v596 = vunpack.c.l.b16 %v385
      %v597 = vunpack.c.l.b16 %v386
      %v598 = vunpack.c.l.b16 %v387
      %v599 = vunpack.c.l.b16 %v388
      %v600 = vunpack.c.l.b16 %v389
      %v601 = vunpack.c.l.b16 %v390
      %v602 = vunpack.c.l.b16 %v391
      %v603 = vunpack.c.l.b16 %v392
      %v604 = vunpack.c.l.b16 %v393
      %v605 = vunpack.c.l.b16 %v394
      %v606 = vunpack.c.l.b16 %v395
      %v607 = vunpack.c.l.b16 %v396
      %v608 = vunpack.c.l.b16 %v397
      %v609 = vunpack.c.l.b16 %v398
      %v610 = vunpack.c.l.b16 %v399
      %v611 = vunpack.c.l.b16 %v400
      %v612 = vunpack.c.l.b16 %v401
      %v613 = vunpack.c.l.b16 %v402
      %v614 = vunpack.c.l.b16 %v403
      %v615 = vunpack.c.l.b16 %v404
      %v616 = vunpack.c.l.b16 %v405
      %v617 = vunpack.c.l.b16 %v406
      %v618 = vunpack.c.l.b16 %v407
      %v619 = vunpack.c.l.b16 %v408
      %v620 = vunpack.c.l.b16 %v409
      %v621 = vpack.c.b16 %v586, %v585
      %v622 = vpack.c.b16 %v588, %v587
      %v623 = vpack.c.b16 %v590, %v589
      %v624 = vpack.c.b16 %v592, %v591
      %v625 = vpack.c.b16 %v594, %v593
      %v626 = vpack.c.b16 %v596, %v595
      %v627 = vpack.c.b16 %v598, %v597
      %v628 = vpack.c.b16 %v600, %v599
      %v629 = vpack.c.b16 %v602, %v601
      %v630 = vpack.c.b16 %v604, %v603
      %v631 = vpack.c.b16 %v606, %v605
      %v632 = vpack.c.b16 %v608, %v607
      %v633 = vpack.c.b16 %v610, %v609
      %v634 = vpack.c.b16 %v612, %v611
      %v635 = vpack.c.b16 %v614, %v613
      %v636 = vpack.c.b16 %v616, %v615
      %v637 = vpack.c.b16 %v618, %v617
      %v638 = vpack.c.b16 %v620, %v619
      %vm657 = vcmask 261120
      %v659 = vsel %vm657, %v506, 0
      %v662 = vsel %vm657, %v509, 0
      %v665 = vsel %vm657, %v512, 0
      %v668 = vsel %vm657, %v515, 0
      %v671 = vsel %vm657, %v518, 0
      %v674 = vsel %vm657, %v521, 0
      %v677 = vsel %vm657, %v524, 0
      %v680 = vsel %vm657, %v527, 0
      %v683 = vsel %vm657, %v530, 0
      %685 = vmatpush.bf16.msra.mxu0 %v628
      %686 = vmatpush.bf16.msra.mxu0 %v627
      %687 = vmatpush.bf16.msra.mxu0 %v626
      %688 = vmatpush.bf16.msra.mxu0 %v625
      %689 = vmatpush.bf16.msra.mxu0 %v624
      %690 = vmatpush.bf16.msra.mxu0 %v623
      %691 = vmatpush.bf16.msra.mxu0 %v622
      %692 = vmatpush.bf16.msra.mxu0 %v621
      %693 = vmatmul.bf16.gmra.mxu0 %v504
      %v694 = vpop.f32.mrf.mxu0
      %v695 = vadd.f32 %v412, %v694
      %v696 = vpop.f32.mrf.mxu0
      %v697 = vadd.f32 %v412, %v696
      %698 = vmatmul.bf16.gmra.mxu0 %v507
      %v699 = vpop.f32.mrf.mxu0
      %v700 = vadd.f32 %v412, %v699
      %v701 = vpop.f32.mrf.mxu0
      %v702 = vadd.f32 %v412, %v701
      %703 = vmatmul.bf16.gmra.mxu0 %v510
      %v704 = vpop.f32.mrf.mxu0
      %v705 = vadd.f32 %v412, %v704
      %v706 = vpop.f32.mrf.mxu0
      %v707 = vadd.f32 %v412, %v706
      %708 = vmatmul.bf16.gmra.mxu0 %v513
      %v709 = vpop.f32.mrf.mxu0
      %v710 = vadd.f32 %v412, %v709
      %v711 = vpop.f32.mrf.mxu0
      %v712 = vadd.f32 %v412, %v711
      %713 = vmatmul.bf16.gmra.mxu0 %v516
      %v714 = vpop.f32.mrf.mxu0
      %v715 = vadd.f32 %v412, %v714
      %v716 = vpop.f32.mrf.mxu0
      %v717 = vadd.f32 %v412, %v716
      %718 = vmatmul.bf16.gmra.mxu0 %v519
      %v719 = vpop.f32.mrf.mxu0
      %v720 = vadd.f32 %v412, %v719
      %v721 = vpop.f32.mrf.mxu0
      %v722 = vadd.f32 %v412, %v721
      %723 = vmatmul.bf16.gmra.mxu0 %v522
      %v724 = vpop.f32.mrf.mxu0
      %v725 = vadd.f32 %v412, %v724
      %v726 = vpop.f32.mrf.mxu0
      %v727 = vadd.f32 %v412, %v726
      %728 = vmatmul.bf16.gmra.mxu0 %v525
      %v729 = vpop.f32.mrf.mxu0
      %v730 = vadd.f32 %v412, %v729
      %v731 = vpop.f32.mrf.mxu0
      %v732 = vadd.f32 %v412, %v731
      %733 = vmatmul.bf16.gmra.mxu0 %v528
      %v734 = vpop.f32.mrf.mxu0
      %v735 = vadd.f32 %v412, %v734
      %v736 = vpop.f32.mrf.mxu0
      %v737 = vadd.f32 %v412, %v736
      %738 = vdwg.mxu0
      %739 = vmatpush.bf16.msra.mxu0 %v636
      %740 = vmatpush.bf16.msra.mxu0 %v635
      %741 = vmatpush.bf16.msra.mxu0 %v634
      %742 = vmatpush.bf16.msra.mxu0 %v633
      %743 = vmatpush.bf16.msra.mxu0 %v632
      %744 = vmatpush.bf16.msra.mxu0 %v631
      %745 = vmatpush.bf16.msra.mxu0 %v630
      %746 = vmatpush.bf16.msra.mxu0 %v629
      %747 = vmatmul.bf16.gmra.mxu0 %v505
      %v748 = vpop.f32.mrf.mxu0
      %v749 = vadd.f32 %v695, %v748
      %v750 = vpop.f32.mrf.mxu0
      %v751 = vadd.f32 %v697, %v750
      %752 = vmatmul.bf16.gmra.mxu0 %v508
      %v753 = vpop.f32.mrf.mxu0
      %v754 = vadd.f32 %v700, %v753
      %v755 = vpop.f32.mrf.mxu0
      %v756 = vadd.f32 %v702, %v755
      %757 = vmatmul.bf16.gmra.mxu0 %v511
      %v758 = vpop.f32.mrf.mxu0
      %v759 = vadd.f32 %v705, %v758
      %v760 = vpop.f32.mrf.mxu0
      %v761 = vadd.f32 %v707, %v760
      %762 = vmatmul.bf16.gmra.mxu0 %v514
      %v763 = vpop.f32.mrf.mxu0
      %v764 = vadd.f32 %v710, %v763
      %v765 = vpop.f32.mrf.mxu0
      %v766 = vadd.f32 %v712, %v765
      %767 = vmatmul.bf16.gmra.mxu0 %v517
      %v768 = vpop.f32.mrf.mxu0
      %v769 = vadd.f32 %v715, %v768
      %v770 = vpop.f32.mrf.mxu0
      %v771 = vadd.f32 %v717, %v770
      %772 = vmatmul.bf16.gmra.mxu0 %v520
      %v773 = vpop.f32.mrf.mxu0
      %v774 = vadd.f32 %v720, %v773
      %v775 = vpop.f32.mrf.mxu0
      %v776 = vadd.f32 %v722, %v775
      %777 = vmatmul.bf16.gmra.mxu0 %v523
      %v778 = vpop.f32.mrf.mxu0
      %v779 = vadd.f32 %v725, %v778
      %v780 = vpop.f32.mrf.mxu0
      %v781 = vadd.f32 %v727, %v780
      %782 = vmatmul.bf16.gmra.mxu0 %v526
      %v783 = vpop.f32.mrf.mxu0
      %v784 = vadd.f32 %v730, %v783
      %v785 = vpop.f32.mrf.mxu0
      %v786 = vadd.f32 %v732, %v785
      %787 = vmatmul.bf16.gmra.mxu0 %v529
      %v788 = vpop.f32.mrf.mxu0
      %v789 = vadd.f32 %v735, %v788
      %v790 = vpop.f32.mrf.mxu0
      %v791 = vadd.f32 %v737, %v790
      %792 = vdwg.mxu0
      %793 = vmatpush.bf16.msra.mxu0 0
      %794 = vmatpush.bf16.msra.mxu0 0
      %795 = vmatpush.bf16.msra.mxu0 0
      %796 = vmatpush.bf16.msra.mxu0 0
      %797 = vmatpush.bf16.msra.mxu0 0
      %798 = vmatpush.bf16.msra.mxu0 0
      %799 = vmatpush.bf16.msra.mxu0 %v638
      %800 = vmatpush.bf16.msra.mxu0 %v637
      %801 = vmatmul.bf16.gmra.mxu0 %v659
      %v802 = vpop.f32.mrf.mxu0
      %v803 = vadd.f32 %v749, %v802
      %v804 = vpop.f32.mrf.mxu0
      %v805 = vadd.f32 %v751, %v804
      %806 = vmatmul.bf16.gmra.mxu0 %v662
      %v807 = vpop.f32.mrf.mxu0
      %v808 = vadd.f32 %v754, %v807
      %v809 = vpop.f32.mrf.mxu0
      %v810 = vadd.f32 %v756, %v809
      %811 = vmatmul.bf16.gmra.mxu0 %v665
      %v812 = vpop.f32.mrf.mxu0
      %v813 = vadd.f32 %v759, %v812
      %v814 = vpop.f32.mrf.mxu0
      %v815 = vadd.f32 %v761, %v814
      %816 = vmatmul.bf16.gmra.mxu0 %v668
      %v817 = vpop.f32.mrf.mxu0
      %v818 = vadd.f32 %v764, %v817
      %v819 = vpop.f32.mrf.mxu0
      %v820 = vadd.f32 %v766, %v819
      %821 = vmatmul.bf16.gmra.mxu0 %v671
      %v822 = vpop.f32.mrf.mxu0
      %v823 = vadd.f32 %v769, %v822
      %v824 = vpop.f32.mrf.mxu0
      %v825 = vadd.f32 %v771, %v824
      %826 = vmatmul.bf16.gmra.mxu0 %v674
      %v827 = vpop.f32.mrf.mxu0
      %v828 = vadd.f32 %v774, %v827
      %v829 = vpop.f32.mrf.mxu0
      %v830 = vadd.f32 %v776, %v829
      %831 = vmatmul.bf16.gmra.mxu0 %v677
      %v832 = vpop.f32.mrf.mxu0
      %v833 = vadd.f32 %v779, %v832
      %v834 = vpop.f32.mrf.mxu0
      %v835 = vadd.f32 %v781, %v834
      %836 = vmatmul.bf16.gmra.mxu0 %v680
      %v837 = vpop.f32.mrf.mxu0
      %v838 = vadd.f32 %v784, %v837
      %v839 = vpop.f32.mrf.mxu0
      %v840 = vadd.f32 %v786, %v839
      %841 = vmatmul.bf16.gmra.mxu0 %v683
      %v842 = vpop.f32.mrf.mxu0
      %v843 = vadd.f32 %v789, %v842
      %v844 = vpop.f32.mrf.mxu0
      %v845 = vadd.f32 %v791, %v844
      %846 = vdwg.mxu0
      %v847 = vld [vmem:[#allocation2 + $0x4] sm:$0xc]
      %v848 = vld [vmem:[#allocation2 + $0x8] sm:$0xf]
      %v849 = vld [vmem:[#allocation2 + $0xc] sm:$0xf]
      %v850 = vld [vmem:[#allocation2 + $0x10] sm:$0xf]
      %v851 = vld [vmem:[#allocation2 + $0x14] sm:$0xf]
      %v852 = vld [vmem:[#allocation2 + $0x18] sm:$0xf]
      %v853 = vld [vmem:[#allocation2 + $0x1c] sm:$0xf]
      %v854 = vld [vmem:[#allocation2 + $0x20] sm:$0xf]
      %v855 = vld [vmem:[#allocation2 + $0x24] sm:$0xf]
      %v856 = vld [vmem:[#allocation2 + $0x28] sm:$0xf]
      %v857 = vld [vmem:[#allocation2 + $0x2c] sm:$0xf]
      %v858 = vld [vmem:[#allocation2 + $0x30] sm:$0xf]
      %v859 = vld [vmem:[#allocation2 + $0x34] sm:$0xf]
      %v860 = vld [vmem:[#allocation2 + $0x38] sm:$0xf]
      %v861 = vld [vmem:[#allocation2 + $0x3c] sm:$0xf]
      %v862 = vld [vmem:[#allocation2 + $0x40] sm:$0xf]
      %v863 = vld [vmem:[#allocation2 + $0x44] sm:$0xf]
      %v864 = vld [vmem:[#allocation2 + $0x48] sm:$0xf]
      %v865 = vld [vmem:[#allocation2 + $0x4c] sm:$0x7]
      %v866 = vld [vmem:[%s2] sm:$0xf]
      %v867 = vld [vmem:[%s2 + $0x4] sm:$0xf]
      %v868 = vld [vmem:[%s2 + $0x8] sm:$0xf]
      %v869 = vld [vmem:[%s2 + $0xc] sm:$0xf]
      %v889 = vunpack.c.l.b16 %v847
      %v890 = vunpack.c.l.b16 %v848
      %v891 = vunpack.c.l.b16 %v849
      %v892 = vunpack.c.l.b16 %v850
      %v893 = vunpack.c.l.b16 %v851
      %v894 = vunpack.c.l.b16 %v852
      %v895 = vunpack.c.l.b16 %v853
      %v896 = vunpack.c.l.b16 %v854
      %v897 = vunpack.c.l.b16 %v855
      %v898 = vunpack.c.l.b16 %v856
      %v899 = vunpack.c.l.b16 %v857
      %v900 = vunpack.c.l.b16 %v858
      %v901 = vunpack.c.l.b16 %v859
      %v902 = vunpack.c.l.b16 %v860
      %v903 = vunpack.c.l.b16 %v861
      %v904 = vunpack.c.l.b16 %v862
      %v905 = vunpack.c.l.b16 %v863
      %v906 = vunpack.c.l.b16 %v864
      %v907 = vunpack.c.l.b16 %v865
      %v908 = vpack.c.b16 %v890, %v889
      %v909 = vpack.c.b16 %v892, %v891
      %v910 = vpack.c.b16 %v894, %v893
      %v911 = vpack.c.b16 %v896, %v895
      %v912 = vpack.c.b16 %v898, %v897
      %v913 = vpack.c.b16 %v900, %v899
      %v914 = vpack.c.b16 %v902, %v901
      %v915 = vpack.c.b16 %v904, %v903
      %v916 = vpack.c.b16 %v906, %v905
      %v917 = vpack.c.b16 %v907, %v907
      %vm918 = vsmask.f32 5376
      %v920 = vshrl.u32 %v908, 16
      %v922 = vrot.slane %v920, 2
      %v923 = vshll.u32 %v908, 16
      %v925 = vrot.slane %v923, 3
      %v926 = vor.u32 %v922, %v925
      %v928 = vshrl.u32 %v909, 16
      %v930 = vrot.slane %v928, 2
      %v931 = vshll.u32 %v909, 16
      %v933 = vrot.slane %v931, 3
      %v934 = vor.u32 %v930, %v933
      %v935 = vsel %vm918, %v926, %v934
      %v937 = vshrl.u32 %v910, 16
      %v939 = vrot.slane %v937, 2
      %v940 = vshll.u32 %v910, 16
      %v942 = vrot.slane %v940, 3
      %v943 = vor.u32 %v939, %v942
      %v944 = vsel %vm918, %v934, %v943
      %v946 = vshrl.u32 %v911, 16
      %v948 = vrot.slane %v946, 2
      %v949 = vshll.u32 %v911, 16
      %v951 = vrot.slane %v949, 3
      %v952 = vor.u32 %v948, %v951
      %v953 = vsel %vm918, %v943, %v952
      %v955 = vshrl.u32 %v912, 16
      %v957 = vrot.slane %v955, 2
      %v958 = vshll.u32 %v912, 16
      %v960 = vrot.slane %v958, 3
      %v961 = vor.u32 %v957, %v960
      %v962 = vsel %vm918, %v952, %v961
      %v964 = vshrl.u32 %v913, 16
      %v966 = vrot.slane %v964, 2
      %v967 = vshll.u32 %v913, 16
      %v969 = vrot.slane %v967, 3
      %v970 = vor.u32 %v966, %v969
      %v971 = vsel %vm918, %v961, %v970
      %v973 = vshrl.u32 %v914, 16
      %v975 = vrot.slane %v973, 2
      %v976 = vshll.u32 %v914, 16
      %v978 = vrot.slane %v976, 3
      %v979 = vor.u32 %v975, %v978
      %v980 = vsel %vm918, %v970, %v979
      %v982 = vshrl.u32 %v915, 16
      %v984 = vrot.slane %v982, 2
      %v985 = vshll.u32 %v915, 16
      %v987 = vrot.slane %v985, 3
      %v988 = vor.u32 %v984, %v987
      %v989 = vsel %vm918, %v979, %v988
      %v991 = vshrl.u32 %v916, 16
      %v993 = vrot.slane %v991, 2
      %v994 = vshll.u32 %v916, 16
      %v996 = vrot.slane %v994, 3
      %v997 = vor.u32 %v993, %v996
      %v998 = vsel %vm918, %v988, %v997
      %v1000 = vshrl.u32 %v917, 16
      %v1002 = vrot.slane %v1000, 2
      %v1003 = vshll.u32 %v917, 16
      %v1005 = vrot.slane %v1003, 3
      %v1006 = vor.u32 %v1002, %v1005
      %v1007 = vsel %vm918, %v997, %v1006
      %v1012 = vunpack.c.l.b16 %v866
      %v1013 = vunpack.c.l.b16 %v867
      %v1014 = vunpack.c.l.b16 %v868
      %v1015 = vunpack.c.l.b16 %v869
      %v1016 = vpack.c.b16 %v1013, %v1012
      %v1017 = vpack.c.b16 %v1015, %v1014
      %v1021 = vsel %vm657, %v935, 0
      %v1024 = vsel %vm657, %v944, 0
      %v1027 = vsel %vm657, %v953, 0
      %v1030 = vsel %vm657, %v962, 0
      %v1033 = vsel %vm657, %v971, 0
      %v1036 = vsel %vm657, %v980, 0
      %v1039 = vsel %vm657, %v989, 0
      %v1042 = vsel %vm657, %v998, 0
      %v1045 = vsel %vm657, %v1007, 0
      %1047 = vmatpush.bf16.msra.mxu0 0
      %1048 = vmatpush.bf16.msra.mxu0 0
      %1049 = vmatpush.bf16.msra.mxu0 0
      %1050 = vmatpush.bf16.msra.mxu0 0
      %1051 = vmatpush.bf16.msra.mxu0 0
      %1052 = vmatpush.bf16.msra.mxu0 0
      %1053 = vmatpush.bf16.msra.mxu0 %v1017
      %1054 = vmatpush.bf16.msra.mxu0 %v1016
      %1055 = vmatmul.bf16.gmra.mxu0 %v1021
      %v1056 = vpop.f32.mrf.mxu0
      %v1057 = vadd.f32 0.0, %v1056
      %v1058 = vpop.f32.mrf.mxu0
      %v1059 = vadd.f32 0.0, %v1058
      %1060 = vmatmul.bf16.gmra.mxu0 %v1024
      %v1061 = vpop.f32.mrf.mxu0
      %v1062 = vadd.f32 0.0, %v1061
      %v1063 = vpop.f32.mrf.mxu0
      %v1064 = vadd.f32 0.0, %v1063
      %1065 = vmatmul.bf16.gmra.mxu0 %v1027
      %v1066 = vpop.f32.mrf.mxu0
      %v1067 = vadd.f32 0.0, %v1066
      %v1068 = vpop.f32.mrf.mxu0
      %v1069 = vadd.f32 0.0, %v1068
      %1070 = vmatmul.bf16.gmra.mxu0 %v1030
      %v1071 = vpop.f32.mrf.mxu0
      %v1072 = vadd.f32 0.0, %v1071
      %v1073 = vpop.f32.mrf.mxu0
      %v1074 = vadd.f32 0.0, %v1073
      %1075 = vmatmul.bf16.gmra.mxu0 %v1033
      %v1076 = vpop.f32.mrf.mxu0
      %v1077 = vadd.f32 0.0, %v1076
      %v1078 = vpop.f32.mrf.mxu0
      %v1079 = vadd.f32 0.0, %v1078
      %1080 = vmatmul.bf16.gmra.mxu0 %v1036
      %v1081 = vpop.f32.mrf.mxu0
      %v1082 = vadd.f32 0.0, %v1081
      %v1083 = vpop.f32.mrf.mxu0
      %v1084 = vadd.f32 0.0, %v1083
      %1085 = vmatmul.bf16.gmra.mxu0 %v1039
      %v1086 = vpop.f32.mrf.mxu0
      %v1087 = vadd.f32 0.0, %v1086
      %v1088 = vpop.f32.mrf.mxu0
      %v1089 = vadd.f32 0.0, %v1088
      %1090 = vmatmul.bf16.gmra.mxu0 %v1042
      %v1091 = vpop.f32.mrf.mxu0
      %v1092 = vadd.f32 0.0, %v1091
      %v1093 = vpop.f32.mrf.mxu0
      %v1094 = vadd.f32 0.0, %v1093
      %1095 = vmatmul.bf16.gmra.mxu0 %v1045
      %v1096 = vpop.f32.mrf.mxu0
      %v1097 = vadd.f32 0.0, %v1096
      %v1098 = vpop.f32.mrf.mxu0
      %v1099 = vadd.f32 0.0, %v1098
      %1100 = vdwg.mxu0
      %v1101 = vadd.f32 %v803, %v1057
      %v1102 = vadd.f32 %v805, %v1059
      %v1103 = vadd.f32 %v808, %v1062
      %v1104 = vadd.f32 %v810, %v1064
      %v1105 = vadd.f32 %v813, %v1067
      %v1106 = vadd.f32 %v815, %v1069
      %v1107 = vadd.f32 %v818, %v1072
      %v1108 = vadd.f32 %v820, %v1074
      %v1109 = vadd.f32 %v823, %v1077
      %v1110 = vadd.f32 %v825, %v1079
      %v1111 = vadd.f32 %v828, %v1082
      %v1112 = vadd.f32 %v830, %v1084
      %v1113 = vadd.f32 %v833, %v1087
      %v1114 = vadd.f32 %v835, %v1089
      %v1115 = vadd.f32 %v838, %v1092
      %v1116 = vadd.f32 %v840, %v1094
      %v1117 = vadd.f32 %v843, %v1097
      %v1118 = vadd.f32 %v845, %v1099
      %v1119 = vld [vmem:[#allocation2 + $0x4] sm:$0x8]
      %s1120 = scalar_lea.vmem %s2, 16
      %v1121 = vld [vmem:[%s1120] sm:$0xf]
      %v1122 = vld [vmem:[%s1120 + $0x4] sm:$0xf]
      %v1123 = vld [vmem:[%s1120 + $0x8] sm:$0xf]
      %v1124 = vld [vmem:[%s1120 + $0xc] sm:$0xf]
      %v1126 = vunpack.c.l.b16 %v1119
      %v1127 = vpack.c.b16 %v890, %v1126
      %vm1128 = vcmask 1044480
      %v1129 = vrot.slane %v1127, 3
      %v1130 = vrot.slane %v909, 3
      %v1131 = vsel %vm1128, %v1129, %v1130
      %v1132 = vrot.slane %v910, 3
      %v1133 = vsel %vm1128, %v1130, %v1132
      %v1134 = vrot.slane %v911, 3
      %v1135 = vsel %vm1128, %v1132, %v1134
      %v1136 = vrot.slane %v912, 3
      %v1137 = vsel %vm1128, %v1134, %v1136
      %v1138 = vrot.slane %v913, 3
      %v1139 = vsel %vm1128, %v1136, %v1138
      %v1140 = vrot.slane %v914, 3
      %v1141 = vsel %vm1128, %v1138, %v1140
      %v1142 = vrot.slane %v915, 3
      %v1143 = vsel %vm1128, %v1140, %v1142
      %v1144 = vrot.slane %v916, 3
      %v1145 = vsel %vm1128, %v1142, %v1144
      %v1146 = vrot.slane %v917, 3
      %v1147 = vsel %vm1128, %v1144, %v1146
      %v1152 = vunpack.c.l.b16 %v1121
      %v1153 = vunpack.c.l.b16 %v1122
      %v1154 = vunpack.c.l.b16 %v1123
      %v1155 = vunpack.c.l.b16 %v1124
      %v1156 = vpack.c.b16 %v1153, %v1152
      %v1157 = vpack.c.b16 %v1155, %v1154
      %v1161 = vsel %vm657, %v1131, 0
      %v1164 = vsel %vm657, %v1133, 0
      %v1167 = vsel %vm657, %v1135, 0
      %v1170 = vsel %vm657, %v1137, 0
      %v1173 = vsel %vm657, %v1139, 0
      %v1176 = vsel %vm657, %v1141, 0
      %v1179 = vsel %vm657, %v1143, 0
      %v1182 = vsel %vm657, %v1145, 0
      %v1185 = vsel %vm657, %v1147, 0
      %1187 = vmatpush.bf16.msra.mxu0 0
      %1188 = vmatpush.bf16.msra.mxu0 0
      %1189 = vmatpush.bf16.msra.mxu0 0
      %1190 = vmatpush.bf16.msra.mxu0 0
      %1191 = vmatpush.bf16.msra.mxu0 0
      %1192 = vmatpush.bf16.msra.mxu0 0
      %1193 = vmatpush.bf16.msra.mxu0 %v1157
      %1194 = vmatpush.bf16.msra.mxu0 %v1156
      %1195 = vmatmul.bf16.gmra.mxu0 %v1161
      %v1196 = vpop.f32.mrf.mxu0
      %v1197 = vadd.f32 0.0, %v1196
      %v1198 = vpop.f32.mrf.mxu0
      %v1199 = vadd.f32 0.0, %v1198
      %1200 = vmatmul.bf16.gmra.mxu0 %v1164
      %v1201 = vpop.f32.mrf.mxu0
      %v1202 = vadd.f32 0.0, %v1201
      %v1203 = vpop.f32.mrf.mxu0
      %v1204 = vadd.f32 0.0, %v1203
      %1205 = vmatmul.bf16.gmra.mxu0 %v1167
      %v1206 = vpop.f32.mrf.mxu0
      %v1207 = vadd.f32 0.0, %v1206
      %v1208 = vpop.f32.mrf.mxu0
      %v1209 = vadd.f32 0.0, %v1208
      %1210 = vmatmul.bf16.gmra.mxu0 %v1170
      %v1211 = vpop.f32.mrf.mxu0
      %v1212 = vadd.f32 0.0, %v1211
      %v1213 = vpop.f32.mrf.mxu0
      %v1214 = vadd.f32 0.0, %v1213
      %1215 = vmatmul.bf16.gmra.mxu0 %v1173
      %v1216 = vpop.f32.mrf.mxu0
      %v1217 = vadd.f32 0.0, %v1216
      %v1218 = vpop.f32.mrf.mxu0
      %v1219 = vadd.f32 0.0, %v1218
      %1220 = vmatmul.bf16.gmra.mxu0 %v1176
      %v1221 = vpop.f32.mrf.mxu0
      %v1222 = vadd.f32 0.0, %v1221
      %v1223 = vpop.f32.mrf.mxu0
      %v1224 = vadd.f32 0.0, %v1223
      %1225 = vmatmul.bf16.gmra.mxu0 %v1179
      %v1226 = vpop.f32.mrf.mxu0
      %v1227 = vadd.f32 0.0, %v1226
      %v1228 = vpop.f32.mrf.mxu0
      %v1229 = vadd.f32 0.0, %v1228
      %1230 = vmatmul.bf16.gmra.mxu0 %v1182
      %v1231 = vpop.f32.mrf.mxu0
      %v1232 = vadd.f32 0.0, %v1231
      %v1233 = vpop.f32.mrf.mxu0
      %v1234 = vadd.f32 0.0, %v1233
      %1235 = vmatmul.bf16.gmra.mxu0 %v1185
      %v1236 = vpop.f32.mrf.mxu0
      %v1237 = vadd.f32 0.0, %v1236
      %v1238 = vpop.f32.mrf.mxu0
      %v1239 = vadd.f32 0.0, %v1238
      %1240 = vdwg.mxu0
      %v1241 = vadd.f32 %v1101, %v1197
      %v1242 = vadd.f32 %v1102, %v1199
      %v1243 = vadd.f32 %v1103, %v1202
      %v1244 = vadd.f32 %v1104, %v1204
      %v1245 = vadd.f32 %v1105, %v1207
      %v1246 = vadd.f32 %v1106, %v1209
      %v1247 = vadd.f32 %v1107, %v1212
      %v1248 = vadd.f32 %v1108, %v1214
      %v1249 = vadd.f32 %v1109, %v1217
      %v1250 = vadd.f32 %v1110, %v1219
      %v1251 = vadd.f32 %v1111, %v1222
      %v1252 = vadd.f32 %v1112, %v1224
      %v1253 = vadd.f32 %v1113, %v1227
      %v1254 = vadd.f32 %v1114, %v1229
      %v1255 = vadd.f32 %v1115, %v1232
      %v1256 = vadd.f32 %v1116, %v1234
      %v1257 = vadd.f32 %v1117, %v1237
      %v1258 = vadd.f32 %v1118, %v1239
      %v1259 = vld [vmem:[#allocation2 + $0x4c] sm:$0xf]
      %s1260 = scalar_lea.vmem %s2, 32
      %v1261 = vld [vmem:[%s1260] sm:$0xf]
      %v1262 = vld [vmem:[%s1260 + $0x4] sm:$0xf]
      %v1263 = vld [vmem:[%s1260 + $0x8] sm:$0xf]
      %v1264 = vld [vmem:[%s1260 + $0xc] sm:$0xf]
      %v1266 = vunpack.c.l.b16 %v1259
      %v1267 = vpack.c.b16 %v1266, %v1266
      %vm1268 = vsmask.f32 4352
      %v1270 = vshrl.u32 %v1127, 16
      %v1272 = vrot.slane %v1270, 3
      %v1273 = vshll.u32 %v1127, 16
      %v1275 = vrot.slane %v1273, 4
      %v1276 = vor.u32 %v1272, %v1275
      %v1277 = vrot.slane %v928, 3
      %v1278 = vrot.slane %v931, 4
      %v1279 = vor.u32 %v1277, %v1278
      %v1280 = vsel %vm1268, %v1276, %v1279
      %v1281 = vrot.slane %v937, 3
      %v1282 = vrot.slane %v940, 4
      %v1283 = vor.u32 %v1281, %v1282
      %v1284 = vsel %vm1268, %v1279, %v1283
      %v1285 = vrot.slane %v946, 3
      %v1286 = vrot.slane %v949, 4
      %v1287 = vor.u32 %v1285, %v1286
      %v1288 = vsel %vm1268, %v1283, %v1287
      %v1289 = vrot.slane %v955, 3
      %v1290 = vrot.slane %v958, 4
      %v1291 = vor.u32 %v1289, %v1290
      %v1292 = vsel %vm1268, %v1287, %v1291
      %v1293 = vrot.slane %v964, 3
      %v1294 = vrot.slane %v967, 4
      %v1295 = vor.u32 %v1293, %v1294
      %v1296 = vsel %vm1268, %v1291, %v1295
      %v1297 = vrot.slane %v973, 3
      %v1298 = vrot.slane %v976, 4
      %v1299 = vor.u32 %v1297, %v1298
      %v1300 = vsel %vm1268, %v1295, %v1299
      %v1301 = vrot.slane %v982, 3
      %v1302 = vrot.slane %v985, 4
      %v1303 = vor.u32 %v1301, %v1302
      %v1304 = vsel %vm1268, %v1299, %v1303
      %v1305 = vrot.slane %v991, 3
      %v1306 = vrot.slane %v994, 4
      %v1307 = vor.u32 %v1305, %v1306
      %v1308 = vsel %vm1268, %v1303, %v1307
      %v1310 = vshrl.u32 %v1267, 16
      %v1312 = vrot.slane %v1310, 3
      %v1313 = vshll.u32 %v1267, 16
      %v1315 = vrot.slane %v1313, 4
      %v1316 = vor.u32 %v1312, %v1315
      %v1317 = vsel %vm1268, %v1307, %v1316
      %v1322 = vunpack.c.l.b16 %v1261
      %v1323 = vunpack.c.l.b16 %v1262
      %v1324 = vunpack.c.l.b16 %v1263
      %v1325 = vunpack.c.l.b16 %v1264
      %v1326 = vpack.c.b16 %v1323, %v1322
      %v1327 = vpack.c.b16 %v1325, %v1324
      %v1331 = vsel %vm657, %v1280, 0
      %v1334 = vsel %vm657, %v1284, 0
      %v1337 = vsel %vm657, %v1288, 0
      %v1340 = vsel %vm657, %v1292, 0
      %v1343 = vsel %vm657, %v1296, 0
      %v1346 = vsel %vm657, %v1300, 0
      %v1349 = vsel %vm657, %v1304, 0
      %v1352 = vsel %vm657, %v1308, 0
      %v1355 = vsel %vm657, %v1317, 0
      %1357 = vmatpush.bf16.msra.mxu0 0
      %1358 = vmatpush.bf16.msra.mxu0 0
      %1359 = vmatpush.bf16.msra.mxu0 0
      %1360 = vmatpush.bf16.msra.mxu0 0
      %1361 = vmatpush.bf16.msra.mxu0 0
      %1362 = vmatpush.bf16.msra.mxu0 0
      %1363 = vmatpush.bf16.msra.mxu0 %v1327
      %1364 = vmatpush.bf16.msra.mxu0 %v1326
      %1365 = vmatmul.bf16.gmra.mxu0 %v1331
      %v1366 = vpop.f32.mrf.mxu0
      %v1367 = vadd.f32 0.0, %v1366
      %v1368 = vpop.f32.mrf.mxu0
      %v1369 = vadd.f32 0.0, %v1368
      %1370 = vmatmul.bf16.gmra.mxu0 %v1334
      %v1371 = vpop.f32.mrf.mxu0
      %v1372 = vadd.f32 0.0, %v1371
      %v1373 = vpop.f32.mrf.mxu0
      %v1374 = vadd.f32 0.0, %v1373
      %1375 = vmatmul.bf16.gmra.mxu0 %v1337
      %v1376 = vpop.f32.mrf.mxu0
      %v1377 = vadd.f32 0.0, %v1376
      %v1378 = vpop.f32.mrf.mxu0
      %v1379 = vadd.f32 0.0, %v1378
      %1380 = vmatmul.bf16.gmra.mxu0 %v1340
      %v1381 = vpop.f32.mrf.mxu0
      %v1382 = vadd.f32 0.0, %v1381
      %v1383 = vpop.f32.mrf.mxu0
      %v1384 = vadd.f32 0.0, %v1383
      %1385 = vmatmul.bf16.gmra.mxu0 %v1343
      %v1386 = vpop.f32.mrf.mxu0
      %v1387 = vadd.f32 0.0, %v1386
      %v1388 = vpop.f32.mrf.mxu0
      %v1389 = vadd.f32 0.0, %v1388
      %1390 = vmatmul.bf16.gmra.mxu0 %v1346
      %v1391 = vpop.f32.mrf.mxu0
      %v1392 = vadd.f32 0.0, %v1391
      %v1393 = vpop.f32.mrf.mxu0
      %v1394 = vadd.f32 0.0, %v1393
      %1395 = vmatmul.bf16.gmra.mxu0 %v1349
      %v1396 = vpop.f32.mrf.mxu0
      %v1397 = vadd.f32 0.0, %v1396
      %v1398 = vpop.f32.mrf.mxu0
      %v1399 = vadd.f32 0.0, %v1398
      %1400 = vmatmul.bf16.gmra.mxu0 %v1352
      %v1401 = vpop.f32.mrf.mxu0
      %v1402 = vadd.f32 0.0, %v1401
      %v1403 = vpop.f32.mrf.mxu0
      %v1404 = vadd.f32 0.0, %v1403
      %1405 = vmatmul.bf16.gmra.mxu0 %v1355
      %v1406 = vpop.f32.mrf.mxu0
      %v1407 = vadd.f32 0.0, %v1406
      %v1408 = vpop.f32.mrf.mxu0
      %v1409 = vadd.f32 0.0, %v1408
      %1410 = vdwg.mxu0
      %v1411 = vadd.f32 %v1241, %v1367
      %v1412 = vadd.f32 %v1242, %v1369
      %v1413 = vadd.f32 %v1243, %v1372
      %v1414 = vadd.f32 %v1244, %v1374
      %v1415 = vadd.f32 %v1245, %v1377
      %v1416 = vadd.f32 %v1246, %v1379
      %v1417 = vadd.f32 %v1247, %v1382
      %v1418 = vadd.f32 %v1248, %v1384
      %v1419 = vadd.f32 %v1249, %v1387
      %v1420 = vadd.f32 %v1250, %v1389
      %v1421 = vadd.f32 %v1251, %v1392
      %v1422 = vadd.f32 %v1252, %v1394
      %v1423 = vadd.f32 %v1253, %v1397
      %v1424 = vadd.f32 %v1254, %v1399
      %v1425 = vadd.f32 %v1255, %v1402
      %v1426 = vadd.f32 %v1256, %v1404
      %v1427 = vadd.f32 %v1257, %v1407
      %v1428 = vadd.f32 %v1258, %v1409
      %v1429 = vld [vmem:[#allocation2 + $0xc] sm:$0x8]
      %v1430 = vld [vmem:[#allocation2 + $0x10] sm:$0xf]
      %v1431 = vld [vmem:[#allocation2 + $0x14] sm:$0xf]
      %v1432 = vld [vmem:[#allocation2 + $0x18] sm:$0xf]
      %v1433 = vld [vmem:[#allocation2 + $0x1c] sm:$0xf]
      %v1434 = vld [vmem:[#allocation2 + $0x20] sm:$0xf]
      %v1435 = vld [vmem:[#allocation2 + $0x24] sm:$0xf]
      %v1436 = vld [vmem:[#allocation2 + $0x28] sm:$0xf]
      %v1437 = vld [vmem:[#allocation2 + $0x2c] sm:$0xf]
      %v1438 = vld [vmem:[#allocation2 + $0x30] sm:$0xf]
      %v1439 = vld [vmem:[#allocation2 + $0x34] sm:$0xf]
      %v1440 = vld [vmem:[#allocation2 + $0x38] sm:$0xf]
      %v1441 = vld [vmem:[#allocation2 + $0x3c] sm:$0xf]
      %v1442 = vld [vmem:[#allocation2 + $0x40] sm:$0xf]
      %v1443 = vld [vmem:[#allocation2 + $0x44] sm:$0xf]
      %v1444 = vld [vmem:[#allocation2 + $0x48] sm:$0xf]
      %v1445 = vld [vmem:[#allocation2 + $0x4c] sm:$0xf]
      %v1446 = vld [vmem:[#allocation2 + $0x50] sm:$0xf]
      %v1447 = vld [vmem:[#allocation2 + $0x54] sm:$0xf]
      %s1448 = scalar_lea.vmem %s2, 48
      %v1449 = vld [vmem:[%s1448] sm:$0xf]
      %v1450 = vld [vmem:[%s1448 + $0x4] sm:$0xf]
      %v1451 = vld [vmem:[%s1448 + $0x8] sm:$0xf]
      %v1452 = vld [vmem:[%s1448 + $0xc] sm:$0xf]
      %v1472 = vunpack.c.l.b16 %v1429
      %v1473 = vunpack.c.l.b16 %v1430
      %v1474 = vunpack.c.l.b16 %v1431
      %v1475 = vunpack.c.l.b16 %v1432
      %v1476 = vunpack.c.l.b16 %v1433
      %v1477 = vunpack.c.l.b16 %v1434
      %v1478 = vunpack.c.l.b16 %v1435
      %v1479 = vunpack.c.l.b16 %v1436
      %v1480 = vunpack.c.l.b16 %v1437
      %v1481 = vunpack.c.l.b16 %v1438
      %v1482 = vunpack.c.l.b16 %v1439
      %v1483 = vunpack.c.l.b16 %v1440
      %v1484 = vunpack.c.l.b16 %v1441
      %v1485 = vunpack.c.l.b16 %v1442
      %v1486 = vunpack.c.l.b16 %v1443
      %v1487 = vunpack.c.l.b16 %v1444
      %v1488 = vunpack.c.l.b16 %v1445
      %v1489 = vunpack.c.l.b16 %v1446
      %v1490 = vunpack.c.l.b16 %v1447
      %v1491 = vpack.c.b16 %v1473, %v1472
      %v1492 = vpack.c.b16 %v1475, %v1474
      %v1493 = vpack.c.b16 %v1477, %v1476
      %v1494 = vpack.c.b16 %v1479, %v1478
      %v1495 = vpack.c.b16 %v1481, %v1480
      %v1496 = vpack.c.b16 %v1483, %v1482
      %v1497 = vpack.c.b16 %v1485, %v1484
      %v1498 = vpack.c.b16 %v1487, %v1486
      %v1499 = vpack.c.b16 %v1489, %v1488
      %v1500 = vpack.c.b16 %v1490, %v1490
      %v1502 = vshrl.u32 %v1491, 16
      %v1504 = vrot.slane %v1502, 3
      %v1505 = vshll.u32 %v1491, 16
      %v1507 = vrot.slane %v1505, 4
      %v1508 = vor.u32 %v1504, %v1507
      %v1510 = vshrl.u32 %v1492, 16
      %v1512 = vrot.slane %v1510, 3
      %v1513 = vshll.u32 %v1492, 16
      %v1515 = vrot.slane %v1513, 4
      %v1516 = vor.u32 %v1512, %v1515
      %v1517 = vsel %vm1268, %v1508, %v1516
      %v1519 = vshrl.u32 %v1493, 16
      %v1521 = vrot.slane %v1519, 3
      %v1522 = vshll.u32 %v1493, 16
      %v1524 = vrot.slane %v1522, 4
      %v1525 = vor.u32 %v1521, %v1524
      %v1526 = vsel %vm1268, %v1516, %v1525
      %v1528 = vshrl.u32 %v1494, 16
      %v1530 = vrot.slane %v1528, 3
      %v1531 = vshll.u32 %v1494, 16
      %v1533 = vrot.slane %v1531, 4
      %v1534 = vor.u32 %v1530, %v1533
      %v1535 = vsel %vm1268, %v1525, %v1534
      %v1537 = vshrl.u32 %v1495, 16
      %v1539 = vrot.slane %v1537, 3
      %v1540 = vshll.u32 %v1495, 16
      %v1542 = vrot.slane %v1540, 4
      %v1543 = vor.u32 %v1539, %v1542
      %v1544 = vsel %vm1268, %v1534, %v1543
      %v1546 = vshrl.u32 %v1496, 16
      %v1548 = vrot.slane %v1546, 3
      %v1549 = vshll.u32 %v1496, 16
      %v1551 = vrot.slane %v1549, 4
      %v1552 = vor.u32 %v1548, %v1551
      %v1553 = vsel %vm1268, %v1543, %v1552
      %v1555 = vshrl.u32 %v1497, 16
      %v1557 = vrot.slane %v1555, 3
      %v1558 = vshll.u32 %v1497, 16
      %v1560 = vrot.slane %v1558, 4
      %v1561 = vor.u32 %v1557, %v1560
      %v1562 = vsel %vm1268, %v1552, %v1561
      %v1564 = vshrl.u32 %v1498, 16
      %v1566 = vrot.slane %v1564, 3
      %v1567 = vshll.u32 %v1498, 16
      %v1569 = vrot.slane %v1567, 4
      %v1570 = vor.u32 %v1566, %v1569
      %v1571 = vsel %vm1268, %v1561, %v1570
      %v1573 = vshrl.u32 %v1499, 16
      %v1575 = vrot.slane %v1573, 3
      %v1576 = vshll.u32 %v1499, 16
      %v1578 = vrot.slane %v1576, 4
      %v1579 = vor.u32 %v1575, %v1578
      %v1580 = vsel %vm1268, %v1570, %v1579
      %v1582 = vshrl.u32 %v1500, 16
      %v1584 = vrot.slane %v1582, 3
      %v1585 = vshll.u32 %v1500, 16
      %v1587 = vrot.slane %v1585, 4
      %v1588 = vor.u32 %v1584, %v1587
      %v1589 = vsel %vm1268, %v1579, %v1588
      %v1594 = vunpack.c.l.b16 %v1449
      %v1595 = vunpack.c.l.b16 %v1450
      %v1596 = vunpack.c.l.b16 %v1451
      %v1597 = vunpack.c.l.b16 %v1452
      %v1598 = vpack.c.b16 %v1595, %v1594
      %v1599 = vpack.c.b16 %v1597, %v1596
      %v1603 = vsel %vm657, %v1517, 0
      %v1606 = vsel %vm657, %v1526, 0
      %v1609 = vsel %vm657, %v1535, 0
      %v1612 = vsel %vm657, %v1544, 0
      %v1615 = vsel %vm657, %v1553, 0
      %v1618 = vsel %vm657, %v1562, 0
      %v1621 = vsel %vm657, %v1571, 0
      %v1624 = vsel %vm657, %v1580, 0
      %v1627 = vsel %vm657, %v1589, 0
      %1629 = vmatpush.bf16.msra.mxu0 0
      %1630 = vmatpush.bf16.msra.mxu0 0
      %1631 = vmatpush.bf16.msra.mxu0 0
      %1632 = vmatpush.bf16.msra.mxu0 0
      %1633 = vmatpush.bf16.msra.mxu0 0
      %1634 = vmatpush.bf16.msra.mxu0 0
      %1635 = vmatpush.bf16.msra.mxu0 %v1599
      %1636 = vmatpush.bf16.msra.mxu0 %v1598
      %1637 = vmatmul.bf16.gmra.mxu0 %v1603
      %v1638 = vpop.f32.mrf.mxu0
      %v1639 = vadd.f32 0.0, %v1638
      %v1640 = vpop.f32.mrf.mxu0
      %v1641 = vadd.f32 0.0, %v1640
      %1642 = vmatmul.bf16.gmra.mxu0 %v1606
      %v1643 = vpop.f32.mrf.mxu0
      %v1644 = vadd.f32 0.0, %v1643
      %v1645 = vpop.f32.mrf.mxu0
      %v1646 = vadd.f32 0.0, %v1645
      %1647 = vmatmul.bf16.gmra.mxu0 %v1609
      %v1648 = vpop.f32.mrf.mxu0
      %v1649 = vadd.f32 0.0, %v1648
      %v1650 = vpop.f32.mrf.mxu0
      %v1651 = vadd.f32 0.0, %v1650
      %1652 = vmatmul.bf16.gmra.mxu0 %v1612
      %v1653 = vpop.f32.mrf.mxu0
      %v1654 = vadd.f32 0.0, %v1653
      %v1655 = vpop.f32.mrf.mxu0
      %v1656 = vadd.f32 0.0, %v1655
      %1657 = vmatmul.bf16.gmra.mxu0 %v1615
      %v1658 = vpop.f32.mrf.mxu0
      %v1659 = vadd.f32 0.0, %v1658
      %v1660 = vpop.f32.mrf.mxu0
      %v1661 = vadd.f32 0.0, %v1660
      %1662 = vmatmul.bf16.gmra.mxu0 %v1618
      %v1663 = vpop.f32.mrf.mxu0
      %v1664 = vadd.f32 0.0, %v1663
      %v1665 = vpop.f32.mrf.mxu0
      %v1666 = vadd.f32 0.0, %v1665
      %1667 = vmatmul.bf16.gmra.mxu0 %v1621
      %v1668 = vpop.f32.mrf.mxu0
      %v1669 = vadd.f32 0.0, %v1668
      %v1670 = vpop.f32.mrf.mxu0
      %v1671 = vadd.f32 0.0, %v1670
      %1672 = vmatmul.bf16.gmra.mxu0 %v1624
      %v1673 = vpop.f32.mrf.mxu0
      %v1674 = vadd.f32 0.0, %v1673
      %v1675 = vpop.f32.mrf.mxu0
      %v1676 = vadd.f32 0.0, %v1675
      %1677 = vmatmul.bf16.gmra.mxu0 %v1627
      %v1678 = vpop.f32.mrf.mxu0
      %v1679 = vadd.f32 0.0, %v1678
      %v1680 = vpop.f32.mrf.mxu0
      %v1681 = vadd.f32 0.0, %v1680
      %1682 = vdwg.mxu0
      %v1683 = vadd.f32 %v1411, %v1639
      %v1684 = vadd.f32 %v1412, %v1641
      %v1685 = vadd.f32 %v1413, %v1644
      %v1686 = vadd.f32 %v1414, %v1646
      %v1687 = vadd.f32 %v1415, %v1649
      %v1688 = vadd.f32 %v1416, %v1651
      %v1689 = vadd.f32 %v1417, %v1654
      %v1690 = vadd.f32 %v1418, %v1656
      %v1691 = vadd.f32 %v1419, %v1659
      %v1692 = vadd.f32 %v1420, %v1661
      %v1693 = vadd.f32 %v1421, %v1664
      %v1694 = vadd.f32 %v1422, %v1666
      %v1695 = vadd.f32 %v1423, %v1669
      %v1696 = vadd.f32 %v1424, %v1671
      %v1697 = vadd.f32 %v1425, %v1674
      %v1698 = vadd.f32 %v1426, %v1676
      %v1699 = vadd.f32 %v1427, %v1679
      %v1700 = vadd.f32 %v1428, %v1681
      %s1701 = scalar_lea.vmem %s2, 64
      %v1702 = vld [vmem:[%s1701] sm:$0xf]
      %v1703 = vld [vmem:[%s1701 + $0x4] sm:$0xf]
      %v1704 = vld [vmem:[%s1701 + $0x8] sm:$0xf]
      %v1705 = vld [vmem:[%s1701 + $0xc] sm:$0xf]
      %v1706 = vpack.c.b16 %v1474, %v1473
      %v1707 = vpack.c.b16 %v1476, %v1475
      %v1708 = vpack.c.b16 %v1478, %v1477
      %v1709 = vpack.c.b16 %v1480, %v1479
      %v1710 = vpack.c.b16 %v1482, %v1481
      %v1711 = vpack.c.b16 %v1484, %v1483
      %v1712 = vpack.c.b16 %v1486, %v1485
      %v1713 = vpack.c.b16 %v1488, %v1487
      %v1714 = vpack.c.b16 %v1490, %v1489
      %v1719 = vunpack.c.l.b16 %v1702
      %v1720 = vunpack.c.l.b16 %v1703
      %v1721 = vunpack.c.l.b16 %v1704
      %v1722 = vunpack.c.l.b16 %v1705
      %v1723 = vpack.c.b16 %v1720, %v1719
      %v1724 = vpack.c.b16 %v1722, %v1721
      %v1728 = vsel %vm657, %v1706, 0
      %v1731 = vsel %vm657, %v1707, 0
      %v1734 = vsel %vm657, %v1708, 0
      %v1737 = vsel %vm657, %v1709, 0
      %v1740 = vsel %vm657, %v1710, 0
      %v1743 = vsel %vm657, %v1711, 0
      %v1746 = vsel %vm657, %v1712, 0
      %v1749 = vsel %vm657, %v1713, 0
      %v1752 = vsel %vm657, %v1714, 0
      %1754 = vmatpush.bf16.msra.mxu0 0
      %1755 = vmatpush.bf16.msra.mxu0 0
      %1756 = vmatpush.bf16.msra.mxu0 0
      %1757 = vmatpush.bf16.msra.mxu0 0
      %1758 = vmatpush.bf16.msra.mxu0 0
      %1759 = vmatpush.bf16.msra.mxu0 0
      %1760 = vmatpush.bf16.msra.mxu0 %v1724
      %1761 = vmatpush.bf16.msra.mxu0 %v1723
      %1762 = vmatmul.bf16.gmra.mxu0 %v1728
      %v1763 = vpop.f32.mrf.mxu0
      %v1764 = vadd.f32 0.0, %v1763
      %v1765 = vpop.f32.mrf.mxu0
      %v1766 = vadd.f32 0.0, %v1765
      %1767 = vmatmul.bf16.gmra.mxu0 %v1731
      %v1768 = vpop.f32.mrf.mxu0
      %v1769 = vadd.f32 0.0, %v1768
      %v1770 = vpop.f32.mrf.mxu0
      %v1771 = vadd.f32 0.0, %v1770
      %1772 = vmatmul.bf16.gmra.mxu0 %v1734
      %v1773 = vpop.f32.mrf.mxu0
      %v1774 = vadd.f32 0.0, %v1773
      %v1775 = vpop.f32.mrf.mxu0
      %v1776 = vadd.f32 0.0, %v1775
      %1777 = vmatmul.bf16.gmra.mxu0 %v1737
      %v1778 = vpop.f32.mrf.mxu0
      %v1779 = vadd.f32 0.0, %v1778
      %v1780 = vpop.f32.mrf.mxu0
      %v1781 = vadd.f32 0.0, %v1780
      %1782 = vmatmul.bf16.gmra.mxu0 %v1740
      %v1783 = vpop.f32.mrf.mxu0
      %v1784 = vadd.f32 0.0, %v1783
      %v1785 = vpop.f32.mrf.mxu0
      %v1786 = vadd.f32 0.0, %v1785
      %1787 = vmatmul.bf16.gmra.mxu0 %v1743
      %v1788 = vpop.f32.mrf.mxu0
      %v1789 = vadd.f32 0.0, %v1788
      %v1790 = vpop.f32.mrf.mxu0
      %v1791 = vadd.f32 0.0, %v1790
      %1792 = vmatmul.bf16.gmra.mxu0 %v1746
      %v1793 = vpop.f32.mrf.mxu0
      %v1794 = vadd.f32 0.0, %v1793
      %v1795 = vpop.f32.mrf.mxu0
      %v1796 = vadd.f32 0.0, %v1795
      %1797 = vmatmul.bf16.gmra.mxu0 %v1749
      %v1798 = vpop.f32.mrf.mxu0
      %v1799 = vadd.f32 0.0, %v1798
      %v1800 = vpop.f32.mrf.mxu0
      %v1801 = vadd.f32 0.0, %v1800
      %1802 = vmatmul.bf16.gmra.mxu0 %v1752
      %v1803 = vpop.f32.mrf.mxu0
      %v1804 = vadd.f32 0.0, %v1803
      %v1805 = vpop.f32.mrf.mxu0
      %v1806 = vadd.f32 0.0, %v1805
      %1807 = vdwg.mxu0
      %v1808 = vadd.f32 %v1683, %v1764
      %v1809 = vadd.f32 %v1684, %v1766
      %v1810 = vadd.f32 %v1685, %v1769
      %v1811 = vadd.f32 %v1686, %v1771
      %v1812 = vadd.f32 %v1687, %v1774
      %v1813 = vadd.f32 %v1688, %v1776
      %v1814 = vadd.f32 %v1689, %v1779
      %v1815 = vadd.f32 %v1690, %v1781
      %v1816 = vadd.f32 %v1691, %v1784
      %v1817 = vadd.f32 %v1692, %v1786
      %v1818 = vadd.f32 %v1693, %v1789
      %v1819 = vadd.f32 %v1694, %v1791
      %v1820 = vadd.f32 %v1695, %v1794
      %v1821 = vadd.f32 %v1696, %v1796
      %v1822 = vadd.f32 %v1697, %v1799
      %v1823 = vadd.f32 %v1698, %v1801
      %v1824 = vadd.f32 %v1699, %v1804
      %v1825 = vadd.f32 %v1700, %v1806
      %v1826 = vld [vmem:[#allocation2 + $0x10] sm:$0xf]
      %v1827 = vld [vmem:[#allocation2 + $0x14] sm:$0xf]
      %v1828 = vld [vmem:[#allocation2 + $0x18] sm:$0xf]
      %v1829 = vld [vmem:[#allocation2 + $0x1c] sm:$0xf]
      %v1830 = vld [vmem:[#allocation2 + $0x20] sm:$0xf]
      %v1831 = vld [vmem:[#allocation2 + $0x24] sm:$0xf]
      %v1832 = vld [vmem:[#allocation2 + $0x28] sm:$0xf]
      %v1833 = vld [vmem:[#allocation2 + $0x2c] sm:$0xf]
      %v1834 = vld [vmem:[#allocation2 + $0x30] sm:$0xf]
      %v1835 = vld [vmem:[#allocation2 + $0x34] sm:$0xf]
      %v1836 = vld [vmem:[#allocation2 + $0x38] sm:$0xf]
      %v1837 = vld [vmem:[#allocation2 + $0x3c] sm:$0xf]
      %v1838 = vld [vmem:[#allocation2 + $0x40] sm:$0xf]
      %v1839 = vld [vmem:[#allocation2 + $0x44] sm:$0xf]
      %v1840 = vld [vmem:[#allocation2 + $0x48] sm:$0xf]
      %v1841 = vld [vmem:[#allocation2 + $0x4c] sm:$0xf]
      %v1842 = vld [vmem:[#allocation2 + $0x50] sm:$0xf]
      %v1843 = vld [vmem:[#allocation2 + $0x54] sm:$0xf]
      %v1844 = vld [vmem:[#allocation2 + $0x58] sm:$0x1]
      %s1845 = scalar_lea.vmem %s2, 80
      %v1846 = vld [vmem:[%s1845] sm:$0xf]
      %v1847 = vld [vmem:[%s1845 + $0x4] sm:$0xf]
      %v1848 = vld [vmem:[%s1845 + $0x8] sm:$0xf]
      %v1849 = vld [vmem:[%s1845 + $0xc] sm:$0xf]
      %v1869 = vunpack.c.l.b16 %v1826
      %v1870 = vunpack.c.l.b16 %v1827
      %v1871 = vunpack.c.l.b16 %v1828
      %v1872 = vunpack.c.l.b16 %v1829
      %v1873 = vunpack.c.l.b16 %v1830
      %v1874 = vunpack.c.l.b16 %v1831
      %v1875 = vunpack.c.l.b16 %v1832
      %v1876 = vunpack.c.l.b16 %v1833
      %v1877 = vunpack.c.l.b16 %v1834
      %v1878 = vunpack.c.l.b16 %v1835
      %v1879 = vunpack.c.l.b16 %v1836
      %v1880 = vunpack.c.l.b16 %v1837
      %v1881 = vunpack.c.l.b16 %v1838
      %v1882 = vunpack.c.l.b16 %v1839
      %v1883 = vunpack.c.l.b16 %v1840
      %v1884 = vunpack.c.l.b16 %v1841
      %v1885 = vunpack.c.l.b16 %v1842
      %v1886 = vunpack.c.l.b16 %v1843
      %v1887 = vunpack.c.l.b16 %v1844
      %v1888 = vpack.c.b16 %v1870, %v1869
      %v1889 = vpack.c.b16 %v1872, %v1871
      %v1890 = vpack.c.b16 %v1874, %v1873
      %v1891 = vpack.c.b16 %v1876, %v1875
      %v1892 = vpack.c.b16 %v1878, %v1877
      %v1893 = vpack.c.b16 %v1880, %v1879
      %v1894 = vpack.c.b16 %v1882, %v1881
      %v1895 = vpack.c.b16 %v1884, %v1883
      %v1896 = vpack.c.b16 %v1886, %v1885
      %v1897 = vpack.c.b16 %v1887, %v1887
      %vm1898 = vsmask.f32 7424
      %v1900 = vshrl.u32 %v1888, 16
      %v1902 = vshll.u32 %v1888, 16
      %v1904 = vrot.slane %v1902, 1
      %v1905 = vor.u32 %v1900, %v1904
      %v1907 = vshll.u32 %v1889, 16
      %v1909 = vrot.slane %v1907, 1
      %v1910 = vsel %vm1898, %v1905, %v1909
      %v1911 = vshrl.u32 %v1889, 16
      %v1913 = vor.u32 %v1911, %v1909
      %v1915 = vshll.u32 %v1890, 16
      %v1917 = vrot.slane %v1915, 1
      %v1918 = vsel %vm1898, %v1913, %v1917
      %v1919 = vshrl.u32 %v1890, 16
      %v1921 = vor.u32 %v1919, %v1917
      %v1923 = vshll.u32 %v1891, 16
      %v1925 = vrot.slane %v1923, 1
      %v1926 = vsel %vm1898, %v1921, %v1925
      %v1927 = vshrl.u32 %v1891, 16
      %v1929 = vor.u32 %v1927, %v1925
      %v1931 = vshll.u32 %v1892, 16
      %v1933 = vrot.slane %v1931, 1
      %v1934 = vsel %vm1898, %v1929, %v1933
      %v1935 = vshrl.u32 %v1892, 16
      %v1937 = vor.u32 %v1935, %v1933
      %v1939 = vshll.u32 %v1893, 16
      %v1941 = vrot.slane %v1939, 1
      %v1942 = vsel %vm1898, %v1937, %v1941
      %v1943 = vshrl.u32 %v1893, 16
      %v1945 = vor.u32 %v1943, %v1941
      %v1947 = vshll.u32 %v1894, 16
      %v1949 = vrot.slane %v1947, 1
      %v1950 = vsel %vm1898, %v1945, %v1949
      %v1951 = vshrl.u32 %v1894, 16
      %v1953 = vor.u32 %v1951, %v1949
      %v1955 = vshll.u32 %v1895, 16
      %v1957 = vrot.slane %v1955, 1
      %v1958 = vsel %vm1898, %v1953, %v1957
      %v1959 = vshrl.u32 %v1895, 16
      %v1961 = vor.u32 %v1959, %v1957
      %v1963 = vshll.u32 %v1896, 16
      %v1965 = vrot.slane %v1963, 1
      %v1966 = vsel %vm1898, %v1961, %v1965
      %v1967 = vshrl.u32 %v1896, 16
      %v1969 = vor.u32 %v1967, %v1965
      %v1971 = vshll.u32 %v1897, 16
      %v1973 = vrot.slane %v1971, 1
      %v1974 = vsel %vm1898, %v1969, %v1973
      %v1979 = vunpack.c.l.b16 %v1846
      %v1980 = vunpack.c.l.b16 %v1847
      %v1981 = vunpack.c.l.b16 %v1848
      %v1982 = vunpack.c.l.b16 %v1849
      %v1983 = vpack.c.b16 %v1980, %v1979
      %v1984 = vpack.c.b16 %v1982, %v1981
      %v1988 = vsel %vm657, %v1910, 0
      %v1991 = vsel %vm657, %v1918, 0
      %v1994 = vsel %vm657, %v1926, 0
      %v1997 = vsel %vm657, %v1934, 0
      %v2000 = vsel %vm657, %v1942, 0
      %v2003 = vsel %vm657, %v1950, 0
      %v2006 = vsel %vm657, %v1958, 0
      %v2009 = vsel %vm657, %v1966, 0
      %v2012 = vsel %vm657, %v1974, 0
      %2014 = vmatpush.bf16.msra.mxu0 0
      %2015 = vmatpush.bf16.msra.mxu0 0
      %2016 = vmatpush.bf16.msra.mxu0 0
      %2017 = vmatpush.bf16.msra.mxu0 0
      %2018 = vmatpush.bf16.msra.mxu0 0
      %2019 = vmatpush.bf16.msra.mxu0 0
      %2020 = vmatpush.bf16.msra.mxu0 %v1984
      %2021 = vmatpush.bf16.msra.mxu0 %v1983
      %2022 = vmatmul.bf16.gmra.mxu0 %v1988
      %v2023 = vpop.f32.mrf.mxu0
      %v2024 = vadd.f32 0.0, %v2023
      %v2025 = vpop.f32.mrf.mxu0
      %v2026 = vadd.f32 0.0, %v2025
      %2027 = vmatmul.bf16.gmra.mxu0 %v1991
      %v2028 = vpop.f32.mrf.mxu0
      %v2029 = vadd.f32 0.0, %v2028
      %v2030 = vpop.f32.mrf.mxu0
      %v2031 = vadd.f32 0.0, %v2030
      %2032 = vmatmul.bf16.gmra.mxu0 %v1994
      %v2033 = vpop.f32.mrf.mxu0
      %v2034 = vadd.f32 0.0, %v2033
      %v2035 = vpop.f32.mrf.mxu0
      %v2036 = vadd.f32 0.0, %v2035
      %2037 = vmatmul.bf16.gmra.mxu0 %v1997
      %v2038 = vpop.f32.mrf.mxu0
      %v2039 = vadd.f32 0.0, %v2038
      %v2040 = vpop.f32.mrf.mxu0
      %v2041 = vadd.f32 0.0, %v2040
      %2042 = vmatmul.bf16.gmra.mxu0 %v2000
      %v2043 = vpop.f32.mrf.mxu0
      %v2044 = vadd.f32 0.0, %v2043
      %v2045 = vpop.f32.mrf.mxu0
      %v2046 = vadd.f32 0.0, %v2045
      %2047 = vmatmul.bf16.gmra.mxu0 %v2003
      %v2048 = vpop.f32.mrf.mxu0
      %v2049 = vadd.f32 0.0, %v2048
      %v2050 = vpop.f32.mrf.mxu0
      %v2051 = vadd.f32 0.0, %v2050
      %2052 = vmatmul.bf16.gmra.mxu0 %v2006
      %v2053 = vpop.f32.mrf.mxu0
      %v2054 = vadd.f32 0.0, %v2053
      %v2055 = vpop.f32.mrf.mxu0
      %v2056 = vadd.f32 0.0, %v2055
      %2057 = vmatmul.bf16.gmra.mxu0 %v2009
      %v2058 = vpop.f32.mrf.mxu0
      %v2059 = vadd.f32 0.0, %v2058
      %v2060 = vpop.f32.mrf.mxu0
      %v2061 = vadd.f32 0.0, %v2060
      %2062 = vmatmul.bf16.gmra.mxu0 %v2012
      %v2063 = vpop.f32.mrf.mxu0
      %v2064 = vadd.f32 0.0, %v2063
      %v2065 = vpop.f32.mrf.mxu0
      %v2066 = vadd.f32 0.0, %v2065
      %2067 = vdwg.mxu0
      %v2068 = vadd.f32 %v1808, %v2024
      %v2069 = vadd.f32 %v1809, %v2026
      %v2070 = vadd.f32 %v1810, %v2029
      %v2071 = vadd.f32 %v1811, %v2031
      %v2072 = vadd.f32 %v1812, %v2034
      %v2073 = vadd.f32 %v1813, %v2036
      %v2074 = vadd.f32 %v1814, %v2039
      %v2075 = vadd.f32 %v1815, %v2041
      %v2076 = vadd.f32 %v1816, %v2044
      %v2077 = vadd.f32 %v1817, %v2046
      %v2078 = vadd.f32 %v1818, %v2049
      %v2079 = vadd.f32 %v1819, %v2051
      %v2080 = vadd.f32 %v1820, %v2054
      %v2081 = vadd.f32 %v1821, %v2056
      %v2082 = vadd.f32 %v1822, %v2059
      %v2083 = vadd.f32 %v1823, %v2061
      %v2084 = vadd.f32 %v1824, %v2064
      %v2085 = vadd.f32 %v1825, %v2066
      %v2086 = vld [vmem:[#allocation2 + $0x18] sm:$0xf]
      %v2087 = vld [vmem:[#allocation2 + $0x1c] sm:$0xf]
      %v2088 = vld [vmem:[#allocation2 + $0x20] sm:$0xf]
      %v2089 = vld [vmem:[#allocation2 + $0x24] sm:$0xf]
      %v2090 = vld [vmem:[#allocation2 + $0x28] sm:$0xf]
      %v2091 = vld [vmem:[#allocation2 + $0x2c] sm:$0xf]
      %v2092 = vld [vmem:[#allocation2 + $0x30] sm:$0xf]
      %v2093 = vld [vmem:[#allocation2 + $0x34] sm:$0xf]
      %v2094 = vld [vmem:[#allocation2 + $0x38] sm:$0xf]
      %v2095 = vld [vmem:[#allocation2 + $0x3c] sm:$0xf]
      %v2096 = vld [vmem:[#allocation2 + $0x40] sm:$0xf]
      %v2097 = vld [vmem:[#allocation2 + $0x44] sm:$0xf]
      %v2098 = vld [vmem:[#allocation2 + $0x48] sm:$0xf]
      %v2099 = vld [vmem:[#allocation2 + $0x4c] sm:$0xf]
      %v2100 = vld [vmem:[#allocation2 + $0x50] sm:$0xf]
      %v2101 = vld [vmem:[#allocation2 + $0x54] sm:$0xf]
      %v2102 = vld [vmem:[#allocation2 + $0x58] sm:$0xf]
      %v2103 = vld [vmem:[#allocation2 + $0x5c] sm:$0xf]
      %v2104 = vld [vmem:[#allocation2 + $0x60] sm:$0x1]
      %s2105 = scalar_lea.vmem %s2, 96
      %v2106 = vld [vmem:[%s2105] sm:$0xf]
      %v2107 = vld [vmem:[%s2105 + $0x4] sm:$0xf]
      %v2108 = vld [vmem:[%s2105 + $0x8] sm:$0xf]
      %v2109 = vld [vmem:[%s2105 + $0xc] sm:$0xf]
      %v2129 = vunpack.c.l.b16 %v2086
      %v2130 = vunpack.c.l.b16 %v2087
      %v2131 = vunpack.c.l.b16 %v2088
      %v2132 = vunpack.c.l.b16 %v2089
      %v2133 = vunpack.c.l.b16 %v2090
      %v2134 = vunpack.c.l.b16 %v2091
      %v2135 = vunpack.c.l.b16 %v2092
      %v2136 = vunpack.c.l.b16 %v2093
      %v2137 = vunpack.c.l.b16 %v2094
      %v2138 = vunpack.c.l.b16 %v2095
      %v2139 = vunpack.c.l.b16 %v2096
      %v2140 = vunpack.c.l.b16 %v2097
      %v2141 = vunpack.c.l.b16 %v2098
      %v2142 = vunpack.c.l.b16 %v2099
      %v2143 = vunpack.c.l.b16 %v2100
      %v2144 = vunpack.c.l.b16 %v2101
      %v2145 = vunpack.c.l.b16 %v2102
      %v2146 = vunpack.c.l.b16 %v2103
      %v2147 = vunpack.c.l.b16 %v2104
      %v2148 = vpack.c.b16 %v2130, %v2129
      %v2149 = vpack.c.b16 %v2132, %v2131
      %v2150 = vpack.c.b16 %v2134, %v2133
      %v2151 = vpack.c.b16 %v2136, %v2135
      %v2152 = vpack.c.b16 %v2138, %v2137
      %v2153 = vpack.c.b16 %v2140, %v2139
      %v2154 = vpack.c.b16 %v2142, %v2141
      %v2155 = vpack.c.b16 %v2144, %v2143
      %v2156 = vpack.c.b16 %v2146, %v2145
      %v2157 = vpack.c.b16 %v2147, %v2147
      %v2159 = vshrl.u32 %v2148, 16
      %v2161 = vshll.u32 %v2148, 16
      %v2163 = vrot.slane %v2161, 1
      %v2164 = vor.u32 %v2159, %v2163
      %v2166 = vshll.u32 %v2149, 16
      %v2168 = vrot.slane %v2166, 1
      %v2169 = vsel %vm1898, %v2164, %v2168
      %v2170 = vshrl.u32 %v2149, 16
      %v2172 = vor.u32 %v2170, %v2168
      %v2174 = vshll.u32 %v2150, 16
      %v2176 = vrot.slane %v2174, 1
      %v2177 = vsel %vm1898, %v2172, %v2176
      %v2178 = vshrl.u32 %v2150, 16
      %v2180 = vor.u32 %v2178, %v2176
      %v2182 = vshll.u32 %v2151, 16
      %v2184 = vrot.slane %v2182, 1
      %v2185 = vsel %vm1898, %v2180, %v2184
      %v2186 = vshrl.u32 %v2151, 16
      %v2188 = vor.u32 %v2186, %v2184
      %v2190 = vshll.u32 %v2152, 16
      %v2192 = vrot.slane %v2190, 1
      %v2193 = vsel %vm1898, %v2188, %v2192
      %v2194 = vshrl.u32 %v2152, 16
      %v2196 = vor.u32 %v2194, %v2192
      %v2198 = vshll.u32 %v2153, 16
      %v2200 = vrot.slane %v2198, 1
      %v2201 = vsel %vm1898, %v2196, %v2200
      %v2202 = vshrl.u32 %v2153, 16
      %v2204 = vor.u32 %v2202, %v2200
      %v2206 = vshll.u32 %v2154, 16
      %v2208 = vrot.slane %v2206, 1
      %v2209 = vsel %vm1898, %v2204, %v2208
      %v2210 = vshrl.u32 %v2154, 16
      %v2212 = vor.u32 %v2210, %v2208
      %v2214 = vshll.u32 %v2155, 16
      %v2216 = vrot.slane %v2214, 1
      %v2217 = vsel %vm1898, %v2212, %v2216
      %v2218 = vshrl.u32 %v2155, 16
      %v2220 = vor.u32 %v2218, %v2216
      %v2222 = vshll.u32 %v2156, 16
      %v2224 = vrot.slane %v2222, 1
      %v2225 = vsel %vm1898, %v2220, %v2224
      %v2226 = vshrl.u32 %v2156, 16
      %v2228 = vor.u32 %v2226, %v2224
      %v2230 = vshll.u32 %v2157, 16
      %v2232 = vrot.slane %v2230, 1
      %v2233 = vsel %vm1898, %v2228, %v2232
      %v2238 = vunpack.c.l.b16 %v2106
      %v2239 = vunpack.c.l.b16 %v2107
      %v2240 = vunpack.c.l.b16 %v2108
      %v2241 = vunpack.c.l.b16 %v2109
      %v2242 = vpack.c.b16 %v2239, %v2238
      %v2243 = vpack.c.b16 %v2241, %v2240
      %v2247 = vsel %vm657, %v2169, 0
      %v2250 = vsel %vm657, %v2177, 0
      %v2253 = vsel %vm657, %v2185, 0
      %v2256 = vsel %vm657, %v2193, 0
      %v2259 = vsel %vm657, %v2201, 0
      %v2262 = vsel %vm657, %v2209, 0
      %v2265 = vsel %vm657, %v2217, 0
      %v2268 = vsel %vm657, %v2225, 0
      %v2271 = vsel %vm657, %v2233, 0
      %2273 = vmatpush.bf16.msra.mxu0 0
      %2274 = vmatpush.bf16.msra.mxu0 0
      %2275 = vmatpush.bf16.msra.mxu0 0
      %2276 = vmatpush.bf16.msra.mxu0 0
      %2277 = vmatpush.bf16.msra.mxu0 0
      %2278 = vmatpush.bf16.msra.mxu0 0
      %2279 = vmatpush.bf16.msra.mxu0 %v2243
      %2280 = vmatpush.bf16.msra.mxu0 %v2242
      %2281 = vmatmul.bf16.gmra.mxu0 %v2247
      %v2282 = vpop.f32.mrf.mxu0
      %v2283 = vadd.f32 0.0, %v2282
      %v2284 = vpop.f32.mrf.mxu0
      %v2285 = vadd.f32 0.0, %v2284
      %2286 = vmatmul.bf16.gmra.mxu0 %v2250
      %v2287 = vpop.f32.mrf.mxu0
      %v2288 = vadd.f32 0.0, %v2287
      %v2289 = vpop.f32.mrf.mxu0
      %v2290 = vadd.f32 0.0, %v2289
      %2291 = vmatmul.bf16.gmra.mxu0 %v2253
      %v2292 = vpop.f32.mrf.mxu0
      %v2293 = vadd.f32 0.0, %v2292
      %v2294 = vpop.f32.mrf.mxu0
      %v2295 = vadd.f32 0.0, %v2294
      %2296 = vmatmul.bf16.gmra.mxu0 %v2256
      %v2297 = vpop.f32.mrf.mxu0
      %v2298 = vadd.f32 0.0, %v2297
      %v2299 = vpop.f32.mrf.mxu0
      %v2300 = vadd.f32 0.0, %v2299
      %2301 = vmatmul.bf16.gmra.mxu0 %v2259
      %v2302 = vpop.f32.mrf.mxu0
      %v2303 = vadd.f32 0.0, %v2302
      %v2304 = vpop.f32.mrf.mxu0
      %v2305 = vadd.f32 0.0, %v2304
      %2306 = vmatmul.bf16.gmra.mxu0 %v2262
      %v2307 = vpop.f32.mrf.mxu0
      %v2308 = vadd.f32 0.0, %v2307
      %v2309 = vpop.f32.mrf.mxu0
      %v2310 = vadd.f32 0.0, %v2309
      %2311 = vmatmul.bf16.gmra.mxu0 %v2265
      %v2312 = vpop.f32.mrf.mxu0
      %v2313 = vadd.f32 0.0, %v2312
      %v2314 = vpop.f32.mrf.mxu0
      %v2315 = vadd.f32 0.0, %v2314
      %2316 = vmatmul.bf16.gmra.mxu0 %v2268
      %v2317 = vpop.f32.mrf.mxu0
      %v2318 = vadd.f32 0.0, %v2317
      %v2319 = vpop.f32.mrf.mxu0
      %v2320 = vadd.f32 0.0, %v2319
      %2321 = vmatmul.bf16.gmra.mxu0 %v2271
      %v2322 = vpop.f32.mrf.mxu0
      %v2323 = vadd.f32 0.0, %v2322
      %v2324 = vpop.f32.mrf.mxu0
      %v2325 = vadd.f32 0.0, %v2324
      %2326 = vdwg.mxu0
      %v2327 = vadd.f32 %v2068, %v2283
      %v2328 = vadd.f32 %v2069, %v2285
      %v2329 = vadd.f32 %v2070, %v2288
      %v2330 = vadd.f32 %v2071, %v2290
      %v2331 = vadd.f32 %v2072, %v2293
      %v2332 = vadd.f32 %v2073, %v2295
      %v2333 = vadd.f32 %v2074, %v2298
      %v2334 = vadd.f32 %v2075, %v2300
      %v2335 = vadd.f32 %v2076, %v2303
      %v2336 = vadd.f32 %v2077, %v2305
      %v2337 = vadd.f32 %v2078, %v2308
      %v2338 = vadd.f32 %v2079, %v2310
      %v2339 = vadd.f32 %v2080, %v2313
      %v2340 = vadd.f32 %v2081, %v2315
      %v2341 = vadd.f32 %v2082, %v2318
      %v2342 = vadd.f32 %v2083, %v2320
      %v2343 = vadd.f32 %v2084, %v2323
      %v2344 = vadd.f32 %v2085, %v2325
      %v2345 = vld [vmem:[#allocation2 + $0x18] sm:$0xe]
      %s2346 = scalar_lea.vmem %s2, 112
      %v2347 = vld [vmem:[%s2346] sm:$0xf]
      %v2348 = vld [vmem:[%s2346 + $0x4] sm:$0xf]
      %v2349 = vld [vmem:[%s2346 + $0x8] sm:$0xf]
      %v2350 = vld [vmem:[%s2346 + $0xc] sm:$0xf]
      %v2352 = vunpack.c.l.b16 %v2345
      %v2353 = vpack.c.b16 %v2130, %v2352
      %vm2354 = vcmask 1046528
      %v2355 = vrot.slane %v2353, 1
      %v2356 = vrot.slane %v2149, 1
      %v2357 = vsel %vm2354, %v2355, %v2356
      %v2358 = vrot.slane %v2150, 1
      %v2359 = vsel %vm2354, %v2356, %v2358
      %v2360 = vrot.slane %v2151, 1
      %v2361 = vsel %vm2354, %v2358, %v2360
      %v2362 = vrot.slane %v2152, 1
      %v2363 = vsel %vm2354, %v2360, %v2362
      %v2364 = vrot.slane %v2153, 1
      %v2365 = vsel %vm2354, %v2362, %v2364
      %v2366 = vrot.slane %v2154, 1
      %v2367 = vsel %vm2354, %v2364, %v2366
      %v2368 = vrot.slane %v2155, 1
      %v2369 = vsel %vm2354, %v2366, %v2368
      %v2370 = vrot.slane %v2156, 1
      %v2371 = vsel %vm2354, %v2368, %v2370
      %v2372 = vrot.slane %v2157, 1
      %v2373 = vsel %vm2354, %v2370, %v2372
      %v2378 = vunpack.c.l.b16 %v2347
      %v2379 = vunpack.c.l.b16 %v2348
      %v2380 = vunpack.c.l.b16 %v2349
      %v2381 = vunpack.c.l.b16 %v2350
      %v2382 = vpack.c.b16 %v2379, %v2378
      %v2383 = vpack.c.b16 %v2381, %v2380
      %v2387 = vsel %vm657, %v2357, 0
      %v2390 = vsel %vm657, %v2359, 0
      %v2393 = vsel %vm657, %v2361, 0
      %v2396 = vsel %vm657, %v2363, 0
      %v2399 = vsel %vm657, %v2365, 0
      %v2402 = vsel %vm657, %v2367, 0
      %v2405 = vsel %vm657, %v2369, 0
      %v2408 = vsel %vm657, %v2371, 0
      %v2411 = vsel %vm657, %v2373, 0
      %2413 = vmatpush.bf16.msra.mxu0 0
      %2414 = vmatpush.bf16.msra.mxu0 0
      %2415 = vmatpush.bf16.msra.mxu0 0
      %2416 = vmatpush.bf16.msra.mxu0 0
      %2417 = vmatpush.bf16.msra.mxu0 0
      %2418 = vmatpush.bf16.msra.mxu0 0
      %2419 = vmatpush.bf16.msra.mxu0 %v2383
      %2420 = vmatpush.bf16.msra.mxu0 %v2382
      %2421 = vmatmul.bf16.gmra.mxu0 %v2387
      %v2422 = vpop.f32.mrf.mxu0
      %v2423 = vadd.f32 0.0, %v2422
      %v2424 = vpop.f32.mrf.mxu0
      %v2425 = vadd.f32 0.0, %v2424
      %2426 = vmatmul.bf16.gmra.mxu0 %v2390
      %v2427 = vpop.f32.mrf.mxu0
      %v2428 = vadd.f32 0.0, %v2427
      %v2429 = vpop.f32.mrf.mxu0
      %v2430 = vadd.f32 0.0, %v2429
      %2431 = vmatmul.bf16.gmra.mxu0 %v2393
      %v2432 = vpop.f32.mrf.mxu0
      %v2433 = vadd.f32 0.0, %v2432
      %v2434 = vpop.f32.mrf.mxu0
      %v2435 = vadd.f32 0.0, %v2434
      %2436 = vmatmul.bf16.gmra.mxu0 %v2396
      %v2437 = vpop.f32.mrf.mxu0
      %v2438 = vadd.f32 0.0, %v2437
      %v2439 = vpop.f32.mrf.mxu0
      %v2440 = vadd.f32 0.0, %v2439
      %2441 = vmatmul.bf16.gmra.mxu0 %v2399
      %v2442 = vpop.f32.mrf.mxu0
      %v2443 = vadd.f32 0.0, %v2442
      %v2444 = vpop.f32.mrf.mxu0
      %v2445 = vadd.f32 0.0, %v2444
      %2446 = vmatmul.bf16.gmra.mxu0 %v2402
      %v2447 = vpop.f32.mrf.mxu0
      %v2448 = vadd.f32 0.0, %v2447
      %v2449 = vpop.f32.mrf.mxu0
      %v2450 = vadd.f32 0.0, %v2449
      %2451 = vmatmul.bf16.gmra.mxu0 %v2405
      %v2452 = vpop.f32.mrf.mxu0
      %v2453 = vadd.f32 0.0, %v2452
      %v2454 = vpop.f32.mrf.mxu0
      %v2455 = vadd.f32 0.0, %v2454
      %2456 = vmatmul.bf16.gmra.mxu0 %v2408
      %v2457 = vpop.f32.mrf.mxu0
      %v2458 = vadd.f32 0.0, %v2457
      %v2459 = vpop.f32.mrf.mxu0
      %v2460 = vadd.f32 0.0, %v2459
      %2461 = vmatmul.bf16.gmra.mxu0 %v2411
      %v2462 = vpop.f32.mrf.mxu0
      %v2463 = vadd.f32 0.0, %v2462
      %v2464 = vpop.f32.mrf.mxu0
      %v2465 = vadd.f32 0.0, %v2464
      %2466 = vdwg.mxu0
      %v2467 = vadd.f32 %v2327, %v2423
      %v2468 = vadd.f32 %v2328, %v2425
      %v2469 = vadd.f32 %v2329, %v2428
      %v2470 = vadd.f32 %v2330, %v2430
      %v2471 = vadd.f32 %v2331, %v2433
      %v2472 = vadd.f32 %v2332, %v2435
      %v2473 = vadd.f32 %v2333, %v2438
      %v2474 = vadd.f32 %v2334, %v2440
      %v2475 = vadd.f32 %v2335, %v2443
      %v2476 = vadd.f32 %v2336, %v2445
      %v2477 = vadd.f32 %v2337, %v2448
      %v2478 = vadd.f32 %v2338, %v2450
      %v2479 = vadd.f32 %v2339, %v2453
      %v2480 = vadd.f32 %v2340, %v2455
      %v2481 = vadd.f32 %v2341, %v2458
      %v2482 = vadd.f32 %v2342, %v2460
      %v2483 = vadd.f32 %v2343, %v2463
      %v2484 = vadd.f32 %v2344, %v2465
      %v2485 = vld [vmem:[#allocation2 + $0x60] sm:$0x3]
      %s2486 = scalar_lea.vmem %s2, 128
      %v2487 = vld [vmem:[%s2486] sm:$0xf]
      %v2488 = vld [vmem:[%s2486 + $0x4] sm:$0xf]
      %v2489 = vld [vmem:[%s2486 + $0x8] sm:$0xf]
      %v2490 = vld [vmem:[%s2486 + $0xc] sm:$0xf]
      %v2492 = vunpack.c.l.b16 %v2485
      %v2493 = vpack.c.b16 %v2492, %v2492
      %vm2494 = vsmask.f32 6400
      %v2496 = vshrl.u32 %v2353, 16
      %v2498 = vrot.slane %v2496, 1
      %v2499 = vshll.u32 %v2353, 16
      %v2501 = vrot.slane %v2499, 2
      %v2502 = vor.u32 %v2498, %v2501
      %v2503 = vrot.slane %v2170, 1
      %v2504 = vrot.slane %v2166, 2
      %v2505 = vor.u32 %v2503, %v2504
      %v2506 = vsel %vm2494, %v2502, %v2505
      %v2507 = vrot.slane %v2178, 1
      %v2508 = vrot.slane %v2174, 2
      %v2509 = vor.u32 %v2507, %v2508
      %v2510 = vsel %vm2494, %v2505, %v2509
      %v2511 = vrot.slane %v2186, 1
      %v2512 = vrot.slane %v2182, 2
      %v2513 = vor.u32 %v2511, %v2512
      %v2514 = vsel %vm2494, %v2509, %v2513
      %v2515 = vrot.slane %v2194, 1
      %v2516 = vrot.slane %v2190, 2
      %v2517 = vor.u32 %v2515, %v2516
      %v2518 = vsel %vm2494, %v2513, %v2517
      %v2519 = vrot.slane %v2202, 1
      %v2520 = vrot.slane %v2198, 2
      %v2521 = vor.u32 %v2519, %v2520
      %v2522 = vsel %vm2494, %v2517, %v2521
      %v2523 = vrot.slane %v2210, 1
      %v2524 = vrot.slane %v2206, 2
      %v2525 = vor.u32 %v2523, %v2524
      %v2526 = vsel %vm2494, %v2521, %v2525
      %v2527 = vrot.slane %v2218, 1
      %v2528 = vrot.slane %v2214, 2
      %v2529 = vor.u32 %v2527, %v2528
      %v2530 = vsel %vm2494, %v2525, %v2529
      %v2531 = vrot.slane %v2226, 1
      %v2532 = vrot.slane %v2222, 2
      %v2533 = vor.u32 %v2531, %v2532
      %v2534 = vsel %vm2494, %v2529, %v2533
      %v2536 = vshrl.u32 %v2493, 16
      %v2538 = vrot.slane %v2536, 1
      %v2539 = vshll.u32 %v2493, 16
      %v2541 = vrot.slane %v2539, 2
      %v2542 = vor.u32 %v2538, %v2541
      %v2543 = vsel %vm2494, %v2533, %v2542
      %v2548 = vunpack.c.l.b16 %v2487
      %v2549 = vunpack.c.l.b16 %v2488
      %v2550 = vunpack.c.l.b16 %v2489
      %v2551 = vunpack.c.l.b16 %v2490
      %v2552 = vpack.c.b16 %v2549, %v2548
      %v2553 = vpack.c.b16 %v2551, %v2550
      %v2557 = vsel %vm657, %v2506, 0
      %v2560 = vsel %vm657, %v2510, 0
      %v2563 = vsel %vm657, %v2514, 0
      %v2566 = vsel %vm657, %v2518, 0
      %v2569 = vsel %vm657, %v2522, 0
      %v2572 = vsel %vm657, %v2526, 0
      %v2575 = vsel %vm657, %v2530, 0
      %v2578 = vsel %vm657, %v2534, 0
      %v2581 = vsel %vm657, %v2543, 0
      %2583 = vmatpush.bf16.msra.mxu0 0
      %2584 = vmatpush.bf16.msra.mxu0 0
      %2585 = vmatpush.bf16.msra.mxu0 0
      %2586 = vmatpush.bf16.msra.mxu0 0
      %2587 = vmatpush.bf16.msra.mxu0 0
      %2588 = vmatpush.bf16.msra.mxu0 0
      %2589 = vmatpush.bf16.msra.mxu0 %v2553
      %2590 = vmatpush.bf16.msra.mxu0 %v2552
      %2591 = vmatmul.bf16.gmra.mxu0 %v2557
      %v2592 = vpop.f32.mrf.mxu0
      %v2593 = vadd.f32 0.0, %v2592
      %v2594 = vpop.f32.mrf.mxu0
      %v2595 = vadd.f32 0.0, %v2594
      %2596 = vmatmul.bf16.gmra.mxu0 %v2560
      %v2597 = vpop.f32.mrf.mxu0
      %v2598 = vadd.f32 0.0, %v2597
      %v2599 = vpop.f32.mrf.mxu0
      %v2600 = vadd.f32 0.0, %v2599
      %2601 = vmatmul.bf16.gmra.mxu0 %v2563
      %v2602 = vpop.f32.mrf.mxu0
      %v2603 = vadd.f32 0.0, %v2602
      %v2604 = vpop.f32.mrf.mxu0
      %v2605 = vadd.f32 0.0, %v2604
      %2606 = vmatmul.bf16.gmra.mxu0 %v2566
      %v2607 = vpop.f32.mrf.mxu0
      %v2608 = vadd.f32 0.0, %v2607
      %v2609 = vpop.f32.mrf.mxu0
      %v2610 = vadd.f32 0.0, %v2609
      %2611 = vmatmul.bf16.gmra.mxu0 %v2569
      %v2612 = vpop.f32.mrf.mxu0
      %v2613 = vadd.f32 0.0, %v2612
      %v2614 = vpop.f32.mrf.mxu0
      %v2615 = vadd.f32 0.0, %v2614
      %2616 = vmatmul.bf16.gmra.mxu0 %v2572
      %v2617 = vpop.f32.mrf.mxu0
      %v2618 = vadd.f32 0.0, %v2617
      %v2619 = vpop.f32.mrf.mxu0
      %v2620 = vadd.f32 0.0, %v2619
      %2621 = vmatmul.bf16.gmra.mxu0 %v2575
      %v2622 = vpop.f32.mrf.mxu0
      %v2623 = vadd.f32 0.0, %v2622
      %v2624 = vpop.f32.mrf.mxu0
      %v2625 = vadd.f32 0.0, %v2624
      %2626 = vmatmul.bf16.gmra.mxu0 %v2578
      %v2627 = vpop.f32.mrf.mxu0
      %v2628 = vadd.f32 0.0, %v2627
      %v2629 = vpop.f32.mrf.mxu0
      %v2630 = vadd.f32 0.0, %v2629
      %2631 = vmatmul.bf16.gmra.mxu0 %v2581
      %v2632 = vpop.f32.mrf.mxu0
      %v2633 = vadd.f32 0.0, %v2632
      %v2634 = vpop.f32.mrf.mxu0
      %v2635 = vadd.f32 0.0, %v2634
      %2636 = vdwg.mxu0
      %v2637 = vadd.f32 %v2467, %v2593
      %v2638 = vadd.f32 %v2468, %v2595
      %v2639 = vadd.f32 %v2469, %v2598
      %v2640 = vadd.f32 %v2470, %v2600
      %v2641 = vadd.f32 %v2471, %v2603
      %v2642 = vadd.f32 %v2472, %v2605
      %v2643 = vadd.f32 %v2473, %v2608
      %v2644 = vadd.f32 %v2474, %v2610
      %v2645 = vadd.f32 %v2475, %v2613
      %v2646 = vadd.f32 %v2476, %v2615
      %v2647 = vadd.f32 %v2477, %v2618
      %v2648 = vadd.f32 %v2478, %v2620
      %v2649 = vadd.f32 %v2479, %v2623
      %v2650 = vadd.f32 %v2480, %v2625
      %v2651 = vadd.f32 %v2481, %v2628
      %v2652 = vadd.f32 %v2482, %v2630
      %v2653 = vadd.f32 %v2483, %v2633
      %v2654 = vadd.f32 %v2484, %v2635
      %2655 = vst [vmem:[#allocation4] sm:$0xff] %v2637
      %2656 = vst [vmem:[#allocation4 + $0x8] sm:$0xff] %v2638
      %2657 = vst [vmem:[#allocation4 + $0x10] sm:$0xff] %v2639
      %2658 = vst [vmem:[#allocation4 + $0x18] sm:$0xff] %v2640
      %2659 = vst [vmem:[#allocation4 + $0x20] sm:$0xff] %v2641
      %2660 = vst [vmem:[#allocation4 + $0x28] sm:$0xff] %v2642
      %2661 = vst [vmem:[#allocation4 + $0x30] sm:$0xff] %v2643
      %2662 = vst [vmem:[#allocation4 + $0x38] sm:$0xff] %v2644
      %2663 = vst [vmem:[#allocation4 + $0x40] sm:$0xff] %v2645
      %2664 = vst [vmem:[#allocation4 + $0x48] sm:$0xff] %v2646
      %2665 = vst [vmem:[#allocation4 + $0x50] sm:$0xff] %v2647
      %2666 = vst [vmem:[#allocation4 + $0x58] sm:$0xff] %v2648
      %2667 = vst [vmem:[#allocation4 + $0x60] sm:$0xff] %v2649
      %2668 = vst [vmem:[#allocation4 + $0x68] sm:$0xff] %v2650
      %2669 = vst [vmem:[#allocation4 + $0x70] sm:$0xff] %v2651
      %2670 = vst [vmem:[#allocation4 + $0x78] sm:$0xff] %v2652
      %2671 = vst [vmem:[#allocation4 + $0x80] sm:$0xff] %v2653
      %2672 = vst [vmem:[#allocation4 + $0x88] sm:$0xff] %v2654
      %v2673 = vld [vmem:[%s245 + $0xd8] sm:$0xff]
      %v2674 = vld [vmem:[%s245 + $0xe0] sm:$0xf]
      %v2675 = vld [vmem:[%s245 + $0xe4] sm:$0xff]
      %v2676 = vld [vmem:[%s245 + $0xec] sm:$0xf]
      %v2677 = vld [vmem:[%s245 + $0xf0] sm:$0xff]
      %v2678 = vld [vmem:[%s245 + $0xf8] sm:$0xf]
      %v2679 = vld [vmem:[%s245 + $0xfc] sm:$0xff]
      %v2680 = vld [vmem:[%s245 + $0x104] sm:$0xf]
      %v2681 = vld [vmem:[%s245 + $0x108] sm:$0xff]
      %v2682 = vld [vmem:[%s245 + $0x110] sm:$0xf]
      %v2683 = vld [vmem:[%s245 + $0x114] sm:$0xff]
      %v2684 = vld [vmem:[%s245 + $0x11c] sm:$0xf]
      %v2685 = vld [vmem:[%s245 + $0x120] sm:$0xff]
      %v2686 = vld [vmem:[%s245 + $0x128] sm:$0xf]
      %v2687 = vld [vmem:[%s245 + $0x12c] sm:$0xff]
      %v2688 = vld [vmem:[%s245 + $0x134] sm:$0xf]
      %v2689 = vld [vmem:[%s245 + $0x138] sm:$0xff]
      %v2690 = vld [vmem:[%s245 + $0x140] sm:$0xf]
      %v2691 = vld [vmem:[%s245 + $0x144] sm:$0xff]
      %v2692 = vld [vmem:[%s245 + $0x14c] sm:$0xf]
      %v2693 = vld [vmem:[%s245 + $0x150] sm:$0xff]
      %v2694 = vld [vmem:[%s245 + $0x158] sm:$0xf]
      %v2695 = vld [vmem:[%s245 + $0x15c] sm:$0xff]
      %v2696 = vld [vmem:[%s245 + $0x164] sm:$0xf]
      %v2697 = vld [vmem:[%s245 + $0x168] sm:$0xff]
      %v2698 = vld [vmem:[%s245 + $0x170] sm:$0xf]
      %v2699 = vld [vmem:[%s245 + $0x174] sm:$0xff]
      %v2700 = vld [vmem:[%s245 + $0x17c] sm:$0xf]
      %v2701 = vld [vmem:[%s245 + $0x180] sm:$0xff]
      %v2702 = vld [vmem:[%s245 + $0x188] sm:$0xf]
      %v2703 = vld [vmem:[%s245 + $0x18c] sm:$0xff]
      %v2704 = vld [vmem:[%s245 + $0x194] sm:$0xf]
      %v2705 = vld [vmem:[%s245 + $0x198] sm:$0xff]
      %v2706 = vld [vmem:[%s245 + $0x1a0] sm:$0xf]
      %v2707 = vld [vmem:[%s245 + $0x1a4] sm:$0xff]
      %v2708 = vld [vmem:[%s245 + $0x1ac] sm:$0xf]
      %v2709 = vld [vmem:[%s1] sm:$0xf]
      %v2710 = vld [vmem:[%s1 + $0x4] sm:$0xf]
      %v2711 = vld [vmem:[%s1 + $0x8] sm:$0xf]
      %v2712 = vld [vmem:[%s1 + $0xc] sm:$0xf]
      %v2713 = vld [vmem:[%s1 + $0x10] sm:$0xf]
      %v2714 = vld [vmem:[%s1 + $0x14] sm:$0xf]
      %v2715 = vld [vmem:[%s1 + $0x18] sm:$0xf]
      %v2716 = vld [vmem:[%s1 + $0x1c] sm:$0xf]
      %v2717 = vld [vmem:[%s1 + $0x20] sm:$0xf]
      %v2718 = vld [vmem:[%s1 + $0x24] sm:$0xf]
      %v2719 = vld [vmem:[%s1 + $0x28] sm:$0xf]
      %v2720 = vld [vmem:[%s1 + $0x2c] sm:$0xf]
      %v2721 = vld [vmem:[%s1 + $0x30] sm:$0xf]
      %v2722 = vld [vmem:[%s1 + $0x34] sm:$0xf]
      %v2723 = vld [vmem:[%s1 + $0x38] sm:$0xf]
      %v2724 = vld [vmem:[%s1 + $0x3c] sm:$0xf]
      %v2725 = vld [vmem:[%s1 + $0x40] sm:$0xf]
      %v2726 = vld [vmem:[%s1 + $0x44] sm:$0xf]
      %v2727 = vld [vmem:[%s1 + $0x48] sm:$0xf]
      %v2728 = vld [vmem:[%s1 + $0x4c] sm:$0xf]
      %v2729 = vld [vmem:[%s1 + $0x50] sm:$0xf]
      %v2730 = vld [vmem:[%s1 + $0x54] sm:$0xf]
      %v2731 = vld [vmem:[%s1 + $0x58] sm:$0xf]
      %v2732 = vld [vmem:[%s1 + $0x5c] sm:$0xf]
      %v2733 = vld [vmem:[%s1 + $0x60] sm:$0xf]
      %v2734 = vld [vmem:[%s1 + $0x64] sm:$0xf]
      %v2735 = vld [vmem:[%s1 + $0x68] sm:$0xf]
      %v2736 = vld [vmem:[%s1 + $0x6c] sm:$0xf]
      %v2737 = vld [vmem:[%s1 + $0x70] sm:$0xf]
      %v2738 = vld [vmem:[%s1 + $0x74] sm:$0xf]
      %v2739 = vld [vmem:[%s1 + $0x78] sm:$0xf]
      %v2740 = vld [vmem:[%s1 + $0x7c] sm:$0xf]
      %v2741 = vld [vmem:[%s1 + $0x80] sm:$0xf]
      %v2742 = vld [vmem:[%s1 + $0x84] sm:$0xf]
      %v2743 = vld [vmem:[%s1 + $0x88] sm:$0xf]
      %v2744 = vld [vmem:[%s1 + $0x8c] sm:$0xf]
      %v2745 = vld [vmem:[%s3] sm:$0x1]
      %v2747 = vperm.slane %v2745, 0
      %v2785 = vunpack.c.l.b16 %v2673
      %v2786 = vunpack.c.h.b16 %v2673
      %v2787 = vunpack.c.l.b16 %v2674
      %v2788 = vunpack.c.l.b16 %v2675
      %v2789 = vunpack.c.h.b16 %v2675
      %v2790 = vunpack.c.l.b16 %v2676
      %v2791 = vunpack.c.l.b16 %v2677
      %v2792 = vunpack.c.h.b16 %v2677
      %v2793 = vunpack.c.l.b16 %v2678
      %v2794 = vunpack.c.l.b16 %v2679
      %v2795 = vunpack.c.h.b16 %v2679
      %v2796 = vunpack.c.l.b16 %v2680
      %v2797 = vunpack.c.l.b16 %v2681
      %v2798 = vunpack.c.h.b16 %v2681
      %v2799 = vunpack.c.l.b16 %v2682
      %v2800 = vunpack.c.l.b16 %v2683
      %v2801 = vunpack.c.h.b16 %v2683
      %v2802 = vunpack.c.l.b16 %v2684
      %v2803 = vunpack.c.l.b16 %v2685
      %v2804 = vunpack.c.h.b16 %v2685
      %v2805 = vunpack.c.l.b16 %v2686
      %v2806 = vunpack.c.l.b16 %v2687
      %v2807 = vunpack.c.h.b16 %v2687
      %v2808 = vunpack.c.l.b16 %v2688
      %v2809 = vunpack.c.l.b16 %v2689
      %v2810 = vunpack.c.h.b16 %v2689
      %v2811 = vunpack.c.l.b16 %v2690
      %v2812 = vunpack.c.l.b16 %v2691
      %v2813 = vunpack.c.h.b16 %v2691
      %v2814 = vunpack.c.l.b16 %v2692
      %v2815 = vunpack.c.l.b16 %v2693
      %v2816 = vunpack.c.h.b16 %v2693
      %v2817 = vunpack.c.l.b16 %v2694
      %v2818 = vunpack.c.l.b16 %v2695
      %v2819 = vunpack.c.h.b16 %v2695
      %v2820 = vunpack.c.l.b16 %v2696
      %v2821 = vunpack.c.l.b16 %v2697
      %v2822 = vunpack.c.h.b16 %v2697
      %v2823 = vunpack.c.l.b16 %v2698
      %v2824 = vunpack.c.l.b16 %v2699
      %v2825 = vunpack.c.h.b16 %v2699
      %v2826 = vunpack.c.l.b16 %v2700
      %v2827 = vunpack.c.l.b16 %v2701
      %v2828 = vunpack.c.h.b16 %v2701
      %v2829 = vunpack.c.l.b16 %v2702
      %v2830 = vunpack.c.l.b16 %v2703
      %v2831 = vunpack.c.h.b16 %v2703
      %v2832 = vunpack.c.l.b16 %v2704
      %v2833 = vunpack.c.l.b16 %v2705
      %v2834 = vunpack.c.h.b16 %v2705
      %v2835 = vunpack.c.l.b16 %v2706
      %v2836 = vunpack.c.l.b16 %v2707
      %v2837 = vunpack.c.h.b16 %v2707
      %v2838 = vunpack.c.l.b16 %v2708
      %v2839 = vpack.c.b16 %v2788, %v2785
      %v2840 = vpack.c.b16 %v2789, %v2786
      %v2841 = vpack.c.b16 %v2790, %v2787
      %v2842 = vpack.c.b16 %v2794, %v2791
      %v2843 = vpack.c.b16 %v2795, %v2792
      %v2844 = vpack.c.b16 %v2796, %v2793
      %v2845 = vpack.c.b16 %v2800, %v2797
      %v2846 = vpack.c.b16 %v2801, %v2798
      %v2847 = vpack.c.b16 %v2802, %v2799
      %v2848 = vpack.c.b16 %v2806, %v2803
      %v2849 = vpack.c.b16 %v2807, %v2804
      %v2850 = vpack.c.b16 %v2808, %v2805
      %v2851 = vpack.c.b16 %v2812, %v2809
      %v2852 = vpack.c.b16 %v2813, %v2810
      %v2853 = vpack.c.b16 %v2814, %v2811
      %v2854 = vpack.c.b16 %v2818, %v2815
      %v2855 = vpack.c.b16 %v2819, %v2816
      %v2856 = vpack.c.b16 %v2820, %v2817
      %v2857 = vpack.c.b16 %v2824, %v2821
      %v2858 = vpack.c.b16 %v2825, %v2822
      %v2859 = vpack.c.b16 %v2826, %v2823
      %v2860 = vpack.c.b16 %v2830, %v2827
      %v2861 = vpack.c.b16 %v2831, %v2828
      %v2862 = vpack.c.b16 %v2832, %v2829
      %v2863 = vpack.c.b16 %v2836, %v2833
      %v2864 = vpack.c.b16 %v2837, %v2834
      %v2865 = vpack.c.b16 %v2838, %v2835
      %v2920 = vunpack.c.l.b16 %v2709
      %v2921 = vunpack.c.l.b16 %v2710
      %v2922 = vunpack.c.l.b16 %v2711
      %v2923 = vunpack.c.l.b16 %v2712
      %v2924 = vunpack.c.l.b16 %v2713
      %v2925 = vunpack.c.l.b16 %v2714
      %v2926 = vunpack.c.l.b16 %v2715
      %v2927 = vunpack.c.l.b16 %v2716
      %v2928 = vunpack.c.l.b16 %v2717
      %v2929 = vunpack.c.l.b16 %v2718
      %v2930 = vunpack.c.l.b16 %v2719
      %v2931 = vunpack.c.l.b16 %v2720
      %v2932 = vunpack.c.l.b16 %v2721
      %v2933 = vunpack.c.l.b16 %v2722
      %v2934 = vunpack.c.l.b16 %v2723
      %v2935 = vunpack.c.l.b16 %v2724
      %v2936 = vunpack.c.l.b16 %v2725
      %v2937 = vunpack.c.l.b16 %v2726
      %v2938 = vunpack.c.l.b16 %v2727
      %v2939 = vunpack.c.l.b16 %v2728
      %v2940 = vunpack.c.l.b16 %v2729
      %v2941 = vunpack.c.l.b16 %v2730
      %v2942 = vunpack.c.l.b16 %v2731
      %v2943 = vunpack.c.l.b16 %v2732
      %v2944 = vunpack.c.l.b16 %v2733
      %v2945 = vunpack.c.l.b16 %v2734
      %v2946 = vunpack.c.l.b16 %v2735
      %v2947 = vunpack.c.l.b16 %v2736
      %v2948 = vunpack.c.l.b16 %v2737
      %v2949 = vunpack.c.l.b16 %v2738
      %v2950 = vunpack.c.l.b16 %v2739
      %v2951 = vunpack.c.l.b16 %v2740
      %v2952 = vunpack.c.l.b16 %v2741
      %v2953 = vunpack.c.l.b16 %v2742
      %v2954 = vunpack.c.l.b16 %v2743
      %v2955 = vunpack.c.l.b16 %v2744
      %v2956 = vpack.c.b16 %v2921, %v2920
      %v2957 = vpack.c.b16 %v2923, %v2922
      %v2958 = vpack.c.b16 %v2925, %v2924
      %v2959 = vpack.c.b16 %v2927, %v2926
      %v2960 = vpack.c.b16 %v2929, %v2928
      %v2961 = vpack.c.b16 %v2931, %v2930
      %v2962 = vpack.c.b16 %v2933, %v2932
      %v2963 = vpack.c.b16 %v2935, %v2934
      %v2964 = vpack.c.b16 %v2937, %v2936
      %v2965 = vpack.c.b16 %v2939, %v2938
      %v2966 = vpack.c.b16 %v2941, %v2940
      %v2967 = vpack.c.b16 %v2943, %v2942
      %v2968 = vpack.c.b16 %v2945, %v2944
      %v2969 = vpack.c.b16 %v2947, %v2946
      %v2970 = vpack.c.b16 %v2949, %v2948
      %v2971 = vpack.c.b16 %v2951, %v2950
      %v2972 = vpack.c.b16 %v2953, %v2952
      %v2973 = vpack.c.b16 %v2955, %v2954
      %v2993 = vsel %vm657, %v2841, 0
      %v2996 = vsel %vm657, %v2844, 0
      %v2999 = vsel %vm657, %v2847, 0
      %v3002 = vsel %vm657, %v2850, 0
      %v3005 = vsel %vm657, %v2853, 0
      %v3008 = vsel %vm657, %v2856, 0
      %v3011 = vsel %vm657, %v2859, 0
      %v3014 = vsel %vm657, %v2862, 0
      %v3017 = vsel %vm657, %v2865, 0
      %3019 = vmatpush.bf16.msra.mxu0 %v2963
      %3020 = vmatpush.bf16.msra.mxu0 %v2962
      %3021 = vmatpush.bf16.msra.mxu0 %v2961
      %3022 = vmatpush.bf16.msra.mxu0 %v2960
      %3023 = vmatpush.bf16.msra.mxu0 %v2959
      %3024 = vmatpush.bf16.msra.mxu0 %v2958
      %3025 = vmatpush.bf16.msra.mxu0 %v2957
      %3026 = vmatpush.bf16.msra.mxu0 %v2956
      %3027 = vmatmul.bf16.gmra.mxu0 %v2839
      %v3028 = vpop.f32.mrf.mxu0
      %v3029 = vadd.f32 %v2747, %v3028
      %v3030 = vpop.f32.mrf.mxu0
      %v3031 = vadd.f32 %v2747, %v3030
      %3032 = vmatmul.bf16.gmra.mxu0 %v2842
      %v3033 = vpop.f32.mrf.mxu0
      %v3034 = vadd.f32 %v2747, %v3033
      %v3035 = vpop.f32.mrf.mxu0
      %v3036 = vadd.f32 %v2747, %v3035
      %3037 = vmatmul.bf16.gmra.mxu0 %v2845
      %v3038 = vpop.f32.mrf.mxu0
      %v3039 = vadd.f32 %v2747, %v3038
      %v3040 = vpop.f32.mrf.mxu0
      %v3041 = vadd.f32 %v2747, %v3040
      %3042 = vmatmul.bf16.gmra.mxu0 %v2848
      %v3043 = vpop.f32.mrf.mxu0
      %v3044 = vadd.f32 %v2747, %v3043
      %v3045 = vpop.f32.mrf.mxu0
      %v3046 = vadd.f32 %v2747, %v3045
      %3047 = vmatmul.bf16.gmra.mxu0 %v2851
      %v3048 = vpop.f32.mrf.mxu0
      %v3049 = vadd.f32 %v2747, %v3048
      %v3050 = vpop.f32.mrf.mxu0
      %v3051 = vadd.f32 %v2747, %v3050
      %3052 = vmatmul.bf16.gmra.mxu0 %v2854
      %v3053 = vpop.f32.mrf.mxu0
      %v3054 = vadd.f32 %v2747, %v3053
      %v3055 = vpop.f32.mrf.mxu0
      %v3056 = vadd.f32 %v2747, %v3055
      %3057 = vmatmul.bf16.gmra.mxu0 %v2857
      %v3058 = vpop.f32.mrf.mxu0
      %v3059 = vadd.f32 %v2747, %v3058
      %v3060 = vpop.f32.mrf.mxu0
      %v3061 = vadd.f32 %v2747, %v3060
      %3062 = vmatmul.bf16.gmra.mxu0 %v2860
      %v3063 = vpop.f32.mrf.mxu0
      %v3064 = vadd.f32 %v2747, %v3063
      %v3065 = vpop.f32.mrf.mxu0
      %v3066 = vadd.f32 %v2747, %v3065
      %3067 = vmatmul.bf16.gmra.mxu0 %v2863
      %v3068 = vpop.f32.mrf.mxu0
      %v3069 = vadd.f32 %v2747, %v3068
      %v3070 = vpop.f32.mrf.mxu0
      %v3071 = vadd.f32 %v2747, %v3070
      %3072 = vdwg.mxu0
      %3073 = vmatpush.bf16.msra.mxu0 %v2971
      %3074 = vmatpush.bf16.msra.mxu0 %v2970
      %3075 = vmatpush.bf16.msra.mxu0 %v2969
      %3076 = vmatpush.bf16.msra.mxu0 %v2968
      %3077 = vmatpush.bf16.msra.mxu0 %v2967
      %3078 = vmatpush.bf16.msra.mxu0 %v2966
      %3079 = vmatpush.bf16.msra.mxu0 %v2965
      %3080 = vmatpush.bf16.msra.mxu0 %v2964
      %3081 = vmatmul.bf16.gmra.mxu0 %v2840
      %v3082 = vpop.f32.mrf.mxu0
      %v3083 = vadd.f32 %v3029, %v3082
      %v3084 = vpop.f32.mrf.mxu0
      %v3085 = vadd.f32 %v3031, %v3084
      %3086 = vmatmul.bf16.gmra.mxu0 %v2843
      %v3087 = vpop.f32.mrf.mxu0
      %v3088 = vadd.f32 %v3034, %v3087
      %v3089 = vpop.f32.mrf.mxu0
      %v3090 = vadd.f32 %v3036, %v3089
      %3091 = vmatmul.bf16.gmra.mxu0 %v2846
      %v3092 = vpop.f32.mrf.mxu0
      %v3093 = vadd.f32 %v3039, %v3092
      %v3094 = vpop.f32.mrf.mxu0
      %v3095 = vadd.f32 %v3041, %v3094
      %3096 = vmatmul.bf16.gmra.mxu0 %v2849
      %v3097 = vpop.f32.mrf.mxu0
      %v3098 = vadd.f32 %v3044, %v3097
      %v3099 = vpop.f32.mrf.mxu0
      %v3100 = vadd.f32 %v3046, %v3099
      %3101 = vmatmul.bf16.gmra.mxu0 %v2852
      %v3102 = vpop.f32.mrf.mxu0
      %v3103 = vadd.f32 %v3049, %v3102
      %v3104 = vpop.f32.mrf.mxu0
      %v3105 = vadd.f32 %v3051, %v3104
      %3106 = vmatmul.bf16.gmra.mxu0 %v2855
      %v3107 = vpop.f32.mrf.mxu0
      %v3108 = vadd.f32 %v3054, %v3107
      %v3109 = vpop.f32.mrf.mxu0
      %v3110 = vadd.f32 %v3056, %v3109
      %3111 = vmatmul.bf16.gmra.mxu0 %v2858
      %v3112 = vpop.f32.mrf.mxu0
      %v3113 = vadd.f32 %v3059, %v3112
      %v3114 = vpop.f32.mrf.mxu0
      %v3115 = vadd.f32 %v3061, %v3114
      %3116 = vmatmul.bf16.gmra.mxu0 %v2861
      %v3117 = vpop.f32.mrf.mxu0
      %v3118 = vadd.f32 %v3064, %v3117
      %v3119 = vpop.f32.mrf.mxu0
      %v3120 = vadd.f32 %v3066, %v3119
      %3121 = vmatmul.bf16.gmra.mxu0 %v2864
      %v3122 = vpop.f32.mrf.mxu0
      %v3123 = vadd.f32 %v3069, %v3122
      %v3124 = vpop.f32.mrf.mxu0
      %v3125 = vadd.f32 %v3071, %v3124
      %3126 = vdwg.mxu0
      %3127 = vmatpush.bf16.msra.mxu0 0
      %3128 = vmatpush.bf16.msra.mxu0 0
      %3129 = vmatpush.bf16.msra.mxu0 0
      %3130 = vmatpush.bf16.msra.mxu0 0
      %3131 = vmatpush.bf16.msra.mxu0 0
      %3132 = vmatpush.bf16.msra.mxu0 0
      %3133 = vmatpush.bf16.msra.mxu0 %v2973
      %3134 = vmatpush.bf16.msra.mxu0 %v2972
      %3135 = vmatmul.bf16.gmra.mxu0 %v2993
      %v3136 = vpop.f32.mrf.mxu0
      %v3137 = vadd.f32 %v3083, %v3136
      %v3138 = vpop.f32.mrf.mxu0
      %v3139 = vadd.f32 %v3085, %v3138
      %3140 = vmatmul.bf16.gmra.mxu0 %v2996
      %v3141 = vpop.f32.mrf.mxu0
      %v3142 = vadd.f32 %v3088, %v3141
      %v3143 = vpop.f32.mrf.mxu0
      %v3144 = vadd.f32 %v3090, %v3143
      %3145 = vmatmul.bf16.gmra.mxu0 %v2999
      %v3146 = vpop.f32.mrf.mxu0
      %v3147 = vadd.f32 %v3093, %v3146
      %v3148 = vpop.f32.mrf.mxu0
      %v3149 = vadd.f32 %v3095, %v3148
      %3150 = vmatmul.bf16.gmra.mxu0 %v3002
      %v3151 = vpop.f32.mrf.mxu0
      %v3152 = vadd.f32 %v3098, %v3151
      %v3153 = vpop.f32.mrf.mxu0
      %v3154 = vadd.f32 %v3100, %v3153
      %3155 = vmatmul.bf16.gmra.mxu0 %v3005
      %v3156 = vpop.f32.mrf.mxu0
      %v3157 = vadd.f32 %v3103, %v3156
      %v3158 = vpop.f32.mrf.mxu0
      %v3159 = vadd.f32 %v3105, %v3158
      %3160 = vmatmul.bf16.gmra.mxu0 %v3008
      %v3161 = vpop.f32.mrf.mxu0
      %v3162 = vadd.f32 %v3108, %v3161
      %v3163 = vpop.f32.mrf.mxu0
      %v3164 = vadd.f32 %v3110, %v3163
      %3165 = vmatmul.bf16.gmra.mxu0 %v3011
      %v3166 = vpop.f32.mrf.mxu0
      %v3167 = vadd.f32 %v3113, %v3166
      %v3168 = vpop.f32.mrf.mxu0
      %v3169 = vadd.f32 %v3115, %v3168
      %3170 = vmatmul.bf16.gmra.mxu0 %v3014
      %v3171 = vpop.f32.mrf.mxu0
      %v3172 = vadd.f32 %v3118, %v3171
      %v3173 = vpop.f32.mrf.mxu0
      %v3174 = vadd.f32 %v3120, %v3173
      %3175 = vmatmul.bf16.gmra.mxu0 %v3017
      %v3176 = vpop.f32.mrf.mxu0
      %v3177 = vadd.f32 %v3123, %v3176
      %v3178 = vpop.f32.mrf.mxu0
      %v3179 = vadd.f32 %v3125, %v3178
      %3180 = vdwg.mxu0
      %v3181 = vld [vmem:[#allocation2 + $0x4c] sm:$0xc]
      %v3182 = vld [vmem:[#allocation2 + $0x50] sm:$0xf]
      %v3183 = vld [vmem:[#allocation2 + $0x54] sm:$0xf]
      %v3184 = vld [vmem:[#allocation2 + $0x58] sm:$0xf]
      %v3185 = vld [vmem:[#allocation2 + $0x5c] sm:$0xf]
      %v3186 = vld [vmem:[#allocation2 + $0x60] sm:$0xf]
      %v3187 = vld [vmem:[#allocation2 + $0x64] sm:$0xf]
      %v3188 = vld [vmem:[#allocation2 + $0x68] sm:$0xf]
      %v3189 = vld [vmem:[#allocation2 + $0x6c] sm:$0xf]
      %v3190 = vld [vmem:[#allocation2 + $0x70] sm:$0xf]
      %v3191 = vld [vmem:[#allocation2 + $0x74] sm:$0xf]
      %v3192 = vld [vmem:[#allocation2 + $0x78] sm:$0xf]
      %v3193 = vld [vmem:[#allocation2 + $0x7c] sm:$0xf]
      %v3194 = vld [vmem:[#allocation2 + $0x80] sm:$0xf]
      %v3195 = vld [vmem:[#allocation2 + $0x84] sm:$0xf]
      %v3196 = vld [vmem:[#allocation2 + $0x88] sm:$0xf]
      %v3197 = vld [vmem:[#allocation2 + $0x8c] sm:$0xf]
      %v3198 = vld [vmem:[#allocation2 + $0x90] sm:$0xf]
      %v3199 = vld [vmem:[#allocation2 + $0x94] sm:$0x7]
      %v3200 = vld [vmem:[%s2] sm:$0xf]
      %v3201 = vld [vmem:[%s2 + $0x4] sm:$0xf]
      %v3202 = vld [vmem:[%s2 + $0x8] sm:$0xf]
      %v3203 = vld [vmem:[%s2 + $0xc] sm:$0xf]
      %v3223 = vunpack.c.l.b16 %v3181
      %v3224 = vunpack.c.l.b16 %v3182
      %v3225 = vunpack.c.l.b16 %v3183
      %v3226 = vunpack.c.l.b16 %v3184
      %v3227 = vunpack.c.l.b16 %v3185
      %v3228 = vunpack.c.l.b16 %v3186
      %v3229 = vunpack.c.l.b16 %v3187
      %v3230 = vunpack.c.l.b16 %v3188
      %v3231 = vunpack.c.l.b16 %v3189
      %v3232 = vunpack.c.l.b16 %v3190
      %v3233 = vunpack.c.l.b16 %v3191
      %v3234 = vunpack.c.l.b16 %v3192
      %v3235 = vunpack.c.l.b16 %v3193
      %v3236 = vunpack.c.l.b16 %v3194
      %v3237 = vunpack.c.l.b16 %v3195
      %v3238 = vunpack.c.l.b16 %v3196
      %v3239 = vunpack.c.l.b16 %v3197
      %v3240 = vunpack.c.l.b16 %v3198
      %v3241 = vunpack.c.l.b16 %v3199
      %v3242 = vpack.c.b16 %v3224, %v3223
      %v3243 = vpack.c.b16 %v3226, %v3225
      %v3244 = vpack.c.b16 %v3228, %v3227
      %v3245 = vpack.c.b16 %v3230, %v3229
      %v3246 = vpack.c.b16 %v3232, %v3231
      %v3247 = vpack.c.b16 %v3234, %v3233
      %v3248 = vpack.c.b16 %v3236, %v3235
      %v3249 = vpack.c.b16 %v3238, %v3237
      %v3250 = vpack.c.b16 %v3240, %v3239
      %v3251 = vpack.c.b16 %v3241, %v3241
      %v3253 = vshrl.u32 %v3242, 16
      %v3255 = vrot.slane %v3253, 2
      %v3256 = vshll.u32 %v3242, 16
      %v3258 = vrot.slane %v3256, 3
      %v3259 = vor.u32 %v3255, %v3258
      %v3261 = vshrl.u32 %v3243, 16
      %v3263 = vrot.slane %v3261, 2
      %v3264 = vshll.u32 %v3243, 16
      %v3266 = vrot.slane %v3264, 3
      %v3267 = vor.u32 %v3263, %v3266
      %v3268 = vsel %vm918, %v3259, %v3267
      %v3270 = vshrl.u32 %v3244, 16
      %v3272 = vrot.slane %v3270, 2
      %v3273 = vshll.u32 %v3244, 16
      %v3275 = vrot.slane %v3273, 3
      %v3276 = vor.u32 %v3272, %v3275
      %v3277 = vsel %vm918, %v3267, %v3276
      %v3279 = vshrl.u32 %v3245, 16
      %v3281 = vrot.slane %v3279, 2
      %v3282 = vshll.u32 %v3245, 16
      %v3284 = vrot.slane %v3282, 3
      %v3285 = vor.u32 %v3281, %v3284
      %v3286 = vsel %vm918, %v3276, %v3285
      %v3288 = vshrl.u32 %v3246, 16
      %v3290 = vrot.slane %v3288, 2
      %v3291 = vshll.u32 %v3246, 16
      %v3293 = vrot.slane %v3291, 3
      %v3294 = vor.u32 %v3290, %v3293
      %v3295 = vsel %vm918, %v3285, %v3294
      %v3297 = vshrl.u32 %v3247, 16
      %v3299 = vrot.slane %v3297, 2
      %v3300 = vshll.u32 %v3247, 16
      %v3302 = vrot.slane %v3300, 3
      %v3303 = vor.u32 %v3299, %v3302
      %v3304 = vsel %vm918, %v3294, %v3303
      %v3306 = vshrl.u32 %v3248, 16
      %v3308 = vrot.slane %v3306, 2
      %v3309 = vshll.u32 %v3248, 16
      %v3311 = vrot.slane %v3309, 3
      %v3312 = vor.u32 %v3308, %v3311
      %v3313 = vsel %vm918, %v3303, %v3312
      %v3315 = vshrl.u32 %v3249, 16
      %v3317 = vrot.slane %v3315, 2
      %v3318 = vshll.u32 %v3249, 16
      %v3320 = vrot.slane %v3318, 3
      %v3321 = vor.u32 %v3317, %v3320
      %v3322 = vsel %vm918, %v3312, %v3321
      %v3324 = vshrl.u32 %v3250, 16
      %v3326 = vrot.slane %v3324, 2
      %v3327 = vshll.u32 %v3250, 16
      %v3329 = vrot.slane %v3327, 3
      %v3330 = vor.u32 %v3326, %v3329
      %v3331 = vsel %vm918, %v3321, %v3330
      %v3333 = vshrl.u32 %v3251, 16
      %v3335 = vrot.slane %v3333, 2
      %v3336 = vshll.u32 %v3251, 16
      %v3338 = vrot.slane %v3336, 3
      %v3339 = vor.u32 %v3335, %v3338
      %v3340 = vsel %vm918, %v3330, %v3339
      %v3345 = vunpack.c.l.b16 %v3200
      %v3346 = vunpack.c.l.b16 %v3201
      %v3347 = vunpack.c.l.b16 %v3202
      %v3348 = vunpack.c.l.b16 %v3203
      %v3349 = vpack.c.b16 %v3346, %v3345
      %v3350 = vpack.c.b16 %v3348, %v3347
      %v3354 = vsel %vm657, %v3268, 0
      %v3357 = vsel %vm657, %v3277, 0
      %v3360 = vsel %vm657, %v3286, 0
      %v3363 = vsel %vm657, %v3295, 0
      %v3366 = vsel %vm657, %v3304, 0
      %v3369 = vsel %vm657, %v3313, 0
      %v3372 = vsel %vm657, %v3322, 0
      %v3375 = vsel %vm657, %v3331, 0
      %v3378 = vsel %vm657, %v3340, 0
      %3380 = vmatpush.bf16.msra.mxu0 0
      %3381 = vmatpush.bf16.msra.mxu0 0
      %3382 = vmatpush.bf16.msra.mxu0 0
      %3383 = vmatpush.bf16.msra.mxu0 0
      %3384 = vmatpush.bf16.msra.mxu0 0
      %3385 = vmatpush.bf16.msra.mxu0 0
      %3386 = vmatpush.bf16.msra.mxu0 %v3350
      %3387 = vmatpush.bf16.msra.mxu0 %v3349
      %3388 = vmatmul.bf16.gmra.mxu0 %v3354
      %v3389 = vpop.f32.mrf.mxu0
      %v3390 = vadd.f32 0.0, %v3389
      %v3391 = vpop.f32.mrf.mxu0
      %v3392 = vadd.f32 0.0, %v3391
      %3393 = vmatmul.bf16.gmra.mxu0 %v3357
      %v3394 = vpop.f32.mrf.mxu0
      %v3395 = vadd.f32 0.0, %v3394
      %v3396 = vpop.f32.mrf.mxu0
      %v3397 = vadd.f32 0.0, %v3396
      %3398 = vmatmul.bf16.gmra.mxu0 %v3360
      %v3399 = vpop.f32.mrf.mxu0
      %v3400 = vadd.f32 0.0, %v3399
      %v3401 = vpop.f32.mrf.mxu0
      %v3402 = vadd.f32 0.0, %v3401
      %3403 = vmatmul.bf16.gmra.mxu0 %v3363
      %v3404 = vpop.f32.mrf.mxu0
      %v3405 = vadd.f32 0.0, %v3404
      %v3406 = vpop.f32.mrf.mxu0
      %v3407 = vadd.f32 0.0, %v3406
      %3408 = vmatmul.bf16.gmra.mxu0 %v3366
      %v3409 = vpop.f32.mrf.mxu0
      %v3410 = vadd.f32 0.0, %v3409
      %v3411 = vpop.f32.mrf.mxu0
      %v3412 = vadd.f32 0.0, %v3411
      %3413 = vmatmul.bf16.gmra.mxu0 %v3369
      %v3414 = vpop.f32.mrf.mxu0
      %v3415 = vadd.f32 0.0, %v3414
      %v3416 = vpop.f32.mrf.mxu0
      %v3417 = vadd.f32 0.0, %v3416
      %3418 = vmatmul.bf16.gmra.mxu0 %v3372
      %v3419 = vpop.f32.mrf.mxu0
      %v3420 = vadd.f32 0.0, %v3419
      %v3421 = vpop.f32.mrf.mxu0
      %v3422 = vadd.f32 0.0, %v3421
      %3423 = vmatmul.bf16.gmra.mxu0 %v3375
      %v3424 = vpop.f32.mrf.mxu0
      %v3425 = vadd.f32 0.0, %v3424
      %v3426 = vpop.f32.mrf.mxu0
      %v3427 = vadd.f32 0.0, %v3426
      %3428 = vmatmul.bf16.gmra.mxu0 %v3378
      %v3429 = vpop.f32.mrf.mxu0
      %v3430 = vadd.f32 0.0, %v3429
      %v3431 = vpop.f32.mrf.mxu0
      %v3432 = vadd.f32 0.0, %v3431
      %3433 = vdwg.mxu0
      %v3434 = vadd.f32 %v3137, %v3390
      %v3435 = vadd.f32 %v3139, %v3392
      %v3436 = vadd.f32 %v3142, %v3395
      %v3437 = vadd.f32 %v3144, %v3397
      %v3438 = vadd.f32 %v3147, %v3400
      %v3439 = vadd.f32 %v3149, %v3402
      %v3440 = vadd.f32 %v3152, %v3405
      %v3441 = vadd.f32 %v3154, %v3407
      %v3442 = vadd.f32 %v3157, %v3410
      %v3443 = vadd.f32 %v3159, %v3412
      %v3444 = vadd.f32 %v3162, %v3415
      %v3445 = vadd.f32 %v3164, %v3417
      %v3446 = vadd.f32 %v3167, %v3420
      %v3447 = vadd.f32 %v3169, %v3422
      %v3448 = vadd.f32 %v3172, %v3425
      %v3449 = vadd.f32 %v3174, %v3427
      %v3450 = vadd.f32 %v3177, %v3430
      %v3451 = vadd.f32 %v3179, %v3432
      %v3452 = vld [vmem:[#allocation2 + $0x4c] sm:$0x8]
      %v3453 = vld [vmem:[%s1120] sm:$0xf]
      %v3454 = vld [vmem:[%s1120 + $0x4] sm:$0xf]
      %v3455 = vld [vmem:[%s1120 + $0x8] sm:$0xf]
      %v3456 = vld [vmem:[%s1120 + $0xc] sm:$0xf]
      %v3458 = vunpack.c.l.b16 %v3452
      %v3459 = vpack.c.b16 %v3224, %v3458
      %v3460 = vrot.slane %v3459, 3
      %v3461 = vrot.slane %v3243, 3
      %v3462 = vsel %vm1128, %v3460, %v3461
      %v3463 = vrot.slane %v3244, 3
      %v3464 = vsel %vm1128, %v3461, %v3463
      %v3465 = vrot.slane %v3245, 3
      %v3466 = vsel %vm1128, %v3463, %v3465
      %v3467 = vrot.slane %v3246, 3
      %v3468 = vsel %vm1128, %v3465, %v3467
      %v3469 = vrot.slane %v3247, 3
      %v3470 = vsel %vm1128, %v3467, %v3469
      %v3471 = vrot.slane %v3248, 3
      %v3472 = vsel %vm1128, %v3469, %v3471
      %v3473 = vrot.slane %v3249, 3
      %v3474 = vsel %vm1128, %v3471, %v3473
      %v3475 = vrot.slane %v3250, 3
      %v3476 = vsel %vm1128, %v3473, %v3475
      %v3477 = vrot.slane %v3251, 3
      %v3478 = vsel %vm1128, %v3475, %v3477
      %v3483 = vunpack.c.l.b16 %v3453
      %v3484 = vunpack.c.l.b16 %v3454
      %v3485 = vunpack.c.l.b16 %v3455
      %v3486 = vunpack.c.l.b16 %v3456
      %v3487 = vpack.c.b16 %v3484, %v3483
      %v3488 = vpack.c.b16 %v3486, %v3485
      %v3492 = vsel %vm657, %v3462, 0
      %v3495 = vsel %vm657, %v3464, 0
      %v3498 = vsel %vm657, %v3466, 0
      %v3501 = vsel %vm657, %v3468, 0
      %v3504 = vsel %vm657, %v3470, 0
      %v3507 = vsel %vm657, %v3472, 0
      %v3510 = vsel %vm657, %v3474, 0
      %v3513 = vsel %vm657, %v3476, 0
      %v3516 = vsel %vm657, %v3478, 0
      %3518 = vmatpush.bf16.msra.mxu0 0
      %3519 = vmatpush.bf16.msra.mxu0 0
      %3520 = vmatpush.bf16.msra.mxu0 0
      %3521 = vmatpush.bf16.msra.mxu0 0
      %3522 = vmatpush.bf16.msra.mxu0 0
      %3523 = vmatpush.bf16.msra.mxu0 0
      %3524 = vmatpush.bf16.msra.mxu0 %v3488
      %3525 = vmatpush.bf16.msra.mxu0 %v3487
      %3526 = vmatmul.bf16.gmra.mxu0 %v3492
      %v3527 = vpop.f32.mrf.mxu0
      %v3528 = vadd.f32 0.0, %v3527
      %v3529 = vpop.f32.mrf.mxu0
      %v3530 = vadd.f32 0.0, %v3529
      %3531 = vmatmul.bf16.gmra.mxu0 %v3495
      %v3532 = vpop.f32.mrf.mxu0
      %v3533 = vadd.f32 0.0, %v3532
      %v3534 = vpop.f32.mrf.mxu0
      %v3535 = vadd.f32 0.0, %v3534
      %3536 = vmatmul.bf16.gmra.mxu0 %v3498
      %v3537 = vpop.f32.mrf.mxu0
      %v3538 = vadd.f32 0.0, %v3537
      %v3539 = vpop.f32.mrf.mxu0
      %v3540 = vadd.f32 0.0, %v3539
      %3541 = vmatmul.bf16.gmra.mxu0 %v3501
      %v3542 = vpop.f32.mrf.mxu0
      %v3543 = vadd.f32 0.0, %v3542
      %v3544 = vpop.f32.mrf.mxu0
      %v3545 = vadd.f32 0.0, %v3544
      %3546 = vmatmul.bf16.gmra.mxu0 %v3504
      %v3547 = vpop.f32.mrf.mxu0
      %v3548 = vadd.f32 0.0, %v3547
      %v3549 = vpop.f32.mrf.mxu0
      %v3550 = vadd.f32 0.0, %v3549
      %3551 = vmatmul.bf16.gmra.mxu0 %v3507
      %v3552 = vpop.f32.mrf.mxu0
      %v3553 = vadd.f32 0.0, %v3552
      %v3554 = vpop.f32.mrf.mxu0
      %v3555 = vadd.f32 0.0, %v3554
      %3556 = vmatmul.bf16.gmra.mxu0 %v3510
      %v3557 = vpop.f32.mrf.mxu0
      %v3558 = vadd.f32 0.0, %v3557
      %v3559 = vpop.f32.mrf.mxu0
      %v3560 = vadd.f32 0.0, %v3559
      %3561 = vmatmul.bf16.gmra.mxu0 %v3513
      %v3562 = vpop.f32.mrf.mxu0
      %v3563 = vadd.f32 0.0, %v3562
      %v3564 = vpop.f32.mrf.mxu0
      %v3565 = vadd.f32 0.0, %v3564
      %3566 = vmatmul.bf16.gmra.mxu0 %v3516
      %v3567 = vpop.f32.mrf.mxu0
      %v3568 = vadd.f32 0.0, %v3567
      %v3569 = vpop.f32.mrf.mxu0
      %v3570 = vadd.f32 0.0, %v3569
      %3571 = vdwg.mxu0
      %v3572 = vadd.f32 %v3434, %v3528
      %v3573 = vadd.f32 %v3435, %v3530
      %v3574 = vadd.f32 %v3436, %v3533
      %v3575 = vadd.f32 %v3437, %v3535
      %v3576 = vadd.f32 %v3438, %v3538
      %v3577 = vadd.f32 %v3439, %v3540
      %v3578 = vadd.f32 %v3440, %v3543
      %v3579 = vadd.f32 %v3441, %v3545
      %v3580 = vadd.f32 %v3442, %v3548
      %v3581 = vadd.f32 %v3443, %v3550
      %v3582 = vadd.f32 %v3444, %v3553
      %v3583 = vadd.f32 %v3445, %v3555
      %v3584 = vadd.f32 %v3446, %v3558
      %v3585 = vadd.f32 %v3447, %v3560
      %v3586 = vadd.f32 %v3448, %v3563
      %v3587 = vadd.f32 %v3449, %v3565
      %v3588 = vadd.f32 %v3450, %v3568
      %v3589 = vadd.f32 %v3451, %v3570
      %v3590 = vld [vmem:[#allocation2 + $0x94] sm:$0xf]
      %v3591 = vld [vmem:[%s1260] sm:$0xf]
      %v3592 = vld [vmem:[%s1260 + $0x4] sm:$0xf]
      %v3593 = vld [vmem:[%s1260 + $0x8] sm:$0xf]
      %v3594 = vld [vmem:[%s1260 + $0xc] sm:$0xf]
      %v3596 = vunpack.c.l.b16 %v3590
      %v3597 = vpack.c.b16 %v3596, %v3596
      %v3599 = vshrl.u32 %v3459, 16
      %v3601 = vrot.slane %v3599, 3
      %v3602 = vshll.u32 %v3459, 16
      %v3604 = vrot.slane %v3602, 4
      %v3605 = vor.u32 %v3601, %v3604
      %v3606 = vrot.slane %v3261, 3
      %v3607 = vrot.slane %v3264, 4
      %v3608 = vor.u32 %v3606, %v3607
      %v3609 = vsel %vm1268, %v3605, %v3608
      %v3610 = vrot.slane %v3270, 3
      %v3611 = vrot.slane %v3273, 4
      %v3612 = vor.u32 %v3610, %v3611
      %v3613 = vsel %vm1268, %v3608, %v3612
      %v3614 = vrot.slane %v3279, 3
      %v3615 = vrot.slane %v3282, 4
      %v3616 = vor.u32 %v3614, %v3615
      %v3617 = vsel %vm1268, %v3612, %v3616
      %v3618 = vrot.slane %v3288, 3
      %v3619 = vrot.slane %v3291, 4
      %v3620 = vor.u32 %v3618, %v3619
      %v3621 = vsel %vm1268, %v3616, %v3620
      %v3622 = vrot.slane %v3297, 3
      %v3623 = vrot.slane %v3300, 4
      %v3624 = vor.u32 %v3622, %v3623
      %v3625 = vsel %vm1268, %v3620, %v3624
      %v3626 = vrot.slane %v3306, 3
      %v3627 = vrot.slane %v3309, 4
      %v3628 = vor.u32 %v3626, %v3627
      %v3629 = vsel %vm1268, %v3624, %v3628
      %v3630 = vrot.slane %v3315, 3
      %v3631 = vrot.slane %v3318, 4
      %v3632 = vor.u32 %v3630, %v3631
      %v3633 = vsel %vm1268, %v3628, %v3632
      %v3634 = vrot.slane %v3324, 3
      %v3635 = vrot.slane %v3327, 4
      %v3636 = vor.u32 %v3634, %v3635
      %v3637 = vsel %vm1268, %v3632, %v3636
      %v3639 = vshrl.u32 %v3597, 16
      %v3641 = vrot.slane %v3639, 3
      %v3642 = vshll.u32 %v3597, 16
      %v3644 = vrot.slane %v3642, 4
      %v3645 = vor.u32 %v3641, %v3644
      %v3646 = vsel %vm1268, %v3636, %v3645
      %v3651 = vunpack.c.l.b16 %v3591
      %v3652 = vunpack.c.l.b16 %v3592
      %v3653 = vunpack.c.l.b16 %v3593
      %v3654 = vunpack.c.l.b16 %v3594
      %v3655 = vpack.c.b16 %v3652, %v3651
      %v3656 = vpack.c.b16 %v3654, %v3653
      %v3660 = vsel %vm657, %v3609, 0
      %v3663 = vsel %vm657, %v3613, 0
      %v3666 = vsel %vm657, %v3617, 0
      %v3669 = vsel %vm657, %v3621, 0
      %v3672 = vsel %vm657, %v3625, 0
      %v3675 = vsel %vm657, %v3629, 0
      %v3678 = vsel %vm657, %v3633, 0
      %v3681 = vsel %vm657, %v3637, 0
      %v3684 = vsel %vm657, %v3646, 0
      %3686 = vmatpush.bf16.msra.mxu0 0
      %3687 = vmatpush.bf16.msra.mxu0 0
      %3688 = vmatpush.bf16.msra.mxu0 0
      %3689 = vmatpush.bf16.msra.mxu0 0
      %3690 = vmatpush.bf16.msra.mxu0 0
      %3691 = vmatpush.bf16.msra.mxu0 0
      %3692 = vmatpush.bf16.msra.mxu0 %v3656
      %3693 = vmatpush.bf16.msra.mxu0 %v3655
      %3694 = vmatmul.bf16.gmra.mxu0 %v3660
      %v3695 = vpop.f32.mrf.mxu0
      %v3696 = vadd.f32 0.0, %v3695
      %v3697 = vpop.f32.mrf.mxu0
      %v3698 = vadd.f32 0.0, %v3697
      %3699 = vmatmul.bf16.gmra.mxu0 %v3663
      %v3700 = vpop.f32.mrf.mxu0
      %v3701 = vadd.f32 0.0, %v3700
      %v3702 = vpop.f32.mrf.mxu0
      %v3703 = vadd.f32 0.0, %v3702
      %3704 = vmatmul.bf16.gmra.mxu0 %v3666
      %v3705 = vpop.f32.mrf.mxu0
      %v3706 = vadd.f32 0.0, %v3705
      %v3707 = vpop.f32.mrf.mxu0
      %v3708 = vadd.f32 0.0, %v3707
      %3709 = vmatmul.bf16.gmra.mxu0 %v3669
      %v3710 = vpop.f32.mrf.mxu0
      %v3711 = vadd.f32 0.0, %v3710
      %v3712 = vpop.f32.mrf.mxu0
      %v3713 = vadd.f32 0.0, %v3712
      %3714 = vmatmul.bf16.gmra.mxu0 %v3672
      %v3715 = vpop.f32.mrf.mxu0
      %v3716 = vadd.f32 0.0, %v3715
      %v3717 = vpop.f32.mrf.mxu0
      %v3718 = vadd.f32 0.0, %v3717
      %3719 = vmatmul.bf16.gmra.mxu0 %v3675
      %v3720 = vpop.f32.mrf.mxu0
      %v3721 = vadd.f32 0.0, %v3720
      %v3722 = vpop.f32.mrf.mxu0
      %v3723 = vadd.f32 0.0, %v3722
      %3724 = vmatmul.bf16.gmra.mxu0 %v3678
      %v3725 = vpop.f32.mrf.mxu0
      %v3726 = vadd.f32 0.0, %v3725
      %v3727 = vpop.f32.mrf.mxu0
      %v3728 = vadd.f32 0.0, %v3727
      %3729 = vmatmul.bf16.gmra.mxu0 %v3681
      %v3730 = vpop.f32.mrf.mxu0
      %v3731 = vadd.f32 0.0, %v3730
      %v3732 = vpop.f32.mrf.mxu0
      %v3733 = vadd.f32 0.0, %v3732
      %3734 = vmatmul.bf16.gmra.mxu0 %v3684
      %v3735 = vpop.f32.mrf.mxu0
      %v3736 = vadd.f32 0.0, %v3735
      %v3737 = vpop.f32.mrf.mxu0
      %v3738 = vadd.f32 0.0, %v3737
      %3739 = vdwg.mxu0
      %v3740 = vadd.f32 %v3572, %v3696
      %v3741 = vadd.f32 %v3573, %v3698
      %v3742 = vadd.f32 %v3574, %v3701
      %v3743 = vadd.f32 %v3575, %v3703
      %v3744 = vadd.f32 %v3576, %v3706
      %v3745 = vadd.f32 %v3577, %v3708
      %v3746 = vadd.f32 %v3578, %v3711
      %v3747 = vadd.f32 %v3579, %v3713
      %v3748 = vadd.f32 %v3580, %v3716
      %v3749 = vadd.f32 %v3581, %v3718
      %v3750 = vadd.f32 %v3582, %v3721
      %v3751 = vadd.f32 %v3583, %v3723
      %v3752 = vadd.f32 %v3584, %v3726
      %v3753 = vadd.f32 %v3585, %v3728
      %v3754 = vadd.f32 %v3586, %v3731
      %v3755 = vadd.f32 %v3587, %v3733
      %v3756 = vadd.f32 %v3588, %v3736
      %v3757 = vadd.f32 %v3589, %v3738
      %v3758 = vld [vmem:[#allocation2 + $0x54] sm:$0x8]
      %v3759 = vld [vmem:[#allocation2 + $0x58] sm:$0xf]
      %v3760 = vld [vmem:[#allocation2 + $0x5c] sm:$0xf]
      %v3761 = vld [vmem:[#allocation2 + $0x60] sm:$0xf]
      %v3762 = vld [vmem:[#allocation2 + $0x64] sm:$0xf]
      %v3763 = vld [vmem:[#allocation2 + $0x68] sm:$0xf]
      %v3764 = vld [vmem:[#allocation2 + $0x6c] sm:$0xf]
      %v3765 = vld [vmem:[#allocation2 + $0x70] sm:$0xf]
      %v3766 = vld [vmem:[#allocation2 + $0x74] sm:$0xf]
      %v3767 = vld [vmem:[#allocation2 + $0x78] sm:$0xf]
      %v3768 = vld [vmem:[#allocation2 + $0x7c] sm:$0xf]
      %v3769 = vld [vmem:[#allocation2 + $0x80] sm:$0xf]
      %v3770 = vld [vmem:[#allocation2 + $0x84] sm:$0xf]
      %v3771 = vld [vmem:[#allocation2 + $0x88] sm:$0xf]
      %v3772 = vld [vmem:[#allocation2 + $0x8c] sm:$0xf]
      %v3773 = vld [vmem:[#allocation2 + $0x90] sm:$0xf]
      %v3774 = vld [vmem:[#allocation2 + $0x94] sm:$0xf]
      %v3775 = vld [vmem:[#allocation2 + $0x98] sm:$0xf]
      %v3776 = vld [vmem:[#allocation2 + $0x9c] sm:$0xf]
      %v3777 = vld [vmem:[%s1448] sm:$0xf]
      %v3778 = vld [vmem:[%s1448 + $0x4] sm:$0xf]
      %v3779 = vld [vmem:[%s1448 + $0x8] sm:$0xf]
      %v3780 = vld [vmem:[%s1448 + $0xc] sm:$0xf]
      %v3800 = vunpack.c.l.b16 %v3758
      %v3801 = vunpack.c.l.b16 %v3759
      %v3802 = vunpack.c.l.b16 %v3760
      %v3803 = vunpack.c.l.b16 %v3761
      %v3804 = vunpack.c.l.b16 %v3762
      %v3805 = vunpack.c.l.b16 %v3763
      %v3806 = vunpack.c.l.b16 %v3764
      %v3807 = vunpack.c.l.b16 %v3765
      %v3808 = vunpack.c.l.b16 %v3766
      %v3809 = vunpack.c.l.b16 %v3767
      %v3810 = vunpack.c.l.b16 %v3768
      %v3811 = vunpack.c.l.b16 %v3769
      %v3812 = vunpack.c.l.b16 %v3770
      %v3813 = vunpack.c.l.b16 %v3771
      %v3814 = vunpack.c.l.b16 %v3772
      %v3815 = vunpack.c.l.b16 %v3773
      %v3816 = vunpack.c.l.b16 %v3774
      %v3817 = vunpack.c.l.b16 %v3775
      %v3818 = vunpack.c.l.b16 %v3776
      %v3819 = vpack.c.b16 %v3801, %v3800
      %v3820 = vpack.c.b16 %v3803, %v3802
      %v3821 = vpack.c.b16 %v3805, %v3804
      %v3822 = vpack.c.b16 %v3807, %v3806
      %v3823 = vpack.c.b16 %v3809, %v3808
      %v3824 = vpack.c.b16 %v3811, %v3810
      %v3825 = vpack.c.b16 %v3813, %v3812
      %v3826 = vpack.c.b16 %v3815, %v3814
      %v3827 = vpack.c.b16 %v3817, %v3816
      %v3828 = vpack.c.b16 %v3818, %v3818
      %v3830 = vshrl.u32 %v3819, 16
      %v3832 = vrot.slane %v3830, 3
      %v3833 = vshll.u32 %v3819, 16
      %v3835 = vrot.slane %v3833, 4
      %v3836 = vor.u32 %v3832, %v3835
      %v3838 = vshrl.u32 %v3820, 16
      %v3840 = vrot.slane %v3838, 3
      %v3841 = vshll.u32 %v3820, 16
      %v3843 = vrot.slane %v3841, 4
      %v3844 = vor.u32 %v3840, %v3843
      %v3845 = vsel %vm1268, %v3836, %v3844
      %v3847 = vshrl.u32 %v3821, 16
      %v3849 = vrot.slane %v3847, 3
      %v3850 = vshll.u32 %v3821, 16
      %v3852 = vrot.slane %v3850, 4
      %v3853 = vor.u32 %v3849, %v3852
      %v3854 = vsel %vm1268, %v3844, %v3853
      %v3856 = vshrl.u32 %v3822, 16
      %v3858 = vrot.slane %v3856, 3
      %v3859 = vshll.u32 %v3822, 16
      %v3861 = vrot.slane %v3859, 4
      %v3862 = vor.u32 %v3858, %v3861
      %v3863 = vsel %vm1268, %v3853, %v3862
      %v3865 = vshrl.u32 %v3823, 16
      %v3867 = vrot.slane %v3865, 3
      %v3868 = vshll.u32 %v3823, 16
      %v3870 = vrot.slane %v3868, 4
      %v3871 = vor.u32 %v3867, %v3870
      %v3872 = vsel %vm1268, %v3862, %v3871
      %v3874 = vshrl.u32 %v3824, 16
      %v3876 = vrot.slane %v3874, 3
      %v3877 = vshll.u32 %v3824, 16
      %v3879 = vrot.slane %v3877, 4
      %v3880 = vor.u32 %v3876, %v3879
      %v3881 = vsel %vm1268, %v3871, %v3880
      %v3883 = vshrl.u32 %v3825, 16
      %v3885 = vrot.slane %v3883, 3
      %v3886 = vshll.u32 %v3825, 16
      %v3888 = vrot.slane %v3886, 4
      %v3889 = vor.u32 %v3885, %v3888
      %v3890 = vsel %vm1268, %v3880, %v3889
      %v3892 = vshrl.u32 %v3826, 16
      %v3894 = vrot.slane %v3892, 3
      %v3895 = vshll.u32 %v3826, 16
      %v3897 = vrot.slane %v3895, 4
      %v3898 = vor.u32 %v3894, %v3897
      %v3899 = vsel %vm1268, %v3889, %v3898
      %v3901 = vshrl.u32 %v3827, 16
      %v3903 = vrot.slane %v3901, 3
      %v3904 = vshll.u32 %v3827, 16
      %v3906 = vrot.slane %v3904, 4
      %v3907 = vor.u32 %v3903, %v3906
      %v3908 = vsel %vm1268, %v3898, %v3907
      %v3910 = vshrl.u32 %v3828, 16
      %v3912 = vrot.slane %v3910, 3
      %v3913 = vshll.u32 %v3828, 16
      %v3915 = vrot.slane %v3913, 4
      %v3916 = vor.u32 %v3912, %v3915
      %v3917 = vsel %vm1268, %v3907, %v3916
      %v3922 = vunpack.c.l.b16 %v3777
      %v3923 = vunpack.c.l.b16 %v3778
      %v3924 = vunpack.c.l.b16 %v3779
      %v3925 = vunpack.c.l.b16 %v3780
      %v3926 = vpack.c.b16 %v3923, %v3922
      %v3927 = vpack.c.b16 %v3925, %v3924
      %v3931 = vsel %vm657, %v3845, 0
      %v3934 = vsel %vm657, %v3854, 0
      %v3937 = vsel %vm657, %v3863, 0
      %v3940 = vsel %vm657, %v3872, 0
      %v3943 = vsel %vm657, %v3881, 0
      %v3946 = vsel %vm657, %v3890, 0
      %v3949 = vsel %vm657, %v3899, 0
      %v3952 = vsel %vm657, %v3908, 0
      %v3955 = vsel %vm657, %v3917, 0
      %3957 = vmatpush.bf16.msra.mxu0 0
      %3958 = vmatpush.bf16.msra.mxu0 0
      %3959 = vmatpush.bf16.msra.mxu0 0
      %3960 = vmatpush.bf16.msra.mxu0 0
      %3961 = vmatpush.bf16.msra.mxu0 0
      %3962 = vmatpush.bf16.msra.mxu0 0
      %3963 = vmatpush.bf16.msra.mxu0 %v3927
      %3964 = vmatpush.bf16.msra.mxu0 %v3926
      %3965 = vmatmul.bf16.gmra.mxu0 %v3931
      %v3966 = vpop.f32.mrf.mxu0
      %v3967 = vadd.f32 0.0, %v3966
      %v3968 = vpop.f32.mrf.mxu0
      %v3969 = vadd.f32 0.0, %v3968
      %3970 = vmatmul.bf16.gmra.mxu0 %v3934
      %v3971 = vpop.f32.mrf.mxu0
      %v3972 = vadd.f32 0.0, %v3971
      %v3973 = vpop.f32.mrf.mxu0
      %v3974 = vadd.f32 0.0, %v3973
      %3975 = vmatmul.bf16.gmra.mxu0 %v3937
      %v3976 = vpop.f32.mrf.mxu0
      %v3977 = vadd.f32 0.0, %v3976
      %v3978 = vpop.f32.mrf.mxu0
      %v3979 = vadd.f32 0.0, %v3978
      %3980 = vmatmul.bf16.gmra.mxu0 %v3940
      %v3981 = vpop.f32.mrf.mxu0
      %v3982 = vadd.f32 0.0, %v3981
      %v3983 = vpop.f32.mrf.mxu0
      %v3984 = vadd.f32 0.0, %v3983
      %3985 = vmatmul.bf16.gmra.mxu0 %v3943
      %v3986 = vpop.f32.mrf.mxu0
      %v3987 = vadd.f32 0.0, %v3986
      %v3988 = vpop.f32.mrf.mxu0
      %v3989 = vadd.f32 0.0, %v3988
      %3990 = vmatmul.bf16.gmra.mxu0 %v3946
      %v3991 = vpop.f32.mrf.mxu0
      %v3992 = vadd.f32 0.0, %v3991
      %v3993 = vpop.f32.mrf.mxu0
      %v3994 = vadd.f32 0.0, %v3993
      %3995 = vmatmul.bf16.gmra.mxu0 %v3949
      %v3996 = vpop.f32.mrf.mxu0
      %v3997 = vadd.f32 0.0, %v3996
      %v3998 = vpop.f32.mrf.mxu0
      %v3999 = vadd.f32 0.0, %v3998
      %4000 = vmatmul.bf16.gmra.mxu0 %v3952
      %v4001 = vpop.f32.mrf.mxu0
      %v4002 = vadd.f32 0.0, %v4001
      %v4003 = vpop.f32.mrf.mxu0
      %v4004 = vadd.f32 0.0, %v4003
      %4005 = vmatmul.bf16.gmra.mxu0 %v3955
      %v4006 = vpop.f32.mrf.mxu0
      %v4007 = vadd.f32 0.0, %v4006
      %v4008 = vpop.f32.mrf.mxu0
      %v4009 = vadd.f32 0.0, %v4008
      %4010 = vdwg.mxu0
      %v4011 = vadd.f32 %v3740, %v3967
      %v4012 = vadd.f32 %v3741, %v3969
      %v4013 = vadd.f32 %v3742, %v3972
      %v4014 = vadd.f32 %v3743, %v3974
      %v4015 = vadd.f32 %v3744, %v3977
      %v4016 = vadd.f32 %v3745, %v3979
      %v4017 = vadd.f32 %v3746, %v3982
      %v4018 = vadd.f32 %v3747, %v3984
      %v4019 = vadd.f32 %v3748, %v3987
      %v4020 = vadd.f32 %v3749, %v3989
      %v4021 = vadd.f32 %v3750, %v3992
      %v4022 = vadd.f32 %v3751, %v3994
      %v4023 = vadd.f32 %v3752, %v3997
      %v4024 = vadd.f32 %v3753, %v3999
      %v4025 = vadd.f32 %v3754, %v4002
      %v4026 = vadd.f32 %v3755, %v4004
      %v4027 = vadd.f32 %v3756, %v4007
      %v4028 = vadd.f32 %v3757, %v4009
      %v4029 = vld [vmem:[%s1701] sm:$0xf]
      %v4030 = vld [vmem:[%s1701 + $0x4] sm:$0xf]
      %v4031 = vld [vmem:[%s1701 + $0x8] sm:$0xf]
      %v4032 = vld [vmem:[%s1701 + $0xc] sm:$0xf]
      %v4033 = vpack.c.b16 %v3802, %v3801
      %v4034 = vpack.c.b16 %v3804, %v3803
      %v4035 = vpack.c.b16 %v3806, %v3805
      %v4036 = vpack.c.b16 %v3808, %v3807
      %v4037 = vpack.c.b16 %v3810, %v3809
      %v4038 = vpack.c.b16 %v3812, %v3811
      %v4039 = vpack.c.b16 %v3814, %v3813
      %v4040 = vpack.c.b16 %v3816, %v3815
      %v4041 = vpack.c.b16 %v3818, %v3817
      %v4046 = vunpack.c.l.b16 %v4029
      %v4047 = vunpack.c.l.b16 %v4030
      %v4048 = vunpack.c.l.b16 %v4031
      %v4049 = vunpack.c.l.b16 %v4032
      %v4050 = vpack.c.b16 %v4047, %v4046
      %v4051 = vpack.c.b16 %v4049, %v4048
      %v4055 = vsel %vm657, %v4033, 0
      %v4058 = vsel %vm657, %v4034, 0
      %v4061 = vsel %vm657, %v4035, 0
      %v4064 = vsel %vm657, %v4036, 0
      %v4067 = vsel %vm657, %v4037, 0
      %v4070 = vsel %vm657, %v4038, 0
      %v4073 = vsel %vm657, %v4039, 0
      %v4076 = vsel %vm657, %v4040, 0
      %v4079 = vsel %vm657, %v4041, 0
      %4081 = vmatpush.bf16.msra.mxu0 0
      %4082 = vmatpush.bf16.msra.mxu0 0
      %4083 = vmatpush.bf16.msra.mxu0 0
      %4084 = vmatpush.bf16.msra.mxu0 0
      %4085 = vmatpush.bf16.msra.mxu0 0
      %4086 = vmatpush.bf16.msra.mxu0 0
      %4087 = vmatpush.bf16.msra.mxu0 %v4051
      %4088 = vmatpush.bf16.msra.mxu0 %v4050
      %4089 = vmatmul.bf16.gmra.mxu0 %v4055
      %v4090 = vpop.f32.mrf.mxu0
      %v4091 = vadd.f32 0.0, %v4090
      %v4092 = vpop.f32.mrf.mxu0
      %v4093 = vadd.f32 0.0, %v4092
      %4094 = vmatmul.bf16.gmra.mxu0 %v4058
      %v4095 = vpop.f32.mrf.mxu0
      %v4096 = vadd.f32 0.0, %v4095
      %v4097 = vpop.f32.mrf.mxu0
      %v4098 = vadd.f32 0.0, %v4097
      %4099 = vmatmul.bf16.gmra.mxu0 %v4061
      %v4100 = vpop.f32.mrf.mxu0
      %v4101 = vadd.f32 0.0, %v4100
      %v4102 = vpop.f32.mrf.mxu0
      %v4103 = vadd.f32 0.0, %v4102
      %4104 = vmatmul.bf16.gmra.mxu0 %v4064
      %v4105 = vpop.f32.mrf.mxu0
      %v4106 = vadd.f32 0.0, %v4105
      %v4107 = vpop.f32.mrf.mxu0
      %v4108 = vadd.f32 0.0, %v4107
      %4109 = vmatmul.bf16.gmra.mxu0 %v4067
      %v4110 = vpop.f32.mrf.mxu0
      %v4111 = vadd.f32 0.0, %v4110
      %v4112 = vpop.f32.mrf.mxu0
      %v4113 = vadd.f32 0.0, %v4112
      %4114 = vmatmul.bf16.gmra.mxu0 %v4070
      %v4115 = vpop.f32.mrf.mxu0
      %v4116 = vadd.f32 0.0, %v4115
      %v4117 = vpop.f32.mrf.mxu0
      %v4118 = vadd.f32 0.0, %v4117
      %4119 = vmatmul.bf16.gmra.mxu0 %v4073
      %v4120 = vpop.f32.mrf.mxu0
      %v4121 = vadd.f32 0.0, %v4120
      %v4122 = vpop.f32.mrf.mxu0
      %v4123 = vadd.f32 0.0, %v4122
      %4124 = vmatmul.bf16.gmra.mxu0 %v4076
      %v4125 = vpop.f32.mrf.mxu0
      %v4126 = vadd.f32 0.0, %v4125
      %v4127 = vpop.f32.mrf.mxu0
      %v4128 = vadd.f32 0.0, %v4127
      %4129 = vmatmul.bf16.gmra.mxu0 %v4079
      %v4130 = vpop.f32.mrf.mxu0
      %v4131 = vadd.f32 0.0, %v4130
      %v4132 = vpop.f32.mrf.mxu0
      %v4133 = vadd.f32 0.0, %v4132
      %4134 = vdwg.mxu0
      %v4135 = vadd.f32 %v4011, %v4091
      %v4136 = vadd.f32 %v4012, %v4093
      %v4137 = vadd.f32 %v4013, %v4096
      %v4138 = vadd.f32 %v4014, %v4098
      %v4139 = vadd.f32 %v4015, %v4101
      %v4140 = vadd.f32 %v4016, %v4103
      %v4141 = vadd.f32 %v4017, %v4106
      %v4142 = vadd.f32 %v4018, %v4108
      %v4143 = vadd.f32 %v4019, %v4111
      %v4144 = vadd.f32 %v4020, %v4113
      %v4145 = vadd.f32 %v4021, %v4116
      %v4146 = vadd.f32 %v4022, %v4118
      %v4147 = vadd.f32 %v4023, %v4121
      %v4148 = vadd.f32 %v4024, %v4123
      %v4149 = vadd.f32 %v4025, %v4126
      %v4150 = vadd.f32 %v4026, %v4128
      %v4151 = vadd.f32 %v4027, %v4131
      %v4152 = vadd.f32 %v4028, %v4133
      %v4153 = vld [vmem:[#allocation2 + $0x58] sm:$0xf]
      %v4154 = vld [vmem:[#allocation2 + $0x5c] sm:$0xf]
      %v4155 = vld [vmem:[#allocation2 + $0x60] sm:$0xf]
      %v4156 = vld [vmem:[#allocation2 + $0x64] sm:$0xf]
      %v4157 = vld [vmem:[#allocation2 + $0x68] sm:$0xf]
      %v4158 = vld [vmem:[#allocation2 + $0x6c] sm:$0xf]
      %v4159 = vld [vmem:[#allocation2 + $0x70] sm:$0xf]
      %v4160 = vld [vmem:[#allocation2 + $0x74] sm:$0xf]
      %v4161 = vld [vmem:[#allocation2 + $0x78] sm:$0xf]
      %v4162 = vld [vmem:[#allocation2 + $0x7c] sm:$0xf]
      %v4163 = vld [vmem:[#allocation2 + $0x80] sm:$0xf]
      %v4164 = vld [vmem:[#allocation2 + $0x84] sm:$0xf]
      %v4165 = vld [vmem:[#allocation2 + $0x88] sm:$0xf]
      %v4166 = vld [vmem:[#allocation2 + $0x8c] sm:$0xf]
      %v4167 = vld [vmem:[#allocation2 + $0x90] sm:$0xf]
      %v4168 = vld [vmem:[#allocation2 + $0x94] sm:$0xf]
      %v4169 = vld [vmem:[#allocation2 + $0x98] sm:$0xf]
      %v4170 = vld [vmem:[#allocation2 + $0x9c] sm:$0xf]
      %v4171 = vld [vmem:[#allocation2 + $0xa0] sm:$0x1]
      %v4172 = vld [vmem:[%s1845] sm:$0xf]
      %v4173 = vld [vmem:[%s1845 + $0x4] sm:$0xf]
      %v4174 = vld [vmem:[%s1845 + $0x8] sm:$0xf]
      %v4175 = vld [vmem:[%s1845 + $0xc] sm:$0xf]
      %v4195 = vunpack.c.l.b16 %v4153
      %v4196 = vunpack.c.l.b16 %v4154
      %v4197 = vunpack.c.l.b16 %v4155
      %v4198 = vunpack.c.l.b16 %v4156
      %v4199 = vunpack.c.l.b16 %v4157
      %v4200 = vunpack.c.l.b16 %v4158
      %v4201 = vunpack.c.l.b16 %v4159
      %v4202 = vunpack.c.l.b16 %v4160
      %v4203 = vunpack.c.l.b16 %v4161
      %v4204 = vunpack.c.l.b16 %v4162
      %v4205 = vunpack.c.l.b16 %v4163
      %v4206 = vunpack.c.l.b16 %v4164
      %v4207 = vunpack.c.l.b16 %v4165
      %v4208 = vunpack.c.l.b16 %v4166
      %v4209 = vunpack.c.l.b16 %v4167
      %v4210 = vunpack.c.l.b16 %v4168
      %v4211 = vunpack.c.l.b16 %v4169
      %v4212 = vunpack.c.l.b16 %v4170
      %v4213 = vunpack.c.l.b16 %v4171
      %v4214 = vpack.c.b16 %v4196, %v4195
      %v4215 = vpack.c.b16 %v4198, %v4197
      %v4216 = vpack.c.b16 %v4200, %v4199
      %v4217 = vpack.c.b16 %v4202, %v4201
      %v4218 = vpack.c.b16 %v4204, %v4203
      %v4219 = vpack.c.b16 %v4206, %v4205
      %v4220 = vpack.c.b16 %v4208, %v4207
      %v4221 = vpack.c.b16 %v4210, %v4209
      %v4222 = vpack.c.b16 %v4212, %v4211
      %v4223 = vpack.c.b16 %v4213, %v4213
      %v4225 = vshrl.u32 %v4214, 16
      %v4227 = vshll.u32 %v4214, 16
      %v4229 = vrot.slane %v4227, 1
      %v4230 = vor.u32 %v4225, %v4229
      %v4232 = vshll.u32 %v4215, 16
      %v4234 = vrot.slane %v4232, 1
      %v4235 = vsel %vm1898, %v4230, %v4234
      %v4236 = vshrl.u32 %v4215, 16
      %v4238 = vor.u32 %v4236, %v4234
      %v4240 = vshll.u32 %v4216, 16
      %v4242 = vrot.slane %v4240, 1
      %v4243 = vsel %vm1898, %v4238, %v4242
      %v4244 = vshrl.u32 %v4216, 16
      %v4246 = vor.u32 %v4244, %v4242
      %v4248 = vshll.u32 %v4217, 16
      %v4250 = vrot.slane %v4248, 1
      %v4251 = vsel %vm1898, %v4246, %v4250
      %v4252 = vshrl.u32 %v4217, 16
      %v4254 = vor.u32 %v4252, %v4250
      %v4256 = vshll.u32 %v4218, 16
      %v4258 = vrot.slane %v4256, 1
      %v4259 = vsel %vm1898, %v4254, %v4258
      %v4260 = vshrl.u32 %v4218, 16
      %v4262 = vor.u32 %v4260, %v4258
      %v4264 = vshll.u32 %v4219, 16
      %v4266 = vrot.slane %v4264, 1
      %v4267 = vsel %vm1898, %v4262, %v4266
      %v4268 = vshrl.u32 %v4219, 16
      %v4270 = vor.u32 %v4268, %v4266
      %v4272 = vshll.u32 %v4220, 16
      %v4274 = vrot.slane %v4272, 1
      %v4275 = vsel %vm1898, %v4270, %v4274
      %v4276 = vshrl.u32 %v4220, 16
      %v4278 = vor.u32 %v4276, %v4274
      %v4280 = vshll.u32 %v4221, 16
      %v4282 = vrot.slane %v4280, 1
      %v4283 = vsel %vm1898, %v4278, %v4282
      %v4284 = vshrl.u32 %v4221, 16
      %v4286 = vor.u32 %v4284, %v4282
      %v4288 = vshll.u32 %v4222, 16
      %v4290 = vrot.slane %v4288, 1
      %v4291 = vsel %vm1898, %v4286, %v4290
      %v4292 = vshrl.u32 %v4222, 16
      %v4294 = vor.u32 %v4292, %v4290
      %v4296 = vshll.u32 %v4223, 16
      %v4298 = vrot.slane %v4296, 1
      %v4299 = vsel %vm1898, %v4294, %v4298
      %v4304 = vunpack.c.l.b16 %v4172
      %v4305 = vunpack.c.l.b16 %v4173
      %v4306 = vunpack.c.l.b16 %v4174
      %v4307 = vunpack.c.l.b16 %v4175
      %v4308 = vpack.c.b16 %v4305, %v4304
      %v4309 = vpack.c.b16 %v4307, %v4306
      %v4313 = vsel %vm657, %v4235, 0
      %v4316 = vsel %vm657, %v4243, 0
      %v4319 = vsel %vm657, %v4251, 0
      %v4322 = vsel %vm657, %v4259, 0
      %v4325 = vsel %vm657, %v4267, 0
      %v4328 = vsel %vm657, %v4275, 0
      %v4331 = vsel %vm657, %v4283, 0
      %v4334 = vsel %vm657, %v4291, 0
      %v4337 = vsel %vm657, %v4299, 0
      %4339 = vmatpush.bf16.msra.mxu0 0
      %4340 = vmatpush.bf16.msra.mxu0 0
      %4341 = vmatpush.bf16.msra.mxu0 0
      %4342 = vmatpush.bf16.msra.mxu0 0
      %4343 = vmatpush.bf16.msra.mxu0 0
      %4344 = vmatpush.bf16.msra.mxu0 0
      %4345 = vmatpush.bf16.msra.mxu0 %v4309
      %4346 = vmatpush.bf16.msra.mxu0 %v4308
      %4347 = vmatmul.bf16.gmra.mxu0 %v4313
      %v4348 = vpop.f32.mrf.mxu0
      %v4349 = vadd.f32 0.0, %v4348
      %v4350 = vpop.f32.mrf.mxu0
      %v4351 = vadd.f32 0.0, %v4350
      %4352 = vmatmul.bf16.gmra.mxu0 %v4316
      %v4353 = vpop.f32.mrf.mxu0
      %v4354 = vadd.f32 0.0, %v4353
      %v4355 = vpop.f32.mrf.mxu0
      %v4356 = vadd.f32 0.0, %v4355
      %4357 = vmatmul.bf16.gmra.mxu0 %v4319
      %v4358 = vpop.f32.mrf.mxu0
      %v4359 = vadd.f32 0.0, %v4358
      %v4360 = vpop.f32.mrf.mxu0
      %v4361 = vadd.f32 0.0, %v4360
      %4362 = vmatmul.bf16.gmra.mxu0 %v4322
      %v4363 = vpop.f32.mrf.mxu0
      %v4364 = vadd.f32 0.0, %v4363
      %v4365 = vpop.f32.mrf.mxu0
      %v4366 = vadd.f32 0.0, %v4365
      %4367 = vmatmul.bf16.gmra.mxu0 %v4325
      %v4368 = vpop.f32.mrf.mxu0
      %v4369 = vadd.f32 0.0, %v4368
      %v4370 = vpop.f32.mrf.mxu0
      %v4371 = vadd.f32 0.0, %v4370
      %4372 = vmatmul.bf16.gmra.mxu0 %v4328
      %v4373 = vpop.f32.mrf.mxu0
      %v4374 = vadd.f32 0.0, %v4373
      %v4375 = vpop.f32.mrf.mxu0
      %v4376 = vadd.f32 0.0, %v4375
      %4377 = vmatmul.bf16.gmra.mxu0 %v4331
      %v4378 = vpop.f32.mrf.mxu0
      %v4379 = vadd.f32 0.0, %v4378
      %v4380 = vpop.f32.mrf.mxu0
      %v4381 = vadd.f32 0.0, %v4380
      %4382 = vmatmul.bf16.gmra.mxu0 %v4334
      %v4383 = vpop.f32.mrf.mxu0
      %v4384 = vadd.f32 0.0, %v4383
      %v4385 = vpop.f32.mrf.mxu0
      %v4386 = vadd.f32 0.0, %v4385
      %4387 = vmatmul.bf16.gmra.mxu0 %v4337
      %v4388 = vpop.f32.mrf.mxu0
      %v4389 = vadd.f32 0.0, %v4388
      %v4390 = vpop.f32.mrf.mxu0
      %v4391 = vadd.f32 0.0, %v4390
      %4392 = vdwg.mxu0
      %v4393 = vadd.f32 %v4135, %v4349
      %v4394 = vadd.f32 %v4136, %v4351
      %v4395 = vadd.f32 %v4137, %v4354
      %v4396 = vadd.f32 %v4138, %v4356
      %v4397 = vadd.f32 %v4139, %v4359
      %v4398 = vadd.f32 %v4140, %v4361
      %v4399 = vadd.f32 %v4141, %v4364
      %v4400 = vadd.f32 %v4142, %v4366
      %v4401 = vadd.f32 %v4143, %v4369
      %v4402 = vadd.f32 %v4144, %v4371
      %v4403 = vadd.f32 %v4145, %v4374
      %v4404 = vadd.f32 %v4146, %v4376
      %v4405 = vadd.f32 %v4147, %v4379
      %v4406 = vadd.f32 %v4148, %v4381
      %v4407 = vadd.f32 %v4149, %v4384
      %v4408 = vadd.f32 %v4150, %v4386
      %v4409 = vadd.f32 %v4151, %v4389
      %v4410 = vadd.f32 %v4152, %v4391
      %v4411 = vld [vmem:[#allocation2 + $0x60] sm:$0xf]
      %v4412 = vld [vmem:[#allocation2 + $0x64] sm:$0xf]
      %v4413 = vld [vmem:[#allocation2 + $0x68] sm:$0xf]
      %v4414 = vld [vmem:[#allocation2 + $0x6c] sm:$0xf]
      %v4415 = vld [vmem:[#allocation2 + $0x70] sm:$0xf]
      %v4416 = vld [vmem:[#allocation2 + $0x74] sm:$0xf]
      %v4417 = vld [vmem:[#allocation2 + $0x78] sm:$0xf]
      %v4418 = vld [vmem:[#allocation2 + $0x7c] sm:$0xf]
      %v4419 = vld [vmem:[#allocation2 + $0x80] sm:$0xf]
      %v4420 = vld [vmem:[#allocation2 + $0x84] sm:$0xf]
      %v4421 = vld [vmem:[#allocation2 + $0x88] sm:$0xf]
      %v4422 = vld [vmem:[#allocation2 + $0x8c] sm:$0xf]
      %v4423 = vld [vmem:[#allocation2 + $0x90] sm:$0xf]
      %v4424 = vld [vmem:[#allocation2 + $0x94] sm:$0xf]
      %v4425 = vld [vmem:[#allocation2 + $0x98] sm:$0xf]
      %v4426 = vld [vmem:[#allocation2 + $0x9c] sm:$0xf]
      %v4427 = vld [vmem:[#allocation2 + $0xa0] sm:$0xf]
      %v4428 = vld [vmem:[#allocation2 + $0xa4] sm:$0xf]
      %v4429 = vld [vmem:[#allocation2 + $0xa8] sm:$0x1]
      %v4430 = vld [vmem:[%s2105] sm:$0xf]
      %v4431 = vld [vmem:[%s2105 + $0x4] sm:$0xf]
      %v4432 = vld [vmem:[%s2105 + $0x8] sm:$0xf]
      %v4433 = vld [vmem:[%s2105 + $0xc] sm:$0xf]
      %v4453 = vunpack.c.l.b16 %v4411
      %v4454 = vunpack.c.l.b16 %v4412
      %v4455 = vunpack.c.l.b16 %v4413
      %v4456 = vunpack.c.l.b16 %v4414
      %v4457 = vunpack.c.l.b16 %v4415
      %v4458 = vunpack.c.l.b16 %v4416
      %v4459 = vunpack.c.l.b16 %v4417
      %v4460 = vunpack.c.l.b16 %v4418
      %v4461 = vunpack.c.l.b16 %v4419
      %v4462 = vunpack.c.l.b16 %v4420
      %v4463 = vunpack.c.l.b16 %v4421
      %v4464 = vunpack.c.l.b16 %v4422
      %v4465 = vunpack.c.l.b16 %v4423
      %v4466 = vunpack.c.l.b16 %v4424
      %v4467 = vunpack.c.l.b16 %v4425
      %v4468 = vunpack.c.l.b16 %v4426
      %v4469 = vunpack.c.l.b16 %v4427
      %v4470 = vunpack.c.l.b16 %v4428
      %v4471 = vunpack.c.l.b16 %v4429
      %v4472 = vpack.c.b16 %v4454, %v4453
      %v4473 = vpack.c.b16 %v4456, %v4455
      %v4474 = vpack.c.b16 %v4458, %v4457
      %v4475 = vpack.c.b16 %v4460, %v4459
      %v4476 = vpack.c.b16 %v4462, %v4461
      %v4477 = vpack.c.b16 %v4464, %v4463
      %v4478 = vpack.c.b16 %v4466, %v4465
      %v4479 = vpack.c.b16 %v4468, %v4467
      %v4480 = vpack.c.b16 %v4470, %v4469
      %v4481 = vpack.c.b16 %v4471, %v4471
      %v4483 = vshrl.u32 %v4472, 16
      %v4485 = vshll.u32 %v4472, 16
      %v4487 = vrot.slane %v4485, 1
      %v4488 = vor.u32 %v4483, %v4487
      %v4490 = vshll.u32 %v4473, 16
      %v4492 = vrot.slane %v4490, 1
      %v4493 = vsel %vm1898, %v4488, %v4492
      %v4494 = vshrl.u32 %v4473, 16
      %v4496 = vor.u32 %v4494, %v4492
      %v4498 = vshll.u32 %v4474, 16
      %v4500 = vrot.slane %v4498, 1
      %v4501 = vsel %vm1898, %v4496, %v4500
      %v4502 = vshrl.u32 %v4474, 16
      %v4504 = vor.u32 %v4502, %v4500
      %v4506 = vshll.u32 %v4475, 16
      %v4508 = vrot.slane %v4506, 1
      %v4509 = vsel %vm1898, %v4504, %v4508
      %v4510 = vshrl.u32 %v4475, 16
      %v4512 = vor.u32 %v4510, %v4508
      %v4514 = vshll.u32 %v4476, 16
      %v4516 = vrot.slane %v4514, 1
      %v4517 = vsel %vm1898, %v4512, %v4516
      %v4518 = vshrl.u32 %v4476, 16
      %v4520 = vor.u32 %v4518, %v4516
      %v4522 = vshll.u32 %v4477, 16
      %v4524 = vrot.slane %v4522, 1
      %v4525 = vsel %vm1898, %v4520, %v4524
      %v4526 = vshrl.u32 %v4477, 16
      %v4528 = vor.u32 %v4526, %v4524
      %v4530 = vshll.u32 %v4478, 16
      %v4532 = vrot.slane %v4530, 1
      %v4533 = vsel %vm1898, %v4528, %v4532
      %v4534 = vshrl.u32 %v4478, 16
      %v4536 = vor.u32 %v4534, %v4532
      %v4538 = vshll.u32 %v4479, 16
      %v4540 = vrot.slane %v4538, 1
      %v4541 = vsel %vm1898, %v4536, %v4540
      %v4542 = vshrl.u32 %v4479, 16
      %v4544 = vor.u32 %v4542, %v4540
      %v4546 = vshll.u32 %v4480, 16
      %v4548 = vrot.slane %v4546, 1
      %v4549 = vsel %vm1898, %v4544, %v4548
      %v4550 = vshrl.u32 %v4480, 16
      %v4552 = vor.u32 %v4550, %v4548
      %v4554 = vshll.u32 %v4481, 16
      %v4556 = vrot.slane %v4554, 1
      %v4557 = vsel %vm1898, %v4552, %v4556
      %v4562 = vunpack.c.l.b16 %v4430
      %v4563 = vunpack.c.l.b16 %v4431
      %v4564 = vunpack.c.l.b16 %v4432
      %v4565 = vunpack.c.l.b16 %v4433
      %v4566 = vpack.c.b16 %v4563, %v4562
      %v4567 = vpack.c.b16 %v4565, %v4564
      %v4571 = vsel %vm657, %v4493, 0
      %v4574 = vsel %vm657, %v4501, 0
      %v4577 = vsel %vm657, %v4509, 0
      %v4580 = vsel %vm657, %v4517, 0
      %v4583 = vsel %vm657, %v4525, 0
      %v4586 = vsel %vm657, %v4533, 0
      %v4589 = vsel %vm657, %v4541, 0
      %v4592 = vsel %vm657, %v4549, 0
      %v4595 = vsel %vm657, %v4557, 0
      %4597 = vmatpush.bf16.msra.mxu0 0
      %4598 = vmatpush.bf16.msra.mxu0 0
      %4599 = vmatpush.bf16.msra.mxu0 0
      %4600 = vmatpush.bf16.msra.mxu0 0
      %4601 = vmatpush.bf16.msra.mxu0 0
      %4602 = vmatpush.bf16.msra.mxu0 0
      %4603 = vmatpush.bf16.msra.mxu0 %v4567
      %4604 = vmatpush.bf16.msra.mxu0 %v4566
      %4605 = vmatmul.bf16.gmra.mxu0 %v4571
      %v4606 = vpop.f32.mrf.mxu0
      %v4607 = vadd.f32 0.0, %v4606
      %v4608 = vpop.f32.mrf.mxu0
      %v4609 = vadd.f32 0.0, %v4608
      %4610 = vmatmul.bf16.gmra.mxu0 %v4574
      %v4611 = vpop.f32.mrf.mxu0
      %v4612 = vadd.f32 0.0, %v4611
      %v4613 = vpop.f32.mrf.mxu0
      %v4614 = vadd.f32 0.0, %v4613
      %4615 = vmatmul.bf16.gmra.mxu0 %v4577
      %v4616 = vpop.f32.mrf.mxu0
      %v4617 = vadd.f32 0.0, %v4616
      %v4618 = vpop.f32.mrf.mxu0
      %v4619 = vadd.f32 0.0, %v4618
      %4620 = vmatmul.bf16.gmra.mxu0 %v4580
      %v4621 = vpop.f32.mrf.mxu0
      %v4622 = vadd.f32 0.0, %v4621
      %v4623 = vpop.f32.mrf.mxu0
      %v4624 = vadd.f32 0.0, %v4623
      %4625 = vmatmul.bf16.gmra.mxu0 %v4583
      %v4626 = vpop.f32.mrf.mxu0
      %v4627 = vadd.f32 0.0, %v4626
      %v4628 = vpop.f32.mrf.mxu0
      %v4629 = vadd.f32 0.0, %v4628
      %4630 = vmatmul.bf16.gmra.mxu0 %v4586
      %v4631 = vpop.f32.mrf.mxu0
      %v4632 = vadd.f32 0.0, %v4631
      %v4633 = vpop.f32.mrf.mxu0
      %v4634 = vadd.f32 0.0, %v4633
      %4635 = vmatmul.bf16.gmra.mxu0 %v4589
      %v4636 = vpop.f32.mrf.mxu0
      %v4637 = vadd.f32 0.0, %v4636
      %v4638 = vpop.f32.mrf.mxu0
      %v4639 = vadd.f32 0.0, %v4638
      %4640 = vmatmul.bf16.gmra.mxu0 %v4592
      %v4641 = vpop.f32.mrf.mxu0
      %v4642 = vadd.f32 0.0, %v4641
      %v4643 = vpop.f32.mrf.mxu0
      %v4644 = vadd.f32 0.0, %v4643
      %4645 = vmatmul.bf16.gmra.mxu0 %v4595
      %v4646 = vpop.f32.mrf.mxu0
      %v4647 = vadd.f32 0.0, %v4646
      %v4648 = vpop.f32.mrf.mxu0
      %v4649 = vadd.f32 0.0, %v4648
      %4650 = vdwg.mxu0
      %v4651 = vadd.f32 %v4393, %v4607
      %v4652 = vadd.f32 %v4394, %v4609
      %v4653 = vadd.f32 %v4395, %v4612
      %v4654 = vadd.f32 %v4396, %v4614
      %v4655 = vadd.f32 %v4397, %v4617
      %v4656 = vadd.f32 %v4398, %v4619
      %v4657 = vadd.f32 %v4399, %v4622
      %v4658 = vadd.f32 %v4400, %v4624
      %v4659 = vadd.f32 %v4401, %v4627
      %v4660 = vadd.f32 %v4402, %v4629
      %v4661 = vadd.f32 %v4403, %v4632
      %v4662 = vadd.f32 %v4404, %v4634
      %v4663 = vadd.f32 %v4405, %v4637
      %v4664 = vadd.f32 %v4406, %v4639
      %v4665 = vadd.f32 %v4407, %v4642
      %v4666 = vadd.f32 %v4408, %v4644
      %v4667 = vadd.f32 %v4409, %v4647
      %v4668 = vadd.f32 %v4410, %v4649
      %v4669 = vld [vmem:[#allocation2 + $0x60] sm:$0xe]
      %v4670 = vld [vmem:[%s2346] sm:$0xf]
      %v4671 = vld [vmem:[%s2346 + $0x4] sm:$0xf]
      %v4672 = vld [vmem:[%s2346 + $0x8] sm:$0xf]
      %v4673 = vld [vmem:[%s2346 + $0xc] sm:$0xf]
      %v4675 = vunpack.c.l.b16 %v4669
      %v4676 = vpack.c.b16 %v4454, %v4675
      %v4677 = vrot.slane %v4676, 1
      %v4678 = vrot.slane %v4473, 1
      %v4679 = vsel %vm2354, %v4677, %v4678
      %v4680 = vrot.slane %v4474, 1
      %v4681 = vsel %vm2354, %v4678, %v4680
      %v4682 = vrot.slane %v4475, 1
      %v4683 = vsel %vm2354, %v4680, %v4682
      %v4684 = vrot.slane %v4476, 1
      %v4685 = vsel %vm2354, %v4682, %v4684
      %v4686 = vrot.slane %v4477, 1
      %v4687 = vsel %vm2354, %v4684, %v4686
      %v4688 = vrot.slane %v4478, 1
      %v4689 = vsel %vm2354, %v4686, %v4688
      %v4690 = vrot.slane %v4479, 1
      %v4691 = vsel %vm2354, %v4688, %v4690
      %v4692 = vrot.slane %v4480, 1
      %v4693 = vsel %vm2354, %v4690, %v4692
      %v4694 = vrot.slane %v4481, 1
      %v4695 = vsel %vm2354, %v4692, %v4694
      %v4700 = vunpack.c.l.b16 %v4670
      %v4701 = vunpack.c.l.b16 %v4671
      %v4702 = vunpack.c.l.b16 %v4672
      %v4703 = vunpack.c.l.b16 %v4673
      %v4704 = vpack.c.b16 %v4701, %v4700
      %v4705 = vpack.c.b16 %v4703, %v4702
      %v4709 = vsel %vm657, %v4679, 0
      %v4712 = vsel %vm657, %v4681, 0
      %v4715 = vsel %vm657, %v4683, 0
      %v4718 = vsel %vm657, %v4685, 0
      %v4721 = vsel %vm657, %v4687, 0
      %v4724 = vsel %vm657, %v4689, 0
      %v4727 = vsel %vm657, %v4691, 0
      %v4730 = vsel %vm657, %v4693, 0
      %v4733 = vsel %vm657, %v4695, 0
      %4735 = vmatpush.bf16.msra.mxu0 0
      %4736 = vmatpush.bf16.msra.mxu0 0
      %4737 = vmatpush.bf16.msra.mxu0 0
      %4738 = vmatpush.bf16.msra.mxu0 0
      %4739 = vmatpush.bf16.msra.mxu0 0
      %4740 = vmatpush.bf16.msra.mxu0 0
      %4741 = vmatpush.bf16.msra.mxu0 %v4705
      %4742 = vmatpush.bf16.msra.mxu0 %v4704
      %4743 = vmatmul.bf16.gmra.mxu0 %v4709
      %v4744 = vpop.f32.mrf.mxu0
      %v4745 = vadd.f32 0.0, %v4744
      %v4746 = vpop.f32.mrf.mxu0
      %v4747 = vadd.f32 0.0, %v4746
      %4748 = vmatmul.bf16.gmra.mxu0 %v4712
      %v4749 = vpop.f32.mrf.mxu0
      %v4750 = vadd.f32 0.0, %v4749
      %v4751 = vpop.f32.mrf.mxu0
      %v4752 = vadd.f32 0.0, %v4751
      %4753 = vmatmul.bf16.gmra.mxu0 %v4715
      %v4754 = vpop.f32.mrf.mxu0
      %v4755 = vadd.f32 0.0, %v4754
      %v4756 = vpop.f32.mrf.mxu0
      %v4757 = vadd.f32 0.0, %v4756
      %4758 = vmatmul.bf16.gmra.mxu0 %v4718
      %v4759 = vpop.f32.mrf.mxu0
      %v4760 = vadd.f32 0.0, %v4759
      %v4761 = vpop.f32.mrf.mxu0
      %v4762 = vadd.f32 0.0, %v4761
      %4763 = vmatmul.bf16.gmra.mxu0 %v4721
      %v4764 = vpop.f32.mrf.mxu0
      %v4765 = vadd.f32 0.0, %v4764
      %v4766 = vpop.f32.mrf.mxu0
      %v4767 = vadd.f32 0.0, %v4766
      %4768 = vmatmul.bf16.gmra.mxu0 %v4724
      %v4769 = vpop.f32.mrf.mxu0
      %v4770 = vadd.f32 0.0, %v4769
      %v4771 = vpop.f32.mrf.mxu0
      %v4772 = vadd.f32 0.0, %v4771
      %4773 = vmatmul.bf16.gmra.mxu0 %v4727
      %v4774 = vpop.f32.mrf.mxu0
      %v4775 = vadd.f32 0.0, %v4774
      %v4776 = vpop.f32.mrf.mxu0
      %v4777 = vadd.f32 0.0, %v4776
      %4778 = vmatmul.bf16.gmra.mxu0 %v4730
      %v4779 = vpop.f32.mrf.mxu0
      %v4780 = vadd.f32 0.0, %v4779
      %v4781 = vpop.f32.mrf.mxu0
      %v4782 = vadd.f32 0.0, %v4781
      %4783 = vmatmul.bf16.gmra.mxu0 %v4733
      %v4784 = vpop.f32.mrf.mxu0
      %v4785 = vadd.f32 0.0, %v4784
      %v4786 = vpop.f32.mrf.mxu0
      %v4787 = vadd.f32 0.0, %v4786
      %4788 = vdwg.mxu0
      %v4789 = vadd.f32 %v4651, %v4745
      %v4790 = vadd.f32 %v4652, %v4747
      %v4791 = vadd.f32 %v4653, %v4750
      %v4792 = vadd.f32 %v4654, %v4752
      %v4793 = vadd.f32 %v4655, %v4755
      %v4794 = vadd.f32 %v4656, %v4757
      %v4795 = vadd.f32 %v4657, %v4760
      %v4796 = vadd.f32 %v4658, %v4762
      %v4797 = vadd.f32 %v4659, %v4765
      %v4798 = vadd.f32 %v4660, %v4767
      %v4799 = vadd.f32 %v4661, %v4770
      %v4800 = vadd.f32 %v4662, %v4772
      %v4801 = vadd.f32 %v4663, %v4775
      %v4802 = vadd.f32 %v4664, %v4777
      %v4803 = vadd.f32 %v4665, %v4780
      %v4804 = vadd.f32 %v4666, %v4782
      %v4805 = vadd.f32 %v4667, %v4785
      %v4806 = vadd.f32 %v4668, %v4787
      %v4807 = vld [vmem:[#allocation2 + $0xa8] sm:$0x3]
      %v4808 = vld [vmem:[%s2486] sm:$0xf]
      %v4809 = vld [vmem:[%s2486 + $0x4] sm:$0xf]
      %v4810 = vld [vmem:[%s2486 + $0x8] sm:$0xf]
      %v4811 = vld [vmem:[%s2486 + $0xc] sm:$0xf]
      %v4813 = vunpack.c.l.b16 %v4807
      %v4814 = vpack.c.b16 %v4813, %v4813
      %v4816 = vshrl.u32 %v4676, 16
      %v4818 = vrot.slane %v4816, 1
      %v4819 = vshll.u32 %v4676, 16
      %v4821 = vrot.slane %v4819, 2
      %v4822 = vor.u32 %v4818, %v4821
      %v4823 = vrot.slane %v4494, 1
      %v4824 = vrot.slane %v4490, 2
      %v4825 = vor.u32 %v4823, %v4824
      %v4826 = vsel %vm2494, %v4822, %v4825
      %v4827 = vrot.slane %v4502, 1
      %v4828 = vrot.slane %v4498, 2
      %v4829 = vor.u32 %v4827, %v4828
      %v4830 = vsel %vm2494, %v4825, %v4829
      %v4831 = vrot.slane %v4510, 1
      %v4832 = vrot.slane %v4506, 2
      %v4833 = vor.u32 %v4831, %v4832
      %v4834 = vsel %vm2494, %v4829, %v4833
      %v4835 = vrot.slane %v4518, 1
      %v4836 = vrot.slane %v4514, 2
      %v4837 = vor.u32 %v4835, %v4836
      %v4838 = vsel %vm2494, %v4833, %v4837
      %v4839 = vrot.slane %v4526, 1
      %v4840 = vrot.slane %v4522, 2
      %v4841 = vor.u32 %v4839, %v4840
      %v4842 = vsel %vm2494, %v4837, %v4841
      %v4843 = vrot.slane %v4534, 1
      %v4844 = vrot.slane %v4530, 2
      %v4845 = vor.u32 %v4843, %v4844
      %v4846 = vsel %vm2494, %v4841, %v4845
      %v4847 = vrot.slane %v4542, 1
      %v4848 = vrot.slane %v4538, 2
      %v4849 = vor.u32 %v4847, %v4848
      %v4850 = vsel %vm2494, %v4845, %v4849
      %v4851 = vrot.slane %v4550, 1
      %v4852 = vrot.slane %v4546, 2
      %v4853 = vor.u32 %v4851, %v4852
      %v4854 = vsel %vm2494, %v4849, %v4853
      %v4856 = vshrl.u32 %v4814, 16
      %v4858 = vrot.slane %v4856, 1
      %v4859 = vshll.u32 %v4814, 16
      %v4861 = vrot.slane %v4859, 2
      %v4862 = vor.u32 %v4858, %v4861
      %v4863 = vsel %vm2494, %v4853, %v4862
      %v4868 = vunpack.c.l.b16 %v4808
      %v4869 = vunpack.c.l.b16 %v4809
      %v4870 = vunpack.c.l.b16 %v4810
      %v4871 = vunpack.c.l.b16 %v4811
      %v4872 = vpack.c.b16 %v4869, %v4868
      %v4873 = vpack.c.b16 %v4871, %v4870
      %v4877 = vsel %vm657, %v4826, 0
      %v4880 = vsel %vm657, %v4830, 0
      %v4883 = vsel %vm657, %v4834, 0
      %v4886 = vsel %vm657, %v4838, 0
      %v4889 = vsel %vm657, %v4842, 0
      %v4892 = vsel %vm657, %v4846, 0
      %v4895 = vsel %vm657, %v4850, 0
      %v4898 = vsel %vm657, %v4854, 0
      %v4901 = vsel %vm657, %v4863, 0
      %4903 = vmatpush.bf16.msra.mxu0 0
      %4904 = vmatpush.bf16.msra.mxu0 0
      %4905 = vmatpush.bf16.msra.mxu0 0
      %4906 = vmatpush.bf16.msra.mxu0 0
      %4907 = vmatpush.bf16.msra.mxu0 0
      %4908 = vmatpush.bf16.msra.mxu0 0
      %4909 = vmatpush.bf16.msra.mxu0 %v4873
      %4910 = vmatpush.bf16.msra.mxu0 %v4872
      %4911 = vmatmul.bf16.gmra.mxu0 %v4877
      %v4912 = vpop.f32.mrf.mxu0
      %v4913 = vadd.f32 0.0, %v4912
      %v4914 = vpop.f32.mrf.mxu0
      %v4915 = vadd.f32 0.0, %v4914
      %4916 = vmatmul.bf16.gmra.mxu0 %v4880
      %v4917 = vpop.f32.mrf.mxu0
      %v4918 = vadd.f32 0.0, %v4917
      %v4919 = vpop.f32.mrf.mxu0
      %v4920 = vadd.f32 0.0, %v4919
      %4921 = vmatmul.bf16.gmra.mxu0 %v4883
      %v4922 = vpop.f32.mrf.mxu0
      %v4923 = vadd.f32 0.0, %v4922
      %v4924 = vpop.f32.mrf.mxu0
      %v4925 = vadd.f32 0.0, %v4924
      %4926 = vmatmul.bf16.gmra.mxu0 %v4886
      %v4927 = vpop.f32.mrf.mxu0
      %v4928 = vadd.f32 0.0, %v4927
      %v4929 = vpop.f32.mrf.mxu0
      %v4930 = vadd.f32 0.0, %v4929
      %4931 = vmatmul.bf16.gmra.mxu0 %v4889
      %v4932 = vpop.f32.mrf.mxu0
      %v4933 = vadd.f32 0.0, %v4932
      %v4934 = vpop.f32.mrf.mxu0
      %v4935 = vadd.f32 0.0, %v4934
      %4936 = vmatmul.bf16.gmra.mxu0 %v4892
      %v4937 = vpop.f32.mrf.mxu0
      %v4938 = vadd.f32 0.0, %v4937
      %v4939 = vpop.f32.mrf.mxu0
      %v4940 = vadd.f32 0.0, %v4939
      %4941 = vmatmul.bf16.gmra.mxu0 %v4895
      %v4942 = vpop.f32.mrf.mxu0
      %v4943 = vadd.f32 0.0, %v4942
      %v4944 = vpop.f32.mrf.mxu0
      %v4945 = vadd.f32 0.0, %v4944
      %4946 = vmatmul.bf16.gmra.mxu0 %v4898
      %v4947 = vpop.f32.mrf.mxu0
      %v4948 = vadd.f32 0.0, %v4947
      %v4949 = vpop.f32.mrf.mxu0
      %v4950 = vadd.f32 0.0, %v4949
      %4951 = vmatmul.bf16.gmra.mxu0 %v4901
      %v4952 = vpop.f32.mrf.mxu0
      %v4953 = vadd.f32 0.0, %v4952
      %v4954 = vpop.f32.mrf.mxu0
      %v4955 = vadd.f32 0.0, %v4954
      %4956 = vdwg.mxu0
      %v4957 = vadd.f32 %v4789, %v4913
      %v4958 = vadd.f32 %v4790, %v4915
      %v4959 = vadd.f32 %v4791, %v4918
      %v4960 = vadd.f32 %v4792, %v4920
      %v4961 = vadd.f32 %v4793, %v4923
      %v4962 = vadd.f32 %v4794, %v4925
      %v4963 = vadd.f32 %v4795, %v4928
      %v4964 = vadd.f32 %v4796, %v4930
      %v4965 = vadd.f32 %v4797, %v4933
      %v4966 = vadd.f32 %v4798, %v4935
      %v4967 = vadd.f32 %v4799, %v4938
      %v4968 = vadd.f32 %v4800, %v4940
      %v4969 = vadd.f32 %v4801, %v4943
      %v4970 = vadd.f32 %v4802, %v4945
      %v4971 = vadd.f32 %v4803, %v4948
      %v4972 = vadd.f32 %v4804, %v4950
      %v4973 = vadd.f32 %v4805, %v4953
      %v4974 = vadd.f32 %v4806, %v4955
      %4975 = vst [vmem:[#allocation4 + $0x90] sm:$0xff] %v4957
      %4976 = vst [vmem:[#allocation4 + $0x98] sm:$0xff] %v4958
      %4977 = vst [vmem:[#allocation4 + $0xa0] sm:$0xff] %v4959
      %4978 = vst [vmem:[#allocation4 + $0xa8] sm:$0xff] %v4960
      %4979 = vst [vmem:[#allocation4 + $0xb0] sm:$0xff] %v4961
      %4980 = vst [vmem:[#allocation4 + $0xb8] sm:$0xff] %v4962
      %4981 = vst [vmem:[#allocation4 + $0xc0] sm:$0xff] %v4963
      %4982 = vst [vmem:[#allocation4 + $0xc8] sm:$0xff] %v4964
      %4983 = vst [vmem:[#allocation4 + $0xd0] sm:$0xff] %v4965
      %4984 = vst [vmem:[#allocation4 + $0xd8] sm:$0xff] %v4966
      %4985 = vst [vmem:[#allocation4 + $0xe0] sm:$0xff] %v4967
      %4986 = vst [vmem:[#allocation4 + $0xe8] sm:$0xff] %v4968
      %4987 = vst [vmem:[#allocation4 + $0xf0] sm:$0xff] %v4969
      %4988 = vst [vmem:[#allocation4 + $0xf8] sm:$0xff] %v4970
      %4989 = vst [vmem:[#allocation4 + $0x100] sm:$0xff] %v4971
      %4990 = vst [vmem:[#allocation4 + $0x108] sm:$0xff] %v4972
      %4991 = vst [vmem:[#allocation4 + $0x110] sm:$0xff] %v4973
      %4992 = vst [vmem:[#allocation4 + $0x118] sm:$0xff] %v4974
      %p4993 = scmp.eq.s32.totalorder %s21, 3
      loop: start=0, step=1, limit=6
      $region45: #{convlstm_base_forward.1} parent=39 // loop_pre_header
        _
      $region46: #{convlstm_base_forward.1} parent=39 // loop_header
        %s4995 = sphi 0, %s4999
        %p4996 = scmp.ge.s32.totalorder %s4995, 6
      $region47: #{convlstm_base_forward.1} parent=39 // loop_header_branch
        %4998 = sbr.rel (%p4996) target = $region51
      $region48: #{convlstm_base_forward.1} parent=39 // loop_body
        %s5000 = smul.u32 %s4995, 48
        %s5001 = scalar_lea.vmem [#allocation4], %s5000
        %v5002 = vld [vmem:[%s5001] sm:$0xff]
        %v5003 = vld [vmem:[%s5001 + $0x8] sm:$0xff]
        %v5004 = vld [vmem:[%s5001 + $0x10] sm:$0xff]
        %v5005 = vld [vmem:[%s5001 + $0x18] sm:$0xff]
        %v5006 = vld [vmem:[%s5001 + $0x20] sm:$0xff]
        %v5007 = vld [vmem:[%s5001 + $0x28] sm:$0xff]
        %v5008 = vxor.u32 %v5002, 2147483648
        %v5009 = vxor.u32 %v5003, 2147483648
        %v5010 = vxor.u32 %v5004, 2147483648
        %v5011 = vxor.u32 %v5005, 2147483648
        %v5012 = vxor.u32 %v5006, 2147483648
        %v5013 = vxor.u32 %v5007, 2147483648
        %v5014 = vmul.f32 %v5008, 1.442695
        %v5015 = vpow.pop %v5014
        %v5016 = vmul.f32 %v5009, 1.442695
        %v5017 = vpow.pop %v5016
        %v5018 = vmul.f32 %v5010, 1.442695
        %v5019 = vpow.pop %v5018
        %v5020 = vmul.f32 %v5011, 1.442695
        %v5021 = vpow.pop %v5020
        %v5022 = vmul.f32 %v5012, 1.442695
        %v5023 = vpow.pop %v5022
        %v5024 = vmul.f32 %v5013, 1.442695
        %v5025 = vpow.pop %v5024
        %v5026 = vadd.f32 %v5015, 1.0
        %v5027 = vadd.f32 %v5017, 1.0
        %v5028 = vadd.f32 %v5019, 1.0
        %v5029 = vadd.f32 %v5021, 1.0
        %v5030 = vadd.f32 %v5023, 1.0
        %v5031 = vadd.f32 %v5025, 1.0
        %v5032 = vrcp.pop %v5026
        %v5033 = vmul.f32 %v5026, %v5032
        %v5034 = vsub.f32 1.0, %v5033
        %v5035 = vmul.f32 %v5032, %v5034
        %v5036 = vadd.f32 %v5032, %v5035
        %vm5037 = vweird.f32 %v5026
        %vm5038 = vweird.f32 %v5032
        %vm5039 = vmor %vm5037, %vm5038
        %v5040 = vsel %vm5039, %v5032, %v5036
        %v5041 = vand.u32 2147483647, %v5026
        %vm5042 = vcmp.eq.f32.partialorder %v5041, 8.507059e+37
        %v5043 = vand.u32 %v5026, 2147483648
        %v5044 = vor.u32 1.1754944e-38, %v5043
        %v5045 = vsel %vm5042, %v5044, %v5040
        %v5046 = vmul.f32 1.0, %v5045
        %v5047 = vrcp.pop %v5027
        %v5048 = vmul.f32 %v5027, %v5047
        %v5049 = vsub.f32 1.0, %v5048
        %v5050 = vmul.f32 %v5047, %v5049
        %v5051 = vadd.f32 %v5047, %v5050
        %vm5052 = vweird.f32 %v5027
        %vm5053 = vweird.f32 %v5047
        %vm5054 = vmor %vm5052, %vm5053
        %v5055 = vsel %vm5054, %v5047, %v5051
        %v5056 = vand.u32 2147483647, %v5027
        %vm5057 = vcmp.eq.f32.partialorder %v5056, 8.507059e+37
        %v5058 = vand.u32 %v5027, 2147483648
        %v5059 = vor.u32 1.1754944e-38, %v5058
        %v5060 = vsel %vm5057, %v5059, %v5055
        %v5061 = vmul.f32 1.0, %v5060
        %v5062 = vrcp.pop %v5028
        %v5063 = vmul.f32 %v5028, %v5062
        %v5064 = vsub.f32 1.0, %v5063
        %v5065 = vmul.f32 %v5062, %v5064
        %v5066 = vadd.f32 %v5062, %v5065
        %vm5067 = vweird.f32 %v5028
        %vm5068 = vweird.f32 %v5062
        %vm5069 = vmor %vm5067, %vm5068
        %v5070 = vsel %vm5069, %v5062, %v5066
        %v5071 = vand.u32 2147483647, %v5028
        %vm5072 = vcmp.eq.f32.partialorder %v5071, 8.507059e+37
        %v5073 = vand.u32 %v5028, 2147483648
        %v5074 = vor.u32 1.1754944e-38, %v5073
        %v5075 = vsel %vm5072, %v5074, %v5070
        %v5076 = vmul.f32 1.0, %v5075
        %v5077 = vrcp.pop %v5029
        %v5078 = vmul.f32 %v5029, %v5077
        %v5079 = vsub.f32 1.0, %v5078
        %v5080 = vmul.f32 %v5077, %v5079
        %v5081 = vadd.f32 %v5077, %v5080
        %vm5082 = vweird.f32 %v5029
        %vm5083 = vweird.f32 %v5077
        %vm5084 = vmor %vm5082, %vm5083
        %v5085 = vsel %vm5084, %v5077, %v5081
        %v5086 = vand.u32 2147483647, %v5029
        %vm5087 = vcmp.eq.f32.partialorder %v5086, 8.507059e+37
        %v5088 = vand.u32 %v5029, 2147483648
        %v5089 = vor.u32 1.1754944e-38, %v5088
        %v5090 = vsel %vm5087, %v5089, %v5085
        %v5091 = vmul.f32 1.0, %v5090
        %v5092 = vrcp.pop %v5030
        %v5093 = vmul.f32 %v5030, %v5092
        %v5094 = vsub.f32 1.0, %v5093
        %v5095 = vmul.f32 %v5092, %v5094
        %v5096 = vadd.f32 %v5092, %v5095
        %vm5097 = vweird.f32 %v5030
        %vm5098 = vweird.f32 %v5092
        %vm5099 = vmor %vm5097, %vm5098
        %v5100 = vsel %vm5099, %v5092, %v5096
        %v5101 = vand.u32 2147483647, %v5030
        %vm5102 = vcmp.eq.f32.partialorder %v5101, 8.507059e+37
        %v5103 = vand.u32 %v5030, 2147483648
        %v5104 = vor.u32 1.1754944e-38, %v5103
        %v5105 = vsel %vm5102, %v5104, %v5100
        %v5106 = vmul.f32 1.0, %v5105
        %v5107 = vrcp.pop %v5031
        %v5108 = vmul.f32 %v5031, %v5107
        %v5109 = vsub.f32 1.0, %v5108
        %v5110 = vmul.f32 %v5107, %v5109
        %v5111 = vadd.f32 %v5107, %v5110
        %vm5112 = vweird.f32 %v5031
        %vm5113 = vweird.f32 %v5107
        %vm5114 = vmor %vm5112, %vm5113
        %v5115 = vsel %vm5114, %v5107, %v5111
        %v5116 = vand.u32 2147483647, %v5031
        %vm5117 = vcmp.eq.f32.partialorder %v5116, 8.507059e+37
        %v5118 = vand.u32 %v5031, 2147483648
        %v5119 = vor.u32 1.1754944e-38, %v5118
        %v5120 = vsel %vm5117, %v5119, %v5115
        %v5121 = vmul.f32 1.0, %v5120
        %v5122 = vtanh.pop %v5002
        %v5123 = vtanh.pop %v5003
        %v5124 = vtanh.pop %v5004
        %v5125 = vtanh.pop %v5005
        %v5126 = vtanh.pop %v5006
        %v5127 = vtanh.pop %v5007
        %s5128 = scalar_lea.vmem [#allocation3], %s5000
        %v5129 = vld [vmem:[%s5128] sm:$0xff]
        %v5130 = vld [vmem:[%s5128 + $0x8] sm:$0xff]
        %v5131 = vld [vmem:[%s5128 + $0x10] sm:$0xff]
        %v5132 = vld [vmem:[%s5128 + $0x18] sm:$0xff]
        %v5133 = vld [vmem:[%s5128 + $0x20] sm:$0xff]
        %v5134 = vld [vmem:[%s5128 + $0x28] sm:$0xff]
        %5141 = vrot.lane.b32.xlu0 %v5129, 32
        %v5142 = vpop.permute.xlu0 %5141
        %5143 = vrot.lane.b32.xlu0 %v5130, 32
        %v5144 = vpop.permute.xlu0 %5143
        %5145 = vrot.lane.b32.xlu0 %v5131, 32
        %v5146 = vpop.permute.xlu0 %5145
        %5147 = vrot.lane.b32.xlu0 %v5132, 32
        %v5148 = vpop.permute.xlu0 %5147
        %5149 = vrot.lane.b32.xlu0 %v5133, 32
        %v5150 = vpop.permute.xlu0 %5149
        %5151 = vrot.lane.b32.xlu0 %v5134, 32
        %v5152 = vpop.permute.xlu0 %5151
        %v5159 = vmul.f32 %v5046, %v5142
        %v5160 = vmul.f32 %v5061, %v5144
        %v5161 = vmul.f32 %v5076, %v5146
        %v5162 = vmul.f32 %v5091, %v5148
        %v5163 = vmul.f32 %v5106, %v5150
        %v5164 = vmul.f32 %v5121, %v5152
        %5171 = vrot.lane.b32.xlu0 %v5122, 64
        %v5172 = vpop.permute.xlu0 %5171
        %5173 = vrot.lane.b32.xlu0 %v5123, 64
        %v5174 = vpop.permute.xlu0 %5173
        %5175 = vrot.lane.b32.xlu0 %v5124, 64
        %v5176 = vpop.permute.xlu0 %5175
        %5177 = vrot.lane.b32.xlu0 %v5125, 64
        %v5178 = vpop.permute.xlu0 %5177
        %5179 = vrot.lane.b32.xlu0 %v5126, 64
        %v5180 = vpop.permute.xlu0 %5179
        %5181 = vrot.lane.b32.xlu0 %v5127, 64
        %v5182 = vpop.permute.xlu0 %5181
        %v5189 = vmul.f32 %v5046, %v5172
        %v5190 = vmul.f32 %v5061, %v5174
        %v5191 = vmul.f32 %v5076, %v5176
        %v5192 = vmul.f32 %v5091, %v5178
        %v5193 = vmul.f32 %v5106, %v5180
        %v5194 = vmul.f32 %v5121, %v5182
        %5201 = vrot.lane.b32.xlu0 %v5189, 32
        %v5202 = vpop.permute.xlu0 %5201
        %5203 = vrot.lane.b32.xlu0 %v5190, 32
        %v5204 = vpop.permute.xlu0 %5203
        %5205 = vrot.lane.b32.xlu0 %v5191, 32
        %v5206 = vpop.permute.xlu0 %5205
        %5207 = vrot.lane.b32.xlu0 %v5192, 32
        %v5208 = vpop.permute.xlu0 %5207
        %5209 = vrot.lane.b32.xlu0 %v5193, 32
        %v5210 = vpop.permute.xlu0 %5209
        %5211 = vrot.lane.b32.xlu0 %v5194, 32
        %v5212 = vpop.permute.xlu0 %5211
        %v5219 = vadd.f32 %v5159, %v5202
        %v5220 = vadd.f32 %v5160, %v5204
        %v5221 = vadd.f32 %v5161, %v5206
        %v5222 = vadd.f32 %v5162, %v5208
        %v5223 = vadd.f32 %v5163, %v5210
        %v5224 = vadd.f32 %v5164, %v5212
        %5231 = vrot.lane.b32.xlu0 %v5219, 96
        %v5232 = vpop.permute.xlu0 %5231
        %5233 = vrot.lane.b32.xlu0 %v5220, 96
        %v5234 = vpop.permute.xlu0 %5233
        %5235 = vrot.lane.b32.xlu0 %v5221, 96
        %v5236 = vpop.permute.xlu0 %5235
        %5237 = vrot.lane.b32.xlu0 %v5222, 96
        %v5238 = vpop.permute.xlu0 %5237
        %5239 = vrot.lane.b32.xlu0 %v5223, 96
        %v5240 = vpop.permute.xlu0 %5239
        %5241 = vrot.lane.b32.xlu0 %v5224, 96
        %v5242 = vpop.permute.xlu0 %5241
        %5249 = vst.msk [vmem:[%s5128] sm:$0xff] %vm657, %v5232
        %5250 = vst.msk [vmem:[%s5128 + $0x8] sm:$0xff] %vm657, %v5234
        %5251 = vst.msk [vmem:[%s5128 + $0x10] sm:$0xff] %vm657, %v5236
        %5252 = vst.msk [vmem:[%s5128 + $0x18] sm:$0xff] %vm657, %v5238
        %5253 = vst.msk [vmem:[%s5128 + $0x20] sm:$0xff] %vm657, %v5240
        %5254 = vst.msk [vmem:[%s5128 + $0x28] sm:$0xff] %vm657, %v5242
        %v5255 = vtanh.pop %v5219
        %v5256 = vtanh.pop %v5220
        %v5257 = vtanh.pop %v5221
        %v5258 = vtanh.pop %v5222
        %v5259 = vtanh.pop %v5223
        %v5260 = vtanh.pop %v5224
        %5267 = vrot.lane.b32.xlu0 %v5255, 64
        %v5268 = vpop.permute.xlu0 %5267
        %5269 = vrot.lane.b32.xlu0 %v5256, 64
        %v5270 = vpop.permute.xlu0 %5269
        %5271 = vrot.lane.b32.xlu0 %v5257, 64
        %v5272 = vpop.permute.xlu0 %5271
        %5273 = vrot.lane.b32.xlu0 %v5258, 64
        %v5274 = vpop.permute.xlu0 %5273
        %5275 = vrot.lane.b32.xlu0 %v5259, 64
        %v5276 = vpop.permute.xlu0 %5275
        %5277 = vrot.lane.b32.xlu0 %v5260, 64
        %v5278 = vpop.permute.xlu0 %5277
        %v5285 = vmul.f32 %v5046, %v5268
        %v5286 = vmul.f32 %v5061, %v5270
        %v5287 = vmul.f32 %v5076, %v5272
        %v5288 = vmul.f32 %v5091, %v5274
        %v5289 = vmul.f32 %v5106, %v5276
        %v5290 = vmul.f32 %v5121, %v5278
        %s5291 = scalar_lea.vmem %s4, %s5000
        %v5292 = vld [vmem:[%s5291] sm:$0xff]
        %v5293 = vld [vmem:[%s5291 + $0x8] sm:$0xff]
        %v5294 = vld [vmem:[%s5291 + $0x10] sm:$0xff]
        %v5295 = vld [vmem:[%s5291 + $0x18] sm:$0xff]
        %v5296 = vld [vmem:[%s5291 + $0x20] sm:$0xff]
        %v5297 = vld [vmem:[%s5291 + $0x28] sm:$0xff]
        %5304 = vrot.lane.b32.xlu0 %v5292, 96
        %v5305 = vpop.permute.xlu0 %5304
        %5306 = vrot.lane.b32.xlu0 %v5293, 96
        %v5307 = vpop.permute.xlu0 %5306
        %5308 = vrot.lane.b32.xlu0 %v5294, 96
        %v5309 = vpop.permute.xlu0 %5308
        %5310 = vrot.lane.b32.xlu0 %v5295, 96
        %v5311 = vpop.permute.xlu0 %5310
        %5312 = vrot.lane.b32.xlu0 %v5296, 96
        %v5313 = vpop.permute.xlu0 %5312
        %5314 = vrot.lane.b32.xlu0 %v5297, 96
        %v5315 = vpop.permute.xlu0 %5314
        %v5322 = vmul.f32 %v5285, %v5305
        %v5323 = vmul.f32 %v5286, %v5307
        %v5324 = vmul.f32 %v5287, %v5309
        %v5325 = vmul.f32 %v5288, %v5311
        %v5326 = vmul.f32 %v5289, %v5313
        %v5327 = vmul.f32 %v5290, %v5315
        %v5328 = vpack.c.bf16 %v5322, %v5322
        %v5329 = vpack.c.bf16 %v5323, %v5323
        %v5330 = vpack.c.bf16 %v5324, %v5324
        %v5331 = vpack.c.bf16 %v5325, %v5325
        %v5332 = vpack.c.bf16 %v5326, %v5326
        %v5333 = vpack.c.bf16 %v5327, %v5327
        %s5334 = sadd.s32 %s5000, 32
        %5341 = vrot.lane.b32.xlu0 %v5328, 32
        %v5342 = vpop.permute.xlu0 %5341
        %5343 = vrot.lane.b32.xlu0 %v5329, 32
        %v5344 = vpop.permute.xlu0 %5343
        %5345 = vrot.lane.b32.xlu0 %v5330, 32
        %v5346 = vpop.permute.xlu0 %5345
        %5347 = vrot.lane.b32.xlu0 %v5331, 32
        %v5348 = vpop.permute.xlu0 %5347
        %5349 = vrot.lane.b32.xlu0 %v5332, 32
        %v5350 = vpop.permute.xlu0 %5349
        %5351 = vrot.lane.b32.xlu0 %v5333, 32
        %v5352 = vpop.permute.xlu0 %5351
        %s5359 = sshra.s32 %s5334, 3
        %s5360 = sand.u32 %s5334, 7
        %s5361 = smul.addr %s5359, 4
        %s5362 = scalar_lea.vmem [#allocation2], %s5361
        %vm5363 = vcmask 257024
        %5364 = vst.msk [vmem:[%s5362] sm:$0xf] %vm5363, %v5342
        %5365 = vst.msk [vmem:[%s5362 + $0x4] sm:$0xf] %vm5363, %v5344
        %5366 = vst.msk [vmem:[%s5362 + $0x8] sm:$0xf] %vm5363, %v5346
        %5367 = vst.msk [vmem:[%s5362 + $0xc] sm:$0xf] %vm5363, %v5348
        %5368 = vst.msk [vmem:[%s5362 + $0x10] sm:$0xf] %vm5363, %v5350
        %5369 = vst.msk [vmem:[%s5362 + $0x14] sm:$0xf] %vm5363, %v5352
        // Predicated region
        $region52: #{convlstm_base_forward.1} parent=48 // pred_check
          %p5370 = pneg %p4993
        $region53: #{convlstm_base_forward.1} parent=48 // pred_check_branch
          %5372 = sbr.rel (%p5370) target = $region55
        $region54: #{convlstm_base_forward.1} parent=48 // pred_region
          %5379 = vrot.lane.b32.xlu0 %v5322, 32
          %v5380 = vpop.permute.xlu0 %5379
          %5381 = vrot.lane.b32.xlu0 %v5323, 32
          %v5382 = vpop.permute.xlu0 %5381
          %5383 = vrot.lane.b32.xlu0 %v5324, 32
          %v5384 = vpop.permute.xlu0 %5383
          %5385 = vrot.lane.b32.xlu0 %v5325, 32
          %v5386 = vpop.permute.xlu0 %5385
          %5387 = vrot.lane.b32.xlu0 %v5326, 32
          %v5388 = vpop.permute.xlu0 %5387
          %5389 = vrot.lane.b32.xlu0 %v5327, 32
          %v5390 = vpop.permute.xlu0 %5389
          %s5397 = scalar_lea.vmem %s250, %s5000
          %5398 = vst.msk [vmem:[%s5397] sm:$0xff] %vm657, %v5380
          %5399 = vst.msk [vmem:[%s5397 + $0x8] sm:$0xff] %vm657, %v5382
          %5400 = vst.msk [vmem:[%s5397 + $0x10] sm:$0xff] %vm657, %v5384
          %5401 = vst.msk [vmem:[%s5397 + $0x18] sm:$0xff] %vm657, %v5386
          %5402 = vst.msk [vmem:[%s5397 + $0x20] sm:$0xff] %vm657, %v5388
          %5403 = vst.msk [vmem:[%s5397 + $0x28] sm:$0xff] %vm657, %v5390
        $region55: #{convlstm_base_forward.1} parent=48 // pred_fallthru
          _
      $region49: #{convlstm_base_forward.1} parent=39 // loop_footer
        %s4999 = sadd.s32 1, %s4995
      $region50: #{convlstm_base_forward.1} parent=39 // loop_footer_branch
        %4994 = sbr.rel target = $region46
      $region51: #{convlstm_base_forward.1} parent=39 // loop_exit
        _
      %p5404 = scmp.lt.s32.totalorder %s20, 1
      %s5405 = scalar_select %p5404, %s20, 1
      %s5406 = smul.addr %s5405, 36
      %s5407 = smul.addr %s5406, 8
      %s5408 = scalar_lea.vmem %s5, %s5407
      // Predicated region
      $region56: #{convlstm_base_forward.1} parent=39 // pred_check
        %p5409 = pneg %p158
      $region57: #{convlstm_base_forward.1} parent=39 // pred_check_branch
        %5411 = sbr.rel (%p5409) target = $region59
      $region58: #{convlstm_base_forward.1} parent=39 // pred_region
        _
      $region59: #{convlstm_base_forward.1} parent=39 // pred_fallthru
        _
    $region40: #{convlstm_base_forward.1} parent=5 // pred_fallthru
      _
    %p5412 = scmp.le.s32.totalorder 2, %s11
    // Predicated region
    $region60: #{convlstm_base_forward.1} parent=5 // pred_check
      %p5413 = pneg %p5412
    $region61: #{convlstm_base_forward.1} parent=5 // pred_check_branch
      %5415 = sbr.rel (%p5413) target = $region63
    $region62: #{convlstm_base_forward.1} parent=5 // pred_region
      %s5416 = ssub.s32 %s11, 2
      // Predicated region
      $region64: #{convlstm_base_forward.1} parent=62 // pred_check
        %p5417 = pneg %p164
      $region65: #{convlstm_base_forward.1} parent=62 // pred_check_branch
        %5419 = sbr.rel (%p5417) target = $region67
      $region66: #{convlstm_base_forward.1} parent=62 // pred_region
        %p5420 = scmp.lt.s32.totalorder %s22, 1
        %s5421 = scalar_select %p5420, %s22, 1
        %s5422 = smul.addr %s5421, 36
        %s5423 = smul.addr %s5422, 8
        %s5424 = scalar_lea.vmem %s5, %s5423
      $region67: #{convlstm_base_forward.1} parent=62 // pred_fallthru
        _
    $region63: #{convlstm_base_forward.1} parent=5 // pred_fallthru
      _
  $region6: #{convlstm_base_forward.1} parent=0 // loop_footer
    %s15 = sadd.s32 1, %s11
  $region7: #{convlstm_base_forward.1} parent=0 // loop_footer_branch
    %10 = sbr.rel target = $region3
  $region8: #{convlstm_base_forward.1} parent=0 // loop_exit
    _

</llo_original>
